<compile_context>
chip_gen: v6e
topology: v6e:2x2x1
jax: 0.10.0
libtpu: 0.0.40
codegen_flags: <defaults>
</compile_context>

<pallas_src>
import numpy as np
import jax
import jax.numpy as jnp
from jax.experimental import pallas as pl
from jax.experimental.pallas import tpu as pltpu


def _round_up(x, m):
    return ((x + m - 1) // m) * m


def _entity_knowledge_kernel(x_ref, w_ref, b_ref, o_ref):
    """One grid step handles TM (batch*len) positions.

    x_ref : (n_labels, TM, 2*top_k*300) bf16  VMEM  (entity-major fact slabs)
    w_ref : (2*top_k*300, 2*top_k*100)  bf16  VMEM  (block-diagonal conv weight)
    b_ref : (1, 2*top_k*100)            f32   VMEM  (tiled conv bias)
    o_ref : (TM, 2*top_k*100)           f32   VMEM  (lane-dense output)
    """
    n_labels = x_ref.shape[0]

    # mean over entities BEFORE the conv (linearity) -- pure VPU adds.
    acc = x_ref[0].astype(jnp.float32)
    for e in range(1, n_labels):
        acc = acc + x_ref[e].astype(jnp.float32)
    xs = (acc * (1.0 / n_labels)).astype(w_ref.dtype)          # (TM, 1800) bf16

    # single MXU matmul: (TM, 1800) @ (1800, 600), f32 accumulate, bias once.
    y = jnp.dot(xs, w_ref[...], preferred_element_type=jnp.float32)
    o_ref[...] = y + b_ref[...]


def entity_knowledge_forward(detect_labels, fact_table, conv_w, conv_b,
                             top_k_facts, *, tile_m=256):
    """detect_labels: (B, L, n_labels) int32, -1 == "no label".
    fact_table: (num_classes + 1, top_k_facts, 600) float32 (last row = zeros).
    conv_w: (300, 100) float32, conv_b: (100,) float32.
    Returns (B, L, 2*top_k_facts*100) float32 (== 600 for top_k_facts = 3)."""
    B, L, n_labels = detect_labels.shape
    K2 = 2 * top_k_facts
    D_in = 300
    D_out = conv_w.shape[1]                  # 100
    F_in = K2 * D_in                         # 1800
    F_out = K2 * D_out                       # 600
    num_classes = fact_table.shape[0] - 1
    P = B * L

    # ---- tile sizing: batch TM positions per grid step -----------------------
    tile_m = max(8, _round_up(tile_m, 8))
    tm = min(tile_m, _round_up(P, 8))
    # keep at least 2 grid steps when possible so both v7x TensorCores get work
    if _round_up(P, tm) // tm < 2 and tm >= 16 and tm % 16 == 0:
        tm //= 2
    P_pad = _round_up(P, tm)
    grid = P_pad // tm

    # ---- glue: embedding lookup, entity-major, bf16 (plain JAX) --------------
    table_flat = fact_table.reshape(num_classes + 1, F_in).astype(jnp.bfloat16)
    idx = jnp.where(detect_labels < 0, num_classes, detect_labels).reshape(P, n_labels)
    # pad the cheap index array (not the gathered payload) with the zero-row id
    idx_t = jnp.pad(idx.T.astype(jnp.int32), ((0, 0), (0, P_pad - P)),
                    constant_values=num_classes)            # (n_labels, P_pad)
    facts = jnp.take(table_flat, idx_t.reshape(-1), axis=0)
    facts = facts.reshape(n_labels, P_pad, F_in)             # (n_labels, P_pad, 1800)

    # block-diagonal conv weight: per-token Linear(300 -> 100) for all K2 tokens
    w = conv_w.astype(jnp.float32)
    w_big = jnp.zeros((F_in, F_out), jnp.float32)
    for k in range(K2):
        w_big = w_big.at[k * D_in:(k + 1) * D_in, k * D_out:(k + 1) * D_out].set(w)
    w_big = w_big.astype(jnp.bfloat16)                       # (1800, 600)
    b_big = jnp.tile(conv_b.reshape(1, D_out).astype(jnp.float32), (1, K2))  # (1, 600)

    out = pl.pallas_call(
        _entity_knowledge_kernel,
        out_shape=jax.ShapeDtypeStruct((P_pad, F_out), jnp.float32),
        grid_spec=pltpu.PrefetchScalarGridSpec(
            num_scalar_prefetch=0,
            grid=(grid,),
            in_specs=[
                pl.BlockSpec((n_labels, tm, F_in), lambda i: (0, i, 0)),
                pl.BlockSpec((F_in, F_out), lambda i: (0, 0)),
                pl.BlockSpec((1, F_out), lambda i: (0, 0)),
            ],
            out_specs=pl.BlockSpec((tm, F_out), lambda i: (i, 0)),
        ),
        compiler_params=pltpu.CompilerParams(
            dimension_semantics=("parallel",),
            vmem_limit_bytes=32 * 1024 * 1024,
        ),
    )(facts, w_big, b_big)

    # final embedding: (B, L, 2*top_k*100) == (B, L, 600) when top_k_facts == 3
    return out[:P].reshape(B, L, F_out)


def _reference(detect_labels, fact_table, conv_w, conv_b, top_k_facts):
    B, L, n_labels = detect_labels.shape
    K2 = 2 * top_k_facts
    num_classes = fact_table.shape[0] - 1
    idx = jnp.where(detect_labels < 0, num_classes, detect_labels).reshape(-1)
    facts = jnp.take(fact_table, idx, axis=0).reshape(B * L, n_labels, K2, 300)
    y = jnp.einsum("mekc,co->meko", facts, conv_w) + conv_b[None, None, None, :]
    y = jnp.mean(y, axis=1)                                   # mean over n_labels entities
    return y.reshape(B, L, K2 * conv_w.shape[1])


if __name__ == "__main__":
    key = jax.random.PRNGKey(0)
    k_tab, k_w, k_b, k_lab = jax.random.split(key, 4)

    # small, forward-consistent shapes
    batch, max_len, n_labels = 2, 8, 4
    top_k_facts = 3                         # 2 * top_k * 100 == 600
    num_classes = 20

    # synthetic knowledge table (num_classes + 1 rows; last row == zeros for label -1)
    fact_table = jax.random.normal(k_tab, (num_classes + 1, top_k_facts, 600),
                                   dtype=jnp.float32)
    fact_table = fact_table.at[num_classes].set(0.0)

    # deterministic "Conv2d(300, 100, kernel_size=1, bias=True)" parameters
    conv_w = jax.random.normal(k_w, (300, 100), dtype=jnp.float32) / jnp.sqrt(300.0)
    conv_b = jax.random.normal(k_b, (100,), dtype=jnp.float32) * 0.1

    # detect_labels with a few -1 sentinels
    detect_labels = jax.random.randint(k_lab, (batch, max_len, n_labels),
                                       minval=-1, maxval=num_classes, dtype=jnp.int32)

    out = entity_knowledge_forward(detect_labels, fact_table, conv_w, conv_b,
                                   top_k_facts)
    out = jax.block_until_ready(out)

    assert out.shape == (batch, max_len, 600), out.shape

    ref = _reference(detect_labels, fact_table, conv_w, conv_b, top_k_facts)
    # bf16 facts/weights in the kernel -> slightly relaxed tolerance
    np.testing.assert_allclose(np.asarray(out), np.asarray(ref), rtol=2e-2, atol=2e-2)

    print("KERNEL_OK")
</pallas_src>

<mosaic_0001>
module attributes {stable_mosaic.version = 11 : i64} {
  func.func @_entity_knowledge_kernel(%arg0: i32, %arg1: memref<4x8x1800xbf16, #tpu.memory_space<vmem>>, %arg2: memref<1800x600xbf16, #tpu.memory_space<vmem>>, %arg3: memref<1x600xf32, #tpu.memory_space<vmem>>, %arg4: memref<8x600xf32, #tpu.memory_space<vmem>>) attributes {dimension_semantics = [#tpu.dimension_semantics<parallel>], iteration_bounds = array<i64: 2>, scalar_prefetch = 0 : i64, scratch_operands = 0 : i64, tpu.core_type = #tpu.core_type<tc>, window_params = [{transform_indices = @transform_0, window_bounds = array<i64: 4, 8, 1800>}, {pipeline_mode = #tpu.pipeline_mode<synchronous>, transform_indices = @transform_1, window_bounds = array<i64: 1800, 600>}, {pipeline_mode = #tpu.pipeline_mode<synchronous>, transform_indices = @transform_2, window_bounds = array<i64: 1, 600>}, {transform_indices = @transform_3, window_bounds = array<i64: 8, 600>}]} {
    %c0 = arith.constant 0 : index
    %c0_0 = arith.constant 0 : index
    %c0_1 = arith.constant 0 : index
    %0 = vector.load %arg1[%c0, %c0_0, %c0_1] : memref<4x8x1800xbf16, #tpu.memory_space<vmem>>, vector<1x8x1800xbf16>
    %1 = vector.shape_cast %0 : vector<1x8x1800xbf16> to vector<8x1800xbf16>
    %2 = arith.extf %1 : vector<8x1800xbf16> to vector<8x1800xf32>
    %c1 = arith.constant 1 : index
    %c0_2 = arith.constant 0 : index
    %c0_3 = arith.constant 0 : index
    %3 = vector.load %arg1[%c1, %c0_2, %c0_3] : memref<4x8x1800xbf16, #tpu.memory_space<vmem>>, vector<1x8x1800xbf16>
    %4 = vector.shape_cast %3 : vector<1x8x1800xbf16> to vector<8x1800xbf16>
    %5 = arith.extf %4 : vector<8x1800xbf16> to vector<8x1800xf32>
    %6 = arith.addf %2, %5 : vector<8x1800xf32>
    %c2 = arith.constant 2 : index
    %c0_4 = arith.constant 0 : index
    %c0_5 = arith.constant 0 : index
    %7 = vector.load %arg1[%c2, %c0_4, %c0_5] : memref<4x8x1800xbf16, #tpu.memory_space<vmem>>, vector<1x8x1800xbf16>
    %8 = vector.shape_cast %7 : vector<1x8x1800xbf16> to vector<8x1800xbf16>
    %9 = arith.extf %8 : vector<8x1800xbf16> to vector<8x1800xf32>
    %10 = arith.addf %6, %9 : vector<8x1800xf32>
    %c3 = arith.constant 3 : index
    %c0_6 = arith.constant 0 : index
    %c0_7 = arith.constant 0 : index
    %11 = vector.load %arg1[%c3, %c0_6, %c0_7] : memref<4x8x1800xbf16, #tpu.memory_space<vmem>>, vector<1x8x1800xbf16>
    %12 = vector.shape_cast %11 : vector<1x8x1800xbf16> to vector<8x1800xbf16>
    %13 = arith.extf %12 : vector<8x1800xbf16> to vector<8x1800xf32>
    %14 = arith.addf %10, %13 : vector<8x1800xf32>
    %cst = arith.constant 2.500000e-01 : f32
    %15 = vector.broadcast %cst : f32 to vector<8x1800xf32>
    %16 = arith.mulf %14, %15 : vector<8x1800xf32>
    %17 = arith.truncf %16 : vector<8x1800xf32> to vector<8x1800xbf16>
    %c0_8 = arith.constant 0 : index
    %c0_9 = arith.constant 0 : index
    %18 = vector.load %arg2[%c0_8, %c0_9] : memref<1800x600xbf16, #tpu.memory_space<vmem>>, vector<1800x600xbf16>
    %cst_10 = arith.constant dense<0.000000e+00> : vector<8x600xf32>
    %19 = tpu.matmul %17, %18, %cst_10 {dimension_numbers = #tpu.dot_dimension_numbers<[1], [0], [0], [1], [0, 0, 1, 1], [], []>} : vector<8x1800xbf16>, vector<1800x600xbf16>, vector<8x600xf32> -> vector<8x600xf32>
    %c0_11 = arith.constant 0 : index
    %c0_12 = arith.constant 0 : index
    %20 = vector.load %arg3[%c0_11, %c0_12] : memref<1x600xf32, #tpu.memory_space<vmem>>, vector<1x600xf32>
    %21 = vector.broadcast %20 : vector<1x600xf32> to vector<8x600xf32>
    %22 = arith.addf %19, %21 : vector<8x600xf32>
    %c0_13 = arith.constant 0 : index
    %c0_14 = arith.constant 0 : index
    %23 = vector.load %arg4[%c0_13, %c0_14] : memref<8x600xf32, #tpu.memory_space<vmem>>, vector<8x600xf32>
    tpu.vector_store %arg4[%c0_13, %c0_14], %22 {strides = array<i32>} : memref<8x600xf32, #tpu.memory_space<vmem>>, vector<8x600xf32>,
    return
  }
  func.func @transform_0(%arg0: i32) -> (i32, i32, i32) {
    %c0_i32 = arith.constant 0 : i32
    %c0_i32_0 = arith.constant 0 : i32
    %c0_i32_1 = arith.constant 0 : i32
    return %c0_i32, %arg0, %c0_i32_0 : i32, i32, i32
  }
  func.func @transform_1(%arg0: i32) -> (i32, i32) {
    %c0_i32 = arith.constant 0 : i32
    %c0_i32_0 = arith.constant 0 : i32
    %c0_i32_1 = arith.constant 0 : i32
    return %c0_i32, %c0_i32_0 : i32, i32
  }
  func.func @transform_2(%arg0: i32) -> (i32, i32) {
    %c0_i32 = arith.constant 0 : i32
    %c0_i32_0 = arith.constant 0 : i32
    %c0_i32_1 = arith.constant 0 : i32
    return %c0_i32, %c0_i32_0 : i32, i32
  }
  func.func @transform_3(%arg0: i32) -> (i32, i32) {
    %c0_i32 = arith.constant 0 : i32
    %c0_i32_0 = arith.constant 0 : i32
    return %arg0, %c0_i32 : i32, i32
  }
}

</mosaic_0001>

<llo_original>
// kernel: tpu_custom_call.1
$region0: #{tpu_custom_call.1}
  #allocation0 [shape = 'u32[]', space=smem, size = 0x4, offset = 0x4, fixed_abs, tag = 'smem constant byte address 0x4 - core index']
  #allocation1 [shape = 'u32[144,128]{1,0:T(1,128)}', space=vmem, size = 0x12000, scoped, tag = 'internal scratch']
  %s0 = inlined_call_operand.hbm [shape: bf16[4,16,1800], index: 0, kind: input, shape index: {}]
  %s1 = inlined_call_operand.hbm [shape: bf16[1800,600], index: 1, kind: input, shape index: {}]
  %s2 = inlined_call_operand.hbm [shape: f32[1,600], index: 2, kind: input, shape index: {}]
  %s3 = inlined_call_operand.hbm [shape: f32[16,600], index: 3, kind: output, shape index: {}]
  %s4 = sld [smem:[#allocation0]]
  $region57: #{tpu_custom_call.1} parent=0
    _
  %s6 = ssub.s32 1, %s4
  %s7 = scalar_select 0, %s6, %s4
  $region1: #{tpu_custom_call.1} parent=0
    #allocation2 [shape = 'u8[245760]{0}', space=vmem, size = 0x3c000, scoped, tag = 'input window, operand 0']
    #allocation3 [shape = 's32[2]{0}', space=sflag, size = 0x8, scoped, tag = 'scoped memory for tpu_custom_call.1']
    #allocation4 [shape = 's32[2]{0}', space=sflag, size = 0x8, scoped, tag = 'scoped memory for tpu_custom_call.1']
    #allocation5 [shape = 'u8[2304000]{0}', space=vmem, size = 0x232800, scoped, tag = 'input window, operand 1, single buffered']
    #allocation6 [shape = 's32[1]{0}', space=sflag, size = 0x4, scoped, tag = 'scoped memory for tpu_custom_call.1']
    #allocation7 [shape = 'u8[2560]{0}', space=vmem, size = 0xc00, scoped, tag = 'input window, operand 2, single buffered']
    #allocation8 [shape = 'u8[40960]{0}', space=vmem, size = 0xa000, scoped, tag = 'output window, operand 0']
    %8 = vsyncpa [#allocation3], 0
    %s9 = scalar_lea.sflag [#allocation3], 1
    %10 = vsyncpa %s9, 0
    %11 = vsyncpa [#allocation6], 0
    %12 = vsyncpa [#allocation4], 0
    %s13 = scalar_lea.sflag [#allocation4], 1
    %14 = vsyncpa %s13, 0
    loop: start=0, step=1, limit=4
    $region2: #{tpu_custom_call.1} parent=1 // loop_pre_header
      _
    $region3: #{tpu_custom_call.1} parent=1 // loop_header
      %s16 = sphi 0, %s20
      %p17 = scmp.ge.s32.totalorder %s16, 4
      %s26 = sphi 0, %s28
      %s29 = sphi 0, %s26
      %s30 = sphi 0, %s29
      %s46 = sphi 0, %s30
      %s50 = sphi 0, %s50
      %s52 = sphi 0, %s50
      %s53 = sphi 0, %s52
      %s67 = sphi 0, %s53
      %s71 = sphi 0, %s71
      %s73 = sphi 0, %s71
      %s74 = sphi 0, %s73
      %s88 = sphi 0, %s74
      %s94 = sphi 0, %s96
      %s97 = sphi 0, %s94
      %s98 = sphi 0, %s97
      %s114 = sphi 0, %s98
    $region4: #{tpu_custom_call.1} parent=1 // loop_header_branch
      %19 = sbr.rel (%p17) target = $region8
    $region5: #{tpu_custom_call.1} parent=1 // loop_body
      %s21 = ssub.s32 %s16, 1
      %s22 = ssub.s32 %s16, 2
      %s23 = sadd.s32 %s16, 1
      %s24 = ssub.s32 %s16, %s23
      %p25 = scmp.eq.s32.totalorder %s24, 0
      %s27 = sadd.s32 %s26, 1
      %s28 = scalar_select %p25, %s26, %s27
      %p31 = pneg %p25
      %p32 = scmp.eq.s32.totalorder %s16, 1
      %p33 = por %p31, %p32
      %p34 = scmp.ne.s32.totalorder %s26, %s29
      %p35 = scmp.eq.s32.totalorder %s16, 0
      %p36 = por %p34, %p35
      %p37 = scmp.ne.s32.totalorder %s26, %s29
      %p38 = scmp.eq.s32.totalorder %s21, 1
      %p39 = por %p37, %p38
      %p40 = scmp.ne.s32.totalorder %s29, %s30
      %p41 = scmp.eq.s32.totalorder %s21, 0
      %p42 = por %p40, %p41
      %p43 = scmp.ne.s32.totalorder %s29, %s30
      %p44 = scmp.eq.s32.totalorder %s22, 1
      %p45 = por %p43, %p44
      %p47 = scmp.ne.s32.totalorder %s30, %s46
      %p48 = scmp.eq.s32.totalorder %s22, 0
      %p49 = por %p47, %p48
      %s51 = sadd.s32 %s50, 1
      %p54 = scmp.eq.s32.totalorder %s16, 1
      %p55 = scmp.ne.s32.totalorder %s50, %s52
      %p56 = scmp.eq.s32.totalorder %s16, 0
      %p57 = por %p55, %p56
      %p58 = scmp.ne.s32.totalorder %s50, %s52
      %p59 = scmp.eq.s32.totalorder %s21, 1
      %p60 = por %p58, %p59
      %p61 = scmp.ne.s32.totalorder %s52, %s53
      %p62 = scmp.eq.s32.totalorder %s21, 0
      %p63 = por %p61, %p62
      %p64 = scmp.ne.s32.totalorder %s52, %s53
      %p65 = scmp.eq.s32.totalorder %s22, 1
      %p66 = por %p64, %p65
      %p68 = scmp.ne.s32.totalorder %s53, %s67
      %p69 = scmp.eq.s32.totalorder %s22, 0
      %p70 = por %p68, %p69
      %s72 = sadd.s32 %s71, 1
      %p75 = scmp.eq.s32.totalorder %s16, 1
      %p76 = scmp.ne.s32.totalorder %s71, %s73
      %p77 = scmp.eq.s32.totalorder %s16, 0
      %p78 = por %p76, %p77
      %p79 = scmp.ne.s32.totalorder %s71, %s73
      %p80 = scmp.eq.s32.totalorder %s21, 1
      %p81 = por %p79, %p80
      %p82 = scmp.ne.s32.totalorder %s73, %s74
      %p83 = scmp.eq.s32.totalorder %s21, 0
      %p84 = por %p82, %p83
      %p85 = scmp.ne.s32.totalorder %s73, %s74
      %p86 = scmp.eq.s32.totalorder %s22, 1
      %p87 = por %p85, %p86
      %p89 = scmp.ne.s32.totalorder %s74, %s88
      %p90 = scmp.eq.s32.totalorder %s22, 0
      %p91 = por %p89, %p90
      %s92 = ssub.s32 %s16, %s23
      %p93 = scmp.eq.s32.totalorder %s92, 0
      %s95 = sadd.s32 %s94, 1
      %s96 = scalar_select %p93, %s94, %s95
      %p99 = pneg %p93
      %p100 = scmp.eq.s32.totalorder %s16, 1
      %p101 = por %p99, %p100
      %p102 = scmp.ne.s32.totalorder %s94, %s97
      %p103 = scmp.eq.s32.totalorder %s16, 0
      %p104 = por %p102, %p103
      %p105 = scmp.ne.s32.totalorder %s94, %s97
      %p106 = scmp.eq.s32.totalorder %s21, 1
      %p107 = por %p105, %p106
      %p108 = scmp.ne.s32.totalorder %s97, %s98
      %p109 = scmp.eq.s32.totalorder %s21, 0
      %p110 = por %p108, %p109
      %p111 = scmp.ne.s32.totalorder %s97, %s98
      %p112 = scmp.eq.s32.totalorder %s22, 1
      %p113 = por %p111, %p112
      %p115 = scmp.ne.s32.totalorder %s98, %s114
      %p116 = scmp.eq.s32.totalorder %s22, 0
      %p117 = por %p115, %p116
      %p118 = scmp.le.s32.totalorder 1, %s16
      %p119 = scmp.lt.s32.totalorder %s16, 3
      %p120 = pnand %p118, %p119
      %p121 = pneg %p120
      // Predicated region
      $region9: #{tpu_custom_call.1} parent=5 // pred_check
        _
      $region10: #{tpu_custom_call.1} parent=5 // pred_check_branch
        %123 = sbr.rel (%p120) target = $region12
      $region11: #{tpu_custom_call.1} parent=5 // pred_region
        %s124 = ssub.s32 %s16, 1
        // Predicated region
        $region13: #{tpu_custom_call.1} parent=11 // pred_check
          %p125 = pneg %p63
        $region14: #{tpu_custom_call.1} parent=11 // pred_check_branch
          %127 = sbr.rel (%p125) target = $region16
        $region15: #{tpu_custom_call.1} parent=11 // pred_region
          %s129 = ssub.s32 72000, 72000
          %130 = vsyncadd [#allocation6], %s129
          %s131 = sshll.u32 [#allocation5], 4
          %s132 = int_to_ptr.vmem [resolvable:$true] %s131
          %137 = dma.hbm_to_vmem [thread:$0]  %s1, 72000, %s132, [#allocation6], 320, 320, 20
        $region16: #{tpu_custom_call.1} parent=11 // pred_fallthru
          _
        // Predicated region
        $region17: #{tpu_custom_call.1} parent=11 // pred_check
          %p138 = pneg %p84
        $region18: #{tpu_custom_call.1} parent=11 // pred_check_branch
          %140 = sbr.rel (%p138) target = $region20
        $region19: #{tpu_custom_call.1} parent=11 // pred_region
          %s142 = ssub.s32 80, 80
          %143 = vsyncadd [#allocation6], %s142
          %s145 = sshll.u32 [#allocation7], 4
          %s146 = int_to_ptr.vmem [resolvable:$true] %s145
          %148 = dma.hbm_to_vmem [thread:$0]  %s2, 80, %s146, [#allocation6]
        $region20: #{tpu_custom_call.1} parent=11 // pred_fallthru
          _
      $region12: #{tpu_custom_call.1} parent=5 // pred_fallthru
        _
      %p149 = scmp.lt.s32.totalorder %s16, 2
      // Predicated region
      $region21: #{tpu_custom_call.1} parent=5 // pred_check
        %p150 = pneg %p149
      $region22: #{tpu_custom_call.1} parent=5 // pred_check_branch
        %152 = sbr.rel (%p150) target = $region24
      $region23: #{tpu_custom_call.1} parent=5 // pred_region
        // Predicated region
        $region25: #{tpu_custom_call.1} parent=23 // pred_check
          %p153 = pneg %p36
        $region26: #{tpu_custom_call.1} parent=23 // pred_check_branch
          %155 = sbr.rel (%p153) target = $region28
        $region27: #{tpu_custom_call.1} parent=23 // pred_region
          %s156 = sand.u32 %s26, 1
          %s157 = scalar_lea.sflag [#allocation3], %s156
          %s158 = sand.u32 %s26, 1
          %s159 = smul.addr %s158, 240
          %s160 = scalar_lea.vmem [#allocation2], %s159
          %s162 = ssub.s32 3840, 3840
          %163 = vsyncadd %s157, %s162
          %s164 = smul.addr %s16, 15
          %s165 = smul.addr %s164, 64
          %s166 = scalar_lea.hbm %s0, %s165
          %s167 = sshll.u32 %s160, 4
          %s168 = int_to_ptr.vmem [resolvable:$true] %s167
          %173 = dma.hbm_to_vmem [thread:$0]  %s166, 3840, %s168, %s157, 1920, 960, 60
        $region28: #{tpu_custom_call.1} parent=23 // pred_fallthru
          _
      $region24: #{tpu_custom_call.1} parent=5 // pred_fallthru
        _
      %p174 = scmp.le.s32.totalorder 1, %s16
      %p175 = scmp.lt.s32.totalorder %s16, 3
      %p176 = pnand %p174, %p175
      %p177 = pneg %p176
      // Predicated region
      $region29: #{tpu_custom_call.1} parent=5 // pred_check
        _
      $region30: #{tpu_custom_call.1} parent=5 // pred_check_branch
        %179 = sbr.rel (%p176) target = $region32
      $region31: #{tpu_custom_call.1} parent=5 // pred_region
        %s180 = ssub.s32 %s16, 1
        %s181 = sand.u32 %s29, 1
        %s182 = scalar_lea.sflag [#allocation3], %s181
        %s183 = sand.u32 %s29, 1
        %s184 = smul.addr %s183, 240
        %s185 = scalar_lea.vmem [#allocation2], %s184
        // Predicated region
        $region33: #{tpu_custom_call.1} parent=31 // pred_check
          %p186 = pneg %p42
        $region34: #{tpu_custom_call.1} parent=31 // pred_check_branch
          %188 = sbr.rel (%p186) target = $region36
        $region35: #{tpu_custom_call.1} parent=31 // pred_region
          %189 = dma.done %s182, 3840
        $region36: #{tpu_custom_call.1} parent=31 // pred_fallthru
          _
        // Predicated region
        $region37: #{tpu_custom_call.1} parent=31 // pred_check
          %p190 = pneg %p63
        $region38: #{tpu_custom_call.1} parent=31 // pred_check_branch
          %192 = sbr.rel (%p190) target = $region40
        $region39: #{tpu_custom_call.1} parent=31 // pred_region
          %193 = dma.done [#allocation6], 72000
        $region40: #{tpu_custom_call.1} parent=31 // pred_fallthru
          _
        // Predicated region
        $region41: #{tpu_custom_call.1} parent=31 // pred_check
          %p194 = pneg %p84
        $region42: #{tpu_custom_call.1} parent=31 // pred_check_branch
          %196 = sbr.rel (%p194) target = $region44
        $region43: #{tpu_custom_call.1} parent=31 // pred_region
          %197 = dma.done [#allocation6], 80
        $region44: #{tpu_custom_call.1} parent=31 // pred_fallthru
          _
        %s198 = sand.u32 %s29, 1
        %s199 = scalar_lea.sflag [#allocation3], %s198
        %s200 = sand.u32 %s29, 1
        %s201 = smul.addr %s200, 240
        %s202 = scalar_lea.vmem [#allocation2], %s201
        %p203 = pneg %p42
        %p204 = pneg %p39
        %p205 = pneg %p63
        %p206 = pneg %p60
        %p207 = pneg %p84
        %p208 = pneg %p81
        %p209 = pneg %p110
        %p210 = pneg %p107
        %s211 = sand.u32 %s97, 1
        %s212 = scalar_lea.sflag [#allocation4], %s211
        %s213 = sand.u32 %s97, 1
        %s214 = smul.addr %s213, 40
        %s215 = scalar_lea.vmem [#allocation8], %s214
        %v217 = vld [vmem:[%s185] sm:$0xff]
        %v218 = vld [vmem:[%s185 + $0x8] sm:$0xff]
        %v219 = vld [vmem:[%s185 + $0x10] sm:$0xff]
        %v220 = vld [vmem:[%s185 + $0x18] sm:$0xff]
        %v221 = vld [vmem:[%s185 + $0x20] sm:$0xff]
        %v222 = vld [vmem:[%s185 + $0x28] sm:$0xff]
        %v223 = vld [vmem:[%s185 + $0x30] sm:$0xff]
        %v224 = vld [vmem:[%s185 + $0x38] sm:$0xf]
        %v225 = vunpack.c.l.bf16 %v217
        %v226 = vunpack.c.h.bf16 %v217
        %v227 = vunpack.c.l.bf16 %v218
        %v228 = vunpack.c.h.bf16 %v218
        %v229 = vunpack.c.l.bf16 %v219
        %v230 = vunpack.c.h.bf16 %v219
        %v231 = vunpack.c.l.bf16 %v220
        %v232 = vunpack.c.h.bf16 %v220
        %v233 = vunpack.c.l.bf16 %v221
        %v234 = vunpack.c.h.bf16 %v221
        %v235 = vunpack.c.l.bf16 %v222
        %v236 = vunpack.c.h.bf16 %v222
        %v237 = vunpack.c.l.bf16 %v223
        %v238 = vunpack.c.h.bf16 %v223
        %v239 = vunpack.c.l.bf16 %v224
        %s240 = scalar_lea.vmem %s185, 60 [#allocation2]
        %v241 = vld [vmem:[%s240] sm:$0xff]
        %v242 = vld [vmem:[%s240 + $0x8] sm:$0xff]
        %v243 = vld [vmem:[%s240 + $0x10] sm:$0xff]
        %v244 = vld [vmem:[%s240 + $0x18] sm:$0xff]
        %v245 = vld [vmem:[%s240 + $0x20] sm:$0xff]
        %v246 = vld [vmem:[%s240 + $0x28] sm:$0xff]
        %v247 = vld [vmem:[%s240 + $0x30] sm:$0xff]
        %v248 = vld [vmem:[%s240 + $0x38] sm:$0xf]
        %v249 = vunpack.c.l.bf16 %v241
        %v250 = vunpack.c.h.bf16 %v241
        %v251 = vunpack.c.l.bf16 %v242
        %v252 = vunpack.c.h.bf16 %v242
        %v253 = vunpack.c.l.bf16 %v243
        %v254 = vunpack.c.h.bf16 %v243
        %v255 = vunpack.c.l.bf16 %v244
        %v256 = vunpack.c.h.bf16 %v244
        %v257 = vunpack.c.l.bf16 %v245
        %v258 = vunpack.c.h.bf16 %v245
        %v259 = vunpack.c.l.bf16 %v246
        %v260 = vunpack.c.h.bf16 %v246
        %v261 = vunpack.c.l.bf16 %v247
        %v262 = vunpack.c.h.bf16 %v247
        %v263 = vunpack.c.l.bf16 %v248
        %v264 = vadd.f32 %v225, %v249
        %v265 = vadd.f32 %v226, %v250
        %v266 = vadd.f32 %v227, %v251
        %v267 = vadd.f32 %v228, %v252
        %v268 = vadd.f32 %v229, %v253
        %v269 = vadd.f32 %v230, %v254
        %v270 = vadd.f32 %v231, %v255
        %v271 = vadd.f32 %v232, %v256
        %v272 = vadd.f32 %v233, %v257
        %v273 = vadd.f32 %v234, %v258
        %v274 = vadd.f32 %v235, %v259
        %v275 = vadd.f32 %v236, %v260
        %v276 = vadd.f32 %v237, %v261
        %v277 = vadd.f32 %v238, %v262
        %v278 = vadd.f32 %v239, %v263
        %s279 = scalar_lea.vmem %s185, 120 [#allocation2]
        %v280 = vld [vmem:[%s279] sm:$0xff]
        %v281 = vld [vmem:[%s279 + $0x8] sm:$0xff]
        %v282 = vld [vmem:[%s279 + $0x10] sm:$0xff]
        %v283 = vld [vmem:[%s279 + $0x18] sm:$0xff]
        %v284 = vld [vmem:[%s279 + $0x20] sm:$0xff]
        %v285 = vld [vmem:[%s279 + $0x28] sm:$0xff]
        %v286 = vld [vmem:[%s279 + $0x30] sm:$0xff]
        %v287 = vld [vmem:[%s279 + $0x38] sm:$0xf]
        %v288 = vunpack.c.l.bf16 %v280
        %v289 = vunpack.c.h.bf16 %v280
        %v290 = vunpack.c.l.bf16 %v281
        %v291 = vunpack.c.h.bf16 %v281
        %v292 = vunpack.c.l.bf16 %v282
        %v293 = vunpack.c.h.bf16 %v282
        %v294 = vunpack.c.l.bf16 %v283
        %v295 = vunpack.c.h.bf16 %v283
        %v296 = vunpack.c.l.bf16 %v284
        %v297 = vunpack.c.h.bf16 %v284
        %v298 = vunpack.c.l.bf16 %v285
        %v299 = vunpack.c.h.bf16 %v285
        %v300 = vunpack.c.l.bf16 %v286
        %v301 = vunpack.c.h.bf16 %v286
        %v302 = vunpack.c.l.bf16 %v287
        %v303 = vadd.f32 %v264, %v288
        %v304 = vadd.f32 %v265, %v289
        %v305 = vadd.f32 %v266, %v290
        %v306 = vadd.f32 %v267, %v291
        %v307 = vadd.f32 %v268, %v292
        %v308 = vadd.f32 %v269, %v293
        %v309 = vadd.f32 %v270, %v294
        %v310 = vadd.f32 %v271, %v295
        %v311 = vadd.f32 %v272, %v296
        %v312 = vadd.f32 %v273, %v297
        %v313 = vadd.f32 %v274, %v298
        %v314 = vadd.f32 %v275, %v299
        %v315 = vadd.f32 %v276, %v300
        %v316 = vadd.f32 %v277, %v301
        %v317 = vadd.f32 %v278, %v302
        %s318 = scalar_lea.vmem %s185, 180 [#allocation2]
        %v319 = vld [vmem:[%s318] sm:$0xff]
        %v320 = vld [vmem:[%s318 + $0x8] sm:$0xff]
        %v321 = vld [vmem:[%s318 + $0x10] sm:$0xff]
        %v322 = vld [vmem:[%s318 + $0x18] sm:$0xff]
        %v323 = vld [vmem:[%s318 + $0x20] sm:$0xff]
        %v324 = vld [vmem:[%s318 + $0x28] sm:$0xff]
        %v325 = vld [vmem:[%s318 + $0x30] sm:$0xff]
        %v326 = vld [vmem:[%s318 + $0x38] sm:$0xf]
        %v327 = vunpack.c.l.bf16 %v319
        %v328 = vunpack.c.h.bf16 %v319
        %v329 = vunpack.c.l.bf16 %v320
        %v330 = vunpack.c.h.bf16 %v320
        %v331 = vunpack.c.l.bf16 %v321
        %v332 = vunpack.c.h.bf16 %v321
        %v333 = vunpack.c.l.bf16 %v322
        %v334 = vunpack.c.h.bf16 %v322
        %v335 = vunpack.c.l.bf16 %v323
        %v336 = vunpack.c.h.bf16 %v323
        %v337 = vunpack.c.l.bf16 %v324
        %v338 = vunpack.c.h.bf16 %v324
        %v339 = vunpack.c.l.bf16 %v325
        %v340 = vunpack.c.h.bf16 %v325
        %v341 = vunpack.c.l.bf16 %v326
        %v342 = vadd.f32 %v303, %v327
        %v343 = vadd.f32 %v304, %v328
        %v344 = vadd.f32 %v305, %v329
        %v345 = vadd.f32 %v306, %v330
        %v346 = vadd.f32 %v307, %v331
        %v347 = vadd.f32 %v308, %v332
        %v348 = vadd.f32 %v309, %v333
        %v349 = vadd.f32 %v310, %v334
        %v350 = vadd.f32 %v311, %v335
        %v351 = vadd.f32 %v312, %v336
        %v352 = vadd.f32 %v313, %v337
        %v353 = vadd.f32 %v314, %v338
        %v354 = vadd.f32 %v315, %v339
        %v355 = vadd.f32 %v316, %v340
        %v356 = vadd.f32 %v317, %v341
        %v357 = vmul.f32 %v342, 0.25
        %v358 = vmul.f32 %v343, 0.25
        %v359 = vmul.f32 %v344, 0.25
        %v360 = vmul.f32 %v345, 0.25
        %v361 = vmul.f32 %v346, 0.25
        %v362 = vmul.f32 %v347, 0.25
        %v363 = vmul.f32 %v348, 0.25
        %v364 = vmul.f32 %v349, 0.25
        %v365 = vmul.f32 %v350, 0.25
        %v366 = vmul.f32 %v351, 0.25
        %v367 = vmul.f32 %v352, 0.25
        %v368 = vmul.f32 %v353, 0.25
        %v369 = vmul.f32 %v354, 0.25
        %v370 = vmul.f32 %v355, 0.25
        %v371 = vmul.f32 %v356, 0.25
        %v372 = vpack.c.bf16 %v357, %v357
        %v373 = vpack.c.bf16 %v358, %v358
        %v374 = vpack.c.bf16 %v359, %v359
        %v375 = vpack.c.bf16 %v360, %v360
        %v376 = vpack.c.bf16 %v361, %v361
        %v377 = vpack.c.bf16 %v362, %v362
        %v378 = vpack.c.bf16 %v363, %v363
        %v379 = vpack.c.bf16 %v364, %v364
        %v380 = vpack.c.bf16 %v365, %v365
        %v381 = vpack.c.bf16 %v366, %v366
        %v382 = vpack.c.bf16 %v367, %v367
        %v383 = vpack.c.bf16 %v368, %v368
        %v384 = vpack.c.bf16 %v369, %v369
        %v385 = vpack.c.bf16 %v370, %v370
        %v386 = vpack.c.bf16 %v371, %v371
        %v387 = vld [vmem:[#allocation5] sm:$0xff]
        %v388 = vld [vmem:[#allocation5 + $0x8] sm:$0xff]
        %v389 = vld [vmem:[#allocation5 + $0x10] sm:$0xf]
        %v390 = vld [vmem:[#allocation5 + $0x14] sm:$0xff]
        %v391 = vld [vmem:[#allocation5 + $0x1c] sm:$0xff]
        %v392 = vld [vmem:[#allocation5 + $0x24] sm:$0xf]
        %v393 = vld [vmem:[#allocation5 + $0x28] sm:$0xff]
        %v394 = vld [vmem:[#allocation5 + $0x30] sm:$0xff]
        %v395 = vld [vmem:[#allocation5 + $0x38] sm:$0xf]
        %v396 = vld [vmem:[#allocation5 + $0x3c] sm:$0xff]
        %v397 = vld [vmem:[#allocation5 + $0x44] sm:$0xff]
        %v398 = vld [vmem:[#allocation5 + $0x4c] sm:$0xf]
        %v399 = vld [vmem:[#allocation5 + $0x50] sm:$0xff]
        %v400 = vld [vmem:[#allocation5 + $0x58] sm:$0xff]
        %v401 = vld [vmem:[#allocation5 + $0x60] sm:$0xf]
        %v402 = vld [vmem:[#allocation5 + $0x64] sm:$0xff]
        %v403 = vld [vmem:[#allocation5 + $0x6c] sm:$0xff]
        %v404 = vld [vmem:[#allocation5 + $0x74] sm:$0xf]
        %v405 = vld [vmem:[#allocation5 + $0x78] sm:$0xff]
        %v406 = vld [vmem:[#allocation5 + $0x80] sm:$0xff]
        %v407 = vld [vmem:[#allocation5 + $0x88] sm:$0xf]
        %v408 = vld [vmem:[#allocation5 + $0x8c] sm:$0xff]
        %v409 = vld [vmem:[#allocation5 + $0x94] sm:$0xff]
        %v410 = vld [vmem:[#allocation5 + $0x9c] sm:$0xf]
        %v411 = vld [vmem:[#allocation5 + $0xa0] sm:$0xff]
        %v412 = vld [vmem:[#allocation5 + $0xa8] sm:$0xff]
        %v413 = vld [vmem:[#allocation5 + $0xb0] sm:$0xf]
        %v414 = vld [vmem:[#allocation5 + $0xb4] sm:$0xff]
        %v415 = vld [vmem:[#allocation5 + $0xbc] sm:$0xff]
        %v416 = vld [vmem:[#allocation5 + $0xc4] sm:$0xf]
        %v417 = vld [vmem:[#allocation5 + $0xc8] sm:$0xff]
        %v418 = vld [vmem:[#allocation5 + $0xd0] sm:$0xff]
        %v419 = vld [vmem:[#allocation5 + $0xd8] sm:$0xf]
        %v420 = vld [vmem:[#allocation5 + $0xdc] sm:$0xff]
        %v421 = vld [vmem:[#allocation5 + $0xe4] sm:$0xff]
        %v422 = vld [vmem:[#allocation5 + $0xec] sm:$0xf]
        %v423 = vld [vmem:[#allocation5 + $0xf0] sm:$0xff]
        %v424 = vld [vmem:[#allocation5 + $0xf8] sm:$0xff]
        %v425 = vld [vmem:[#allocation5 + $0x100] sm:$0xf]
        %v426 = vld [vmem:[#allocation5 + $0x104] sm:$0xff]
        %v427 = vld [vmem:[#allocation5 + $0x10c] sm:$0xff]
        %v428 = vld [vmem:[#allocation5 + $0x114] sm:$0xf]
        %v429 = vld [vmem:[#allocation5 + $0x118] sm:$0xff]
        %v430 = vld [vmem:[#allocation5 + $0x120] sm:$0xff]
        %v431 = vld [vmem:[#allocation5 + $0x128] sm:$0xf]
        %v432 = vld [vmem:[#allocation5 + $0x12c] sm:$0xff]
        %v433 = vld [vmem:[#allocation5 + $0x134] sm:$0xff]
        %v434 = vld [vmem:[#allocation5 + $0x13c] sm:$0xf]
        %v435 = vld [vmem:[#allocation5 + $0x140] sm:$0xff]
        %v436 = vld [vmem:[#allocation5 + $0x148] sm:$0xff]
        %v437 = vld [vmem:[#allocation5 + $0x150] sm:$0xf]
        %v438 = vld [vmem:[#allocation5 + $0x154] sm:$0xff]
        %v439 = vld [vmem:[#allocation5 + $0x15c] sm:$0xff]
        %v440 = vld [vmem:[#allocation5 + $0x164] sm:$0xf]
        %v441 = vld [vmem:[#allocation5 + $0x168] sm:$0xff]
        %v442 = vld [vmem:[#allocation5 + $0x170] sm:$0xff]
        %v443 = vld [vmem:[#allocation5 + $0x178] sm:$0xf]
        %v444 = vld [vmem:[#allocation5 + $0x17c] sm:$0xff]
        %v445 = vld [vmem:[#allocation5 + $0x184] sm:$0xff]
        %v446 = vld [vmem:[#allocation5 + $0x18c] sm:$0xf]
        %v447 = vld [vmem:[#allocation5 + $0x190] sm:$0xff]
        %v448 = vld [vmem:[#allocation5 + $0x198] sm:$0xff]
        %v449 = vld [vmem:[#allocation5 + $0x1a0] sm:$0xf]
        %v450 = vld [vmem:[#allocation5 + $0x1a4] sm:$0xff]
        %v451 = vld [vmem:[#allocation5 + $0x1ac] sm:$0xff]
        %v452 = vld [vmem:[#allocation5 + $0x1b4] sm:$0xf]
        %v453 = vld [vmem:[#allocation5 + $0x1b8] sm:$0xff]
        %v454 = vld [vmem:[#allocation5 + $0x1c0] sm:$0xff]
        %v455 = vld [vmem:[#allocation5 + $0x1c8] sm:$0xf]
        %v456 = vld [vmem:[#allocation5 + $0x1cc] sm:$0xff]
        %v457 = vld [vmem:[#allocation5 + $0x1d4] sm:$0xff]
        %v458 = vld [vmem:[#allocation5 + $0x1dc] sm:$0xf]
        %v459 = vld [vmem:[#allocation5 + $0x1e0] sm:$0xff]
        %v460 = vld [vmem:[#allocation5 + $0x1e8] sm:$0xff]
        %v461 = vld [vmem:[#allocation5 + $0x1f0] sm:$0xf]
        %v462 = vld [vmem:[#allocation5 + $0x1f4] sm:$0xff]
        %v463 = vld [vmem:[#allocation5 + $0x1fc] sm:$0xff]
        %v464 = vld [vmem:[#allocation5 + $0x204] sm:$0xf]
        %v465 = vld [vmem:[#allocation5 + $0x208] sm:$0xff]
        %v466 = vld [vmem:[#allocation5 + $0x210] sm:$0xff]
        %v467 = vld [vmem:[#allocation5 + $0x218] sm:$0xf]
        %v468 = vld [vmem:[#allocation5 + $0x21c] sm:$0xff]
        %v469 = vld [vmem:[#allocation5 + $0x224] sm:$0xff]
        %v470 = vld [vmem:[#allocation5 + $0x22c] sm:$0xf]
        %v471 = vld [vmem:[#allocation5 + $0x230] sm:$0xff]
        %v472 = vld [vmem:[#allocation5 + $0x238] sm:$0xff]
        %v473 = vld [vmem:[#allocation5 + $0x240] sm:$0xf]
        %v474 = vld [vmem:[#allocation5 + $0x244] sm:$0xff]
        %v475 = vld [vmem:[#allocation5 + $0x24c] sm:$0xff]
        %v476 = vld [vmem:[#allocation5 + $0x254] sm:$0xf]
        %v477 = vld [vmem:[#allocation5 + $0x258] sm:$0xff]
        %v478 = vld [vmem:[#allocation5 + $0x260] sm:$0xff]
        %v479 = vld [vmem:[#allocation5 + $0x268] sm:$0xf]
        %v480 = vld [vmem:[#allocation5 + $0x26c] sm:$0xff]
        %v481 = vld [vmem:[#allocation5 + $0x274] sm:$0xff]
        %v482 = vld [vmem:[#allocation5 + $0x27c] sm:$0xf]
        %v483 = vld [vmem:[#allocation5 + $0x280] sm:$0xff]
        %v484 = vld [vmem:[#allocation5 + $0x288] sm:$0xff]
        %v485 = vld [vmem:[#allocation5 + $0x290] sm:$0xf]
        %v486 = vld [vmem:[#allocation5 + $0x294] sm:$0xff]
        %v487 = vld [vmem:[#allocation5 + $0x29c] sm:$0xff]
        %v488 = vld [vmem:[#allocation5 + $0x2a4] sm:$0xf]
        %v489 = vld [vmem:[#allocation5 + $0x2a8] sm:$0xff]
        %v490 = vld [vmem:[#allocation5 + $0x2b0] sm:$0xff]
        %v491 = vld [vmem:[#allocation5 + $0x2b8] sm:$0xf]
        %v492 = vld [vmem:[#allocation5 + $0x2bc] sm:$0xff]
        %v493 = vld [vmem:[#allocation5 + $0x2c4] sm:$0xff]
        %v494 = vld [vmem:[#allocation5 + $0x2cc] sm:$0xf]
        %v495 = vld [vmem:[#allocation5 + $0x2d0] sm:$0xff]
        %v496 = vld [vmem:[#allocation5 + $0x2d8] sm:$0xff]
        %v497 = vld [vmem:[#allocation5 + $0x2e0] sm:$0xf]
        %v498 = vld [vmem:[#allocation5 + $0x2e4] sm:$0xff]
        %v499 = vld [vmem:[#allocation5 + $0x2ec] sm:$0xff]
        %v500 = vld [vmem:[#allocation5 + $0x2f4] sm:$0xf]
        %v501 = vld [vmem:[#allocation5 + $0x2f8] sm:$0xff]
        %v502 = vld [vmem:[#allocation5 + $0x300] sm:$0xff]
        %v503 = vld [vmem:[#allocation5 + $0x308] sm:$0xf]
        %v504 = vld [vmem:[#allocation5 + $0x30c] sm:$0xff]
        %v505 = vld [vmem:[#allocation5 + $0x314] sm:$0xff]
        %v506 = vld [vmem:[#allocation5 + $0x31c] sm:$0xf]
        %v507 = vld [vmem:[#allocation5 + $0x320] sm:$0xff]
        %v508 = vld [vmem:[#allocation5 + $0x328] sm:$0xff]
        %v509 = vld [vmem:[#allocation5 + $0x330] sm:$0xf]
        %v510 = vld [vmem:[#allocation5 + $0x334] sm:$0xff]
        %v511 = vld [vmem:[#allocation5 + $0x33c] sm:$0xff]
        %v512 = vld [vmem:[#allocation5 + $0x344] sm:$0xf]
        %v513 = vld [vmem:[#allocation5 + $0x348] sm:$0xff]
        %v514 = vld [vmem:[#allocation5 + $0x350] sm:$0xff]
        %v515 = vld [vmem:[#allocation5 + $0x358] sm:$0xf]
        %v516 = vld [vmem:[#allocation5 + $0x35c] sm:$0xff]
        %v517 = vld [vmem:[#allocation5 + $0x364] sm:$0xff]
        %v518 = vld [vmem:[#allocation5 + $0x36c] sm:$0xf]
        %v519 = vld [vmem:[#allocation5 + $0x370] sm:$0xff]
        %v520 = vld [vmem:[#allocation5 + $0x378] sm:$0xff]
        %v521 = vld [vmem:[#allocation5 + $0x380] sm:$0xf]
        %v522 = vld [vmem:[#allocation5 + $0x384] sm:$0xff]
        %v523 = vld [vmem:[#allocation5 + $0x38c] sm:$0xff]
        %v524 = vld [vmem:[#allocation5 + $0x394] sm:$0xf]
        %v525 = vld [vmem:[#allocation5 + $0x398] sm:$0xff]
        %v526 = vld [vmem:[#allocation5 + $0x3a0] sm:$0xff]
        %v527 = vld [vmem:[#allocation5 + $0x3a8] sm:$0xf]
        %v528 = vld [vmem:[#allocation5 + $0x3ac] sm:$0xff]
        %v529 = vld [vmem:[#allocation5 + $0x3b4] sm:$0xff]
        %v530 = vld [vmem:[#allocation5 + $0x3bc] sm:$0xf]
        %v531 = vld [vmem:[#allocation5 + $0x3c0] sm:$0xff]
        %v532 = vld [vmem:[#allocation5 + $0x3c8] sm:$0xff]
        %v533 = vld [vmem:[#allocation5 + $0x3d0] sm:$0xf]
        %v534 = vld [vmem:[#allocation5 + $0x3d4] sm:$0xff]
        %v535 = vld [vmem:[#allocation5 + $0x3dc] sm:$0xff]
        %v536 = vld [vmem:[#allocation5 + $0x3e4] sm:$0xf]
        %v537 = vld [vmem:[#allocation5 + $0x3e8] sm:$0xff]
        %v538 = vld [vmem:[#allocation5 + $0x3f0] sm:$0xff]
        %v539 = vld [vmem:[#allocation5 + $0x3f8] sm:$0xf]
        %v540 = vld [vmem:[#allocation5 + $0x3fc] sm:$0xff]
        %v541 = vld [vmem:[#allocation5 + $0x404] sm:$0xff]
        %v542 = vld [vmem:[#allocation5 + $0x40c] sm:$0xf]
        %v543 = vld [vmem:[#allocation5 + $0x410] sm:$0xff]
        %v544 = vld [vmem:[#allocation5 + $0x418] sm:$0xff]
        %v545 = vld [vmem:[#allocation5 + $0x420] sm:$0xf]
        %v546 = vld [vmem:[#allocation5 + $0x424] sm:$0xff]
        %v547 = vld [vmem:[#allocation5 + $0x42c] sm:$0xff]
        %v548 = vld [vmem:[#allocation5 + $0x434] sm:$0xf]
        %v549 = vld [vmem:[#allocation5 + $0x438] sm:$0xff]
        %v550 = vld [vmem:[#allocation5 + $0x440] sm:$0xff]
        %v551 = vld [vmem:[#allocation5 + $0x448] sm:$0xf]
        %v552 = vld [vmem:[#allocation5 + $0x44c] sm:$0xff]
        %v553 = vld [vmem:[#allocation5 + $0x454] sm:$0xff]
        %v554 = vld [vmem:[#allocation5 + $0x45c] sm:$0xf]
        %v555 = vld [vmem:[#allocation5 + $0x460] sm:$0xff]
        %v556 = vld [vmem:[#allocation5 + $0x468] sm:$0xff]
        %v557 = vld [vmem:[#allocation5 + $0x470] sm:$0xf]
        %v558 = vld [vmem:[#allocation5 + $0x474] sm:$0xff]
        %v559 = vld [vmem:[#allocation5 + $0x47c] sm:$0xff]
        %v560 = vld [vmem:[#allocation5 + $0x484] sm:$0xf]
        %v561 = vld [vmem:[#allocation5 + $0x488] sm:$0xff]
        %v562 = vld [vmem:[#allocation5 + $0x490] sm:$0xff]
        %v563 = vld [vmem:[#allocation5 + $0x498] sm:$0xf]
        %v564 = vld [vmem:[#allocation5 + $0x49c] sm:$0xff]
        %v565 = vld [vmem:[#allocation5 + $0x4a4] sm:$0xff]
        %v566 = vld [vmem:[#allocation5 + $0x4ac] sm:$0xf]
        %v567 = vld [vmem:[#allocation5 + $0x4b0] sm:$0xff]
        %v568 = vld [vmem:[#allocation5 + $0x4b8] sm:$0xff]
        %v569 = vld [vmem:[#allocation5 + $0x4c0] sm:$0xf]
        %v570 = vld [vmem:[#allocation5 + $0x4c4] sm:$0xff]
        %v571 = vld [vmem:[#allocation5 + $0x4cc] sm:$0xff]
        %v572 = vld [vmem:[#allocation5 + $0x4d4] sm:$0xf]
        %v573 = vld [vmem:[#allocation5 + $0x4d8] sm:$0xff]
        %v574 = vld [vmem:[#allocation5 + $0x4e0] sm:$0xff]
        %v575 = vld [vmem:[#allocation5 + $0x4e8] sm:$0xf]
        %v576 = vld [vmem:[#allocation5 + $0x4ec] sm:$0xff]
        %v577 = vld [vmem:[#allocation5 + $0x4f4] sm:$0xff]
        %v578 = vld [vmem:[#allocation5 + $0x4fc] sm:$0xf]
        %v579 = vld [vmem:[#allocation5 + $0x500] sm:$0xff]
        %v580 = vld [vmem:[#allocation5 + $0x508] sm:$0xff]
        %v581 = vld [vmem:[#allocation5 + $0x510] sm:$0xf]
        %v582 = vld [vmem:[#allocation5 + $0x514] sm:$0xff]
        %v583 = vld [vmem:[#allocation5 + $0x51c] sm:$0xff]
        %v584 = vld [vmem:[#allocation5 + $0x524] sm:$0xf]
        %v585 = vld [vmem:[#allocation5 + $0x528] sm:$0xff]
        %v586 = vld [vmem:[#allocation5 + $0x530] sm:$0xff]
        %v587 = vld [vmem:[#allocation5 + $0x538] sm:$0xf]
        %v588 = vld [vmem:[#allocation5 + $0x53c] sm:$0xff]
        %v589 = vld [vmem:[#allocation5 + $0x544] sm:$0xff]
        %v590 = vld [vmem:[#allocation5 + $0x54c] sm:$0xf]
        %v591 = vld [vmem:[#allocation5 + $0x550] sm:$0xff]
        %v592 = vld [vmem:[#allocation5 + $0x558] sm:$0xff]
        %v593 = vld [vmem:[#allocation5 + $0x560] sm:$0xf]
        %v594 = vld [vmem:[#allocation5 + $0x564] sm:$0xff]
        %v595 = vld [vmem:[#allocation5 + $0x56c] sm:$0xff]
        %v596 = vld [vmem:[#allocation5 + $0x574] sm:$0xf]
        %v597 = vld [vmem:[#allocation5 + $0x578] sm:$0xff]
        %v598 = vld [vmem:[#allocation5 + $0x580] sm:$0xff]
        %v599 = vld [vmem:[#allocation5 + $0x588] sm:$0xf]
        %v600 = vld [vmem:[#allocation5 + $0x58c] sm:$0xff]
        %v601 = vld [vmem:[#allocation5 + $0x594] sm:$0xff]
        %v602 = vld [vmem:[#allocation5 + $0x59c] sm:$0xf]
        %v603 = vld [vmem:[#allocation5 + $0x5a0] sm:$0xff]
        %v604 = vld [vmem:[#allocation5 + $0x5a8] sm:$0xff]
        %v605 = vld [vmem:[#allocation5 + $0x5b0] sm:$0xf]
        %v606 = vld [vmem:[#allocation5 + $0x5b4] sm:$0xff]
        %v607 = vld [vmem:[#allocation5 + $0x5bc] sm:$0xff]
        %v608 = vld [vmem:[#allocation5 + $0x5c4] sm:$0xf]
        %v609 = vld [vmem:[#allocation5 + $0x5c8] sm:$0xff]
        %v610 = vld [vmem:[#allocation5 + $0x5d0] sm:$0xff]
        %v611 = vld [vmem:[#allocation5 + $0x5d8] sm:$0xf]
        %v612 = vld [vmem:[#allocation5 + $0x5dc] sm:$0xff]
        %v613 = vld [vmem:[#allocation5 + $0x5e4] sm:$0xff]
        %v614 = vld [vmem:[#allocation5 + $0x5ec] sm:$0xf]
        %v615 = vld [vmem:[#allocation5 + $0x5f0] sm:$0xff]
        %v616 = vld [vmem:[#allocation5 + $0x5f8] sm:$0xff]
        %v617 = vld [vmem:[#allocation5 + $0x600] sm:$0xf]
        %v618 = vld [vmem:[#allocation5 + $0x604] sm:$0xff]
        %v619 = vld [vmem:[#allocation5 + $0x60c] sm:$0xff]
        %v620 = vld [vmem:[#allocation5 + $0x614] sm:$0xf]
        %v621 = vld [vmem:[#allocation5 + $0x618] sm:$0xff]
        %v622 = vld [vmem:[#allocation5 + $0x620] sm:$0xff]
        %v623 = vld [vmem:[#allocation5 + $0x628] sm:$0xf]
        %v624 = vld [vmem:[#allocation5 + $0x62c] sm:$0xff]
        %v625 = vld [vmem:[#allocation5 + $0x634] sm:$0xff]
        %v626 = vld [vmem:[#allocation5 + $0x63c] sm:$0xf]
        %v627 = vld [vmem:[#allocation5 + $0x640] sm:$0xff]
        %v628 = vld [vmem:[#allocation5 + $0x648] sm:$0xff]
        %v629 = vld [vmem:[#allocation5 + $0x650] sm:$0xf]
        %v630 = vld [vmem:[#allocation5 + $0x654] sm:$0xff]
        %v631 = vld [vmem:[#allocation5 + $0x65c] sm:$0xff]
        %v632 = vld [vmem:[#allocation5 + $0x664] sm:$0xf]
        %v633 = vld [vmem:[#allocation5 + $0x668] sm:$0xff]
        %v634 = vld [vmem:[#allocation5 + $0x670] sm:$0xff]
        %v635 = vld [vmem:[#allocation5 + $0x678] sm:$0xf]
        %v636 = vld [vmem:[#allocation5 + $0x67c] sm:$0xff]
        %v637 = vld [vmem:[#allocation5 + $0x684] sm:$0xff]
        %v638 = vld [vmem:[#allocation5 + $0x68c] sm:$0xf]
        %v639 = vld [vmem:[#allocation5 + $0x690] sm:$0xff]
        %v640 = vld [vmem:[#allocation5 + $0x698] sm:$0xff]
        %v641 = vld [vmem:[#allocation5 + $0x6a0] sm:$0xf]
        %v642 = vld [vmem:[#allocation5 + $0x6a4] sm:$0xff]
        %v643 = vld [vmem:[#allocation5 + $0x6ac] sm:$0xff]
        %v644 = vld [vmem:[#allocation5 + $0x6b4] sm:$0xf]
        %v645 = vld [vmem:[#allocation5 + $0x6b8] sm:$0xff]
        %v646 = vld [vmem:[#allocation5 + $0x6c0] sm:$0xff]
        %v647 = vld [vmem:[#allocation5 + $0x6c8] sm:$0xf]
        %v648 = vld [vmem:[#allocation5 + $0x6cc] sm:$0xff]
        %v649 = vld [vmem:[#allocation5 + $0x6d4] sm:$0xff]
        %v650 = vld [vmem:[#allocation5 + $0x6dc] sm:$0xf]
        %v651 = vld [vmem:[#allocation5 + $0x6e0] sm:$0xff]
        %v652 = vld [vmem:[#allocation5 + $0x6e8] sm:$0xff]
        %v653 = vld [vmem:[#allocation5 + $0x6f0] sm:$0xf]
        %v654 = vld [vmem:[#allocation5 + $0x6f4] sm:$0xff]
        %v655 = vld [vmem:[#allocation5 + $0x6fc] sm:$0xff]
        %v656 = vld [vmem:[#allocation5 + $0x704] sm:$0xf]
        %v657 = vld [vmem:[#allocation5 + $0x708] sm:$0xff]
        %v658 = vld [vmem:[#allocation5 + $0x710] sm:$0xff]
        %v659 = vld [vmem:[#allocation5 + $0x718] sm:$0xf]
        %v660 = vld [vmem:[#allocation5 + $0x71c] sm:$0xff]
        %v661 = vld [vmem:[#allocation5 + $0x724] sm:$0xff]
        %v662 = vld [vmem:[#allocation5 + $0x72c] sm:$0xf]
        %v663 = vld [vmem:[#allocation5 + $0x730] sm:$0xff]
        %v664 = vld [vmem:[#allocation5 + $0x738] sm:$0xff]
        %v665 = vld [vmem:[#allocation5 + $0x740] sm:$0xf]
        %v666 = vld [vmem:[#allocation5 + $0x744] sm:$0xff]
        %v667 = vld [vmem:[#allocation5 + $0x74c] sm:$0xff]
        %v668 = vld [vmem:[#allocation5 + $0x754] sm:$0xf]
        %v669 = vld [vmem:[#allocation5 + $0x758] sm:$0xff]
        %v670 = vld [vmem:[#allocation5 + $0x760] sm:$0xff]
        %v671 = vld [vmem:[#allocation5 + $0x768] sm:$0xf]
        %v672 = vld [vmem:[#allocation5 + $0x76c] sm:$0xff]
        %v673 = vld [vmem:[#allocation5 + $0x774] sm:$0xff]
        %v674 = vld [vmem:[#allocation5 + $0x77c] sm:$0xf]
        %v675 = vld [vmem:[#allocation5 + $0x780] sm:$0xff]
        %v676 = vld [vmem:[#allocation5 + $0x788] sm:$0xff]
        %v677 = vld [vmem:[#allocation5 + $0x790] sm:$0xf]
        %v678 = vld [vmem:[#allocation5 + $0x794] sm:$0xff]
        %v679 = vld [vmem:[#allocation5 + $0x79c] sm:$0xff]
        %v680 = vld [vmem:[#allocation5 + $0x7a4] sm:$0xf]
        %v681 = vld [vmem:[#allocation5 + $0x7a8] sm:$0xff]
        %v682 = vld [vmem:[#allocation5 + $0x7b0] sm:$0xff]
        %v683 = vld [vmem:[#allocation5 + $0x7b8] sm:$0xf]
        %v684 = vld [vmem:[#allocation5 + $0x7bc] sm:$0xff]
        %v685 = vld [vmem:[#allocation5 + $0x7c4] sm:$0xff]
        %v686 = vld [vmem:[#allocation5 + $0x7cc] sm:$0xf]
        %v687 = vld [vmem:[#allocation5 + $0x7d0] sm:$0xff]
        %v688 = vld [vmem:[#allocation5 + $0x7d8] sm:$0xff]
        %v689 = vld [vmem:[#allocation5 + $0x7e0] sm:$0xf]
        %v690 = vld [vmem:[#allocation5 + $0x7e4] sm:$0xff]
        %v691 = vld [vmem:[#allocation5 + $0x7ec] sm:$0xff]
        %v692 = vld [vmem:[#allocation5 + $0x7f4] sm:$0xf]
        %v693 = vld [vmem:[#allocation5 + $0x7f8] sm:$0xff]
        %v694 = vld [vmem:[#allocation5 + $0x800] sm:$0xff]
        %v695 = vld [vmem:[#allocation5 + $0x808] sm:$0xf]
        %v696 = vld [vmem:[#allocation5 + $0x80c] sm:$0xff]
        %v697 = vld [vmem:[#allocation5 + $0x814] sm:$0xff]
        %v698 = vld [vmem:[#allocation5 + $0x81c] sm:$0xf]
        %v699 = vld [vmem:[#allocation5 + $0x820] sm:$0xff]
        %v700 = vld [vmem:[#allocation5 + $0x828] sm:$0xff]
        %v701 = vld [vmem:[#allocation5 + $0x830] sm:$0xf]
        %v702 = vld [vmem:[#allocation5 + $0x834] sm:$0xff]
        %v703 = vld [vmem:[#allocation5 + $0x83c] sm:$0xff]
        %v704 = vld [vmem:[#allocation5 + $0x844] sm:$0xf]
        %v705 = vld [vmem:[#allocation5 + $0x848] sm:$0xff]
        %v706 = vld [vmem:[#allocation5 + $0x850] sm:$0xff]
        %v707 = vld [vmem:[#allocation5 + $0x858] sm:$0xf]
        %v708 = vld [vmem:[#allocation5 + $0x85c] sm:$0xff]
        %v709 = vld [vmem:[#allocation5 + $0x864] sm:$0xff]
        %v710 = vld [vmem:[#allocation5 + $0x86c] sm:$0xf]
        %v711 = vld [vmem:[#allocation5 + $0x870] sm:$0xff]
        %v712 = vld [vmem:[#allocation5 + $0x878] sm:$0xff]
        %v713 = vld [vmem:[#allocation5 + $0x880] sm:$0xf]
        %v714 = vld [vmem:[#allocation5 + $0x884] sm:$0xff]
        %v715 = vld [vmem:[#allocation5 + $0x88c] sm:$0xff]
        %v716 = vld [vmem:[#allocation5 + $0x894] sm:$0xf]
        %v717 = vld [vmem:[#allocation5 + $0x898] sm:$0xff]
        %v718 = vld [vmem:[#allocation5 + $0x8a0] sm:$0xff]
        %v719 = vld [vmem:[#allocation5 + $0x8a8] sm:$0xf]
        %v720 = vld [vmem:[#allocation5 + $0x8ac] sm:$0xff]
        %v721 = vld [vmem:[#allocation5 + $0x8b4] sm:$0xff]
        %v722 = vld [vmem:[#allocation5 + $0x8bc] sm:$0xf]
        %v723 = vld [vmem:[#allocation5 + $0x8c0] sm:$0xff]
        %v724 = vld [vmem:[#allocation5 + $0x8c8] sm:$0xff]
        %v725 = vld [vmem:[#allocation5 + $0x8d0] sm:$0xf]
        %v726 = vld [vmem:[#allocation5 + $0x8d4] sm:$0xff]
        %v727 = vld [vmem:[#allocation5 + $0x8dc] sm:$0xff]
        %v728 = vld [vmem:[#allocation5 + $0x8e4] sm:$0xf]
        %v729 = vld [vmem:[#allocation5 + $0x8e8] sm:$0xff]
        %v730 = vld [vmem:[#allocation5 + $0x8f0] sm:$0xff]
        %v731 = vld [vmem:[#allocation5 + $0x8f8] sm:$0xf]
        %v732 = vld [vmem:[#allocation5 + $0x8fc] sm:$0xff]
        %v733 = vld [vmem:[#allocation5 + $0x904] sm:$0xff]
        %v734 = vld [vmem:[#allocation5 + $0x90c] sm:$0xf]
        %v735 = vld [vmem:[#allocation5 + $0x910] sm:$0xff]
        %v736 = vld [vmem:[#allocation5 + $0x918] sm:$0xff]
        %v737 = vld [vmem:[#allocation5 + $0x920] sm:$0xf]
        %v738 = vld [vmem:[#allocation5 + $0x924] sm:$0xff]
        %v739 = vld [vmem:[#allocation5 + $0x92c] sm:$0xff]
        %v740 = vld [vmem:[#allocation5 + $0x934] sm:$0xf]
        %v741 = vld [vmem:[#allocation5 + $0x938] sm:$0xff]
        %v742 = vld [vmem:[#allocation5 + $0x940] sm:$0xff]
        %v743 = vld [vmem:[#allocation5 + $0x948] sm:$0xf]
        %v744 = vld [vmem:[#allocation5 + $0x94c] sm:$0xff]
        %v745 = vld [vmem:[#allocation5 + $0x954] sm:$0xff]
        %v746 = vld [vmem:[#allocation5 + $0x95c] sm:$0xf]
        %v747 = vld [vmem:[#allocation5 + $0x960] sm:$0xff]
        %v748 = vld [vmem:[#allocation5 + $0x968] sm:$0xff]
        %v749 = vld [vmem:[#allocation5 + $0x970] sm:$0xf]
        %v750 = vld [vmem:[#allocation5 + $0x974] sm:$0xff]
        %v751 = vld [vmem:[#allocation5 + $0x97c] sm:$0xff]
        %v752 = vld [vmem:[#allocation5 + $0x984] sm:$0xf]
        %v753 = vld [vmem:[#allocation5 + $0x988] sm:$0xff]
        %v754 = vld [vmem:[#allocation5 + $0x990] sm:$0xff]
        %v755 = vld [vmem:[#allocation5 + $0x998] sm:$0xf]
        %v756 = vld [vmem:[#allocation5 + $0x99c] sm:$0xff]
        %v757 = vld [vmem:[#allocation5 + $0x9a4] sm:$0xff]
        %v758 = vld [vmem:[#allocation5 + $0x9ac] sm:$0xf]
        %v759 = vld [vmem:[#allocation5 + $0x9b0] sm:$0xff]
        %v760 = vld [vmem:[#allocation5 + $0x9b8] sm:$0xff]
        %v761 = vld [vmem:[#allocation5 + $0x9c0] sm:$0xf]
        %v762 = vld [vmem:[#allocation5 + $0x9c4] sm:$0xff]
        %v763 = vld [vmem:[#allocation5 + $0x9cc] sm:$0xff]
        %v764 = vld [vmem:[#allocation5 + $0x9d4] sm:$0xf]
        %v765 = vld [vmem:[#allocation5 + $0x9d8] sm:$0xff]
        %v766 = vld [vmem:[#allocation5 + $0x9e0] sm:$0xff]
        %v767 = vld [vmem:[#allocation5 + $0x9e8] sm:$0xf]
        %v768 = vld [vmem:[#allocation5 + $0x9ec] sm:$0xff]
        %v769 = vld [vmem:[#allocation5 + $0x9f4] sm:$0xff]
        %v770 = vld [vmem:[#allocation5 + $0x9fc] sm:$0xf]
        %v771 = vld [vmem:[#allocation5 + $0xa00] sm:$0xff]
        %v772 = vld [vmem:[#allocation5 + $0xa08] sm:$0xff]
        %v773 = vld [vmem:[#allocation5 + $0xa10] sm:$0xf]
        %v774 = vld [vmem:[#allocation5 + $0xa14] sm:$0xff]
        %v775 = vld [vmem:[#allocation5 + $0xa1c] sm:$0xff]
        %v776 = vld [vmem:[#allocation5 + $0xa24] sm:$0xf]
        %v777 = vld [vmem:[#allocation5 + $0xa28] sm:$0xff]
        %v778 = vld [vmem:[#allocation5 + $0xa30] sm:$0xff]
        %v779 = vld [vmem:[#allocation5 + $0xa38] sm:$0xf]
        %v780 = vld [vmem:[#allocation5 + $0xa3c] sm:$0xff]
        %v781 = vld [vmem:[#allocation5 + $0xa44] sm:$0xff]
        %v782 = vld [vmem:[#allocation5 + $0xa4c] sm:$0xf]
        %v783 = vld [vmem:[#allocation5 + $0xa50] sm:$0xff]
        %v784 = vld [vmem:[#allocation5 + $0xa58] sm:$0xff]
        %v785 = vld [vmem:[#allocation5 + $0xa60] sm:$0xf]
        %v786 = vld [vmem:[#allocation5 + $0xa64] sm:$0xff]
        %v787 = vld [vmem:[#allocation5 + $0xa6c] sm:$0xff]
        %v788 = vld [vmem:[#allocation5 + $0xa74] sm:$0xf]
        %v789 = vld [vmem:[#allocation5 + $0xa78] sm:$0xff]
        %v790 = vld [vmem:[#allocation5 + $0xa80] sm:$0xff]
        %v791 = vld [vmem:[#allocation5 + $0xa88] sm:$0xf]
        %v792 = vld [vmem:[#allocation5 + $0xa8c] sm:$0xff]
        %v793 = vld [vmem:[#allocation5 + $0xa94] sm:$0xff]
        %v794 = vld [vmem:[#allocation5 + $0xa9c] sm:$0xf]
        %v795 = vld [vmem:[#allocation5 + $0xaa0] sm:$0xff]
        %v796 = vld [vmem:[#allocation5 + $0xaa8] sm:$0xff]
        %v797 = vld [vmem:[#allocation5 + $0xab0] sm:$0xf]
        %v798 = vld [vmem:[#allocation5 + $0xab4] sm:$0xff]
        %v799 = vld [vmem:[#allocation5 + $0xabc] sm:$0xff]
        %v800 = vld [vmem:[#allocation5 + $0xac4] sm:$0xf]
        %v801 = vld [vmem:[#allocation5 + $0xac8] sm:$0xff]
        %v802 = vld [vmem:[#allocation5 + $0xad0] sm:$0xff]
        %v803 = vld [vmem:[#allocation5 + $0xad8] sm:$0xf]
        %v804 = vld [vmem:[#allocation5 + $0xadc] sm:$0xff]
        %v805 = vld [vmem:[#allocation5 + $0xae4] sm:$0xff]
        %v806 = vld [vmem:[#allocation5 + $0xaec] sm:$0xf]
        %v807 = vld [vmem:[#allocation5 + $0xaf0] sm:$0xff]
        %v808 = vld [vmem:[#allocation5 + $0xaf8] sm:$0xff]
        %v809 = vld [vmem:[#allocation5 + $0xb00] sm:$0xf]
        %v810 = vld [vmem:[#allocation5 + $0xb04] sm:$0xff]
        %v811 = vld [vmem:[#allocation5 + $0xb0c] sm:$0xff]
        %v812 = vld [vmem:[#allocation5 + $0xb14] sm:$0xf]
        %v813 = vld [vmem:[#allocation5 + $0xb18] sm:$0xff]
        %v814 = vld [vmem:[#allocation5 + $0xb20] sm:$0xff]
        %v815 = vld [vmem:[#allocation5 + $0xb28] sm:$0xf]
        %v816 = vld [vmem:[#allocation5 + $0xb2c] sm:$0xff]
        %v817 = vld [vmem:[#allocation5 + $0xb34] sm:$0xff]
        %v818 = vld [vmem:[#allocation5 + $0xb3c] sm:$0xf]
        %v819 = vld [vmem:[#allocation5 + $0xb40] sm:$0xff]
        %v820 = vld [vmem:[#allocation5 + $0xb48] sm:$0xff]
        %v821 = vld [vmem:[#allocation5 + $0xb50] sm:$0xf]
        %v822 = vld [vmem:[#allocation5 + $0xb54] sm:$0xff]
        %v823 = vld [vmem:[#allocation5 + $0xb5c] sm:$0xff]
        %v824 = vld [vmem:[#allocation5 + $0xb64] sm:$0xf]
        %v825 = vld [vmem:[#allocation5 + $0xb68] sm:$0xff]
        %v826 = vld [vmem:[#allocation5 + $0xb70] sm:$0xff]
        %v827 = vld [vmem:[#allocation5 + $0xb78] sm:$0xf]
        %v828 = vld [vmem:[#allocation5 + $0xb7c] sm:$0xff]
        %v829 = vld [vmem:[#allocation5 + $0xb84] sm:$0xff]
        %v830 = vld [vmem:[#allocation5 + $0xb8c] sm:$0xf]
        %v831 = vld [vmem:[#allocation5 + $0xb90] sm:$0xff]
        %v832 = vld [vmem:[#allocation5 + $0xb98] sm:$0xff]
        %v833 = vld [vmem:[#allocation5 + $0xba0] sm:$0xf]
        %v834 = vld [vmem:[#allocation5 + $0xba4] sm:$0xff]
        %v835 = vld [vmem:[#allocation5 + $0xbac] sm:$0xff]
        %v836 = vld [vmem:[#allocation5 + $0xbb4] sm:$0xf]
        %v837 = vld [vmem:[#allocation5 + $0xbb8] sm:$0xff]
        %v838 = vld [vmem:[#allocation5 + $0xbc0] sm:$0xff]
        %v839 = vld [vmem:[#allocation5 + $0xbc8] sm:$0xf]
        %v840 = vld [vmem:[#allocation5 + $0xbcc] sm:$0xff]
        %v841 = vld [vmem:[#allocation5 + $0xbd4] sm:$0xff]
        %v842 = vld [vmem:[#allocation5 + $0xbdc] sm:$0xf]
        %v843 = vld [vmem:[#allocation5 + $0xbe0] sm:$0xff]
        %v844 = vld [vmem:[#allocation5 + $0xbe8] sm:$0xff]
        %v845 = vld [vmem:[#allocation5 + $0xbf0] sm:$0xf]
        %v846 = vld [vmem:[#allocation5 + $0xbf4] sm:$0xff]
        %v847 = vld [vmem:[#allocation5 + $0xbfc] sm:$0xff]
        %v848 = vld [vmem:[#allocation5 + $0xc04] sm:$0xf]
        %v849 = vld [vmem:[#allocation5 + $0xc08] sm:$0xff]
        %v850 = vld [vmem:[#allocation5 + $0xc10] sm:$0xff]
        %v851 = vld [vmem:[#allocation5 + $0xc18] sm:$0xf]
        %v852 = vld [vmem:[#allocation5 + $0xc1c] sm:$0xff]
        %v853 = vld [vmem:[#allocation5 + $0xc24] sm:$0xff]
        %v854 = vld [vmem:[#allocation5 + $0xc2c] sm:$0xf]
        %v855 = vld [vmem:[#allocation5 + $0xc30] sm:$0xff]
        %v856 = vld [vmem:[#allocation5 + $0xc38] sm:$0xff]
        %v857 = vld [vmem:[#allocation5 + $0xc40] sm:$0xf]
        %v858 = vld [vmem:[#allocation5 + $0xc44] sm:$0xff]
        %v859 = vld [vmem:[#allocation5 + $0xc4c] sm:$0xff]
        %v860 = vld [vmem:[#allocation5 + $0xc54] sm:$0xf]
        %v861 = vld [vmem:[#allocation5 + $0xc58] sm:$0xff]
        %v862 = vld [vmem:[#allocation5 + $0xc60] sm:$0xff]
        %v863 = vld [vmem:[#allocation5 + $0xc68] sm:$0xf]
        %v864 = vld [vmem:[#allocation5 + $0xc6c] sm:$0xff]
        %v865 = vld [vmem:[#allocation5 + $0xc74] sm:$0xff]
        %v866 = vld [vmem:[#allocation5 + $0xc7c] sm:$0xf]
        %v867 = vld [vmem:[#allocation5 + $0xc80] sm:$0xff]
        %v868 = vld [vmem:[#allocation5 + $0xc88] sm:$0xff]
        %v869 = vld [vmem:[#allocation5 + $0xc90] sm:$0xf]
        %v870 = vld [vmem:[#allocation5 + $0xc94] sm:$0xff]
        %v871 = vld [vmem:[#allocation5 + $0xc9c] sm:$0xff]
        %v872 = vld [vmem:[#allocation5 + $0xca4] sm:$0xf]
        %v873 = vld [vmem:[#allocation5 + $0xca8] sm:$0xff]
        %v874 = vld [vmem:[#allocation5 + $0xcb0] sm:$0xff]
        %v875 = vld [vmem:[#allocation5 + $0xcb8] sm:$0xf]
        %v876 = vld [vmem:[#allocation5 + $0xcbc] sm:$0xff]
        %v877 = vld [vmem:[#allocation5 + $0xcc4] sm:$0xff]
        %v878 = vld [vmem:[#allocation5 + $0xccc] sm:$0xf]
        %v879 = vld [vmem:[#allocation5 + $0xcd0] sm:$0xff]
        %v880 = vld [vmem:[#allocation5 + $0xcd8] sm:$0xff]
        %v881 = vld [vmem:[#allocation5 + $0xce0] sm:$0xf]
        %v882 = vld [vmem:[#allocation5 + $0xce4] sm:$0xff]
        %v883 = vld [vmem:[#allocation5 + $0xcec] sm:$0xff]
        %v884 = vld [vmem:[#allocation5 + $0xcf4] sm:$0xf]
        %v885 = vld [vmem:[#allocation5 + $0xcf8] sm:$0xff]
        %v886 = vld [vmem:[#allocation5 + $0xd00] sm:$0xff]
        %v887 = vld [vmem:[#allocation5 + $0xd08] sm:$0xf]
        %v888 = vld [vmem:[#allocation5 + $0xd0c] sm:$0xff]
        %v889 = vld [vmem:[#allocation5 + $0xd14] sm:$0xff]
        %v890 = vld [vmem:[#allocation5 + $0xd1c] sm:$0xf]
        %v891 = vld [vmem:[#allocation5 + $0xd20] sm:$0xff]
        %v892 = vld [vmem:[#allocation5 + $0xd28] sm:$0xff]
        %v893 = vld [vmem:[#allocation5 + $0xd30] sm:$0xf]
        %v894 = vld [vmem:[#allocation5 + $0xd34] sm:$0xff]
        %v895 = vld [vmem:[#allocation5 + $0xd3c] sm:$0xff]
        %v896 = vld [vmem:[#allocation5 + $0xd44] sm:$0xf]
        %v897 = vld [vmem:[#allocation5 + $0xd48] sm:$0xff]
        %v898 = vld [vmem:[#allocation5 + $0xd50] sm:$0xff]
        %v899 = vld [vmem:[#allocation5 + $0xd58] sm:$0xf]
        %v900 = vld [vmem:[#allocation5 + $0xd5c] sm:$0xff]
        %v901 = vld [vmem:[#allocation5 + $0xd64] sm:$0xff]
        %v902 = vld [vmem:[#allocation5 + $0xd6c] sm:$0xf]
        %v903 = vld [vmem:[#allocation5 + $0xd70] sm:$0xff]
        %v904 = vld [vmem:[#allocation5 + $0xd78] sm:$0xff]
        %v905 = vld [vmem:[#allocation5 + $0xd80] sm:$0xf]
        %v906 = vld [vmem:[#allocation5 + $0xd84] sm:$0xff]
        %v907 = vld [vmem:[#allocation5 + $0xd8c] sm:$0xff]
        %v908 = vld [vmem:[#allocation5 + $0xd94] sm:$0xf]
        %v909 = vld [vmem:[#allocation5 + $0xd98] sm:$0xff]
        %v910 = vld [vmem:[#allocation5 + $0xda0] sm:$0xff]
        %v911 = vld [vmem:[#allocation5 + $0xda8] sm:$0xf]
        %v912 = vld [vmem:[#allocation5 + $0xdac] sm:$0xff]
        %v913 = vld [vmem:[#allocation5 + $0xdb4] sm:$0xff]
        %v914 = vld [vmem:[#allocation5 + $0xdbc] sm:$0xf]
        %v915 = vld [vmem:[#allocation5 + $0xdc0] sm:$0xff]
        %v916 = vld [vmem:[#allocation5 + $0xdc8] sm:$0xff]
        %v917 = vld [vmem:[#allocation5 + $0xdd0] sm:$0xf]
        %v918 = vld [vmem:[#allocation5 + $0xdd4] sm:$0xff]
        %v919 = vld [vmem:[#allocation5 + $0xddc] sm:$0xff]
        %v920 = vld [vmem:[#allocation5 + $0xde4] sm:$0xf]
        %v921 = vld [vmem:[#allocation5 + $0xde8] sm:$0xff]
        %v922 = vld [vmem:[#allocation5 + $0xdf0] sm:$0xff]
        %v923 = vld [vmem:[#allocation5 + $0xdf8] sm:$0xf]
        %v924 = vld [vmem:[#allocation5 + $0xdfc] sm:$0xff]
        %v925 = vld [vmem:[#allocation5 + $0xe04] sm:$0xff]
        %v926 = vld [vmem:[#allocation5 + $0xe0c] sm:$0xf]
        %v927 = vld [vmem:[#allocation5 + $0xe10] sm:$0xff]
        %v928 = vld [vmem:[#allocation5 + $0xe18] sm:$0xff]
        %v929 = vld [vmem:[#allocation5 + $0xe20] sm:$0xf]
        %v930 = vld [vmem:[#allocation5 + $0xe24] sm:$0xff]
        %v931 = vld [vmem:[#allocation5 + $0xe2c] sm:$0xff]
        %v932 = vld [vmem:[#allocation5 + $0xe34] sm:$0xf]
        %v933 = vld [vmem:[#allocation5 + $0xe38] sm:$0xff]
        %v934 = vld [vmem:[#allocation5 + $0xe40] sm:$0xff]
        %v935 = vld [vmem:[#allocation5 + $0xe48] sm:$0xf]
        %v936 = vld [vmem:[#allocation5 + $0xe4c] sm:$0xff]
        %v937 = vld [vmem:[#allocation5 + $0xe54] sm:$0xff]
        %v938 = vld [vmem:[#allocation5 + $0xe5c] sm:$0xf]
        %v939 = vld [vmem:[#allocation5 + $0xe60] sm:$0xff]
        %v940 = vld [vmem:[#allocation5 + $0xe68] sm:$0xff]
        %v941 = vld [vmem:[#allocation5 + $0xe70] sm:$0xf]
        %v942 = vld [vmem:[#allocation5 + $0xe74] sm:$0xff]
        %v943 = vld [vmem:[#allocation5 + $0xe7c] sm:$0xff]
        %v944 = vld [vmem:[#allocation5 + $0xe84] sm:$0xf]
        %v945 = vld [vmem:[#allocation5 + $0xe88] sm:$0xff]
        %v946 = vld [vmem:[#allocation5 + $0xe90] sm:$0xff]
        %v947 = vld [vmem:[#allocation5 + $0xe98] sm:$0xf]
        %v948 = vld [vmem:[#allocation5 + $0xe9c] sm:$0xff]
        %v949 = vld [vmem:[#allocation5 + $0xea4] sm:$0xff]
        %v950 = vld [vmem:[#allocation5 + $0xeac] sm:$0xf]
        %v951 = vld [vmem:[#allocation5 + $0xeb0] sm:$0xff]
        %v952 = vld [vmem:[#allocation5 + $0xeb8] sm:$0xff]
        %v953 = vld [vmem:[#allocation5 + $0xec0] sm:$0xf]
        %v954 = vld [vmem:[#allocation5 + $0xec4] sm:$0xff]
        %v955 = vld [vmem:[#allocation5 + $0xecc] sm:$0xff]
        %v956 = vld [vmem:[#allocation5 + $0xed4] sm:$0xf]
        %v957 = vld [vmem:[#allocation5 + $0xed8] sm:$0xff]
        %v958 = vld [vmem:[#allocation5 + $0xee0] sm:$0xff]
        %v959 = vld [vmem:[#allocation5 + $0xee8] sm:$0xf]
        %v960 = vld [vmem:[#allocation5 + $0xeec] sm:$0xff]
        %v961 = vld [vmem:[#allocation5 + $0xef4] sm:$0xff]
        %v962 = vld [vmem:[#allocation5 + $0xefc] sm:$0xf]
        %v963 = vld [vmem:[#allocation5 + $0xf00] sm:$0xff]
        %v964 = vld [vmem:[#allocation5 + $0xf08] sm:$0xff]
        %v965 = vld [vmem:[#allocation5 + $0xf10] sm:$0xf]
        %v966 = vld [vmem:[#allocation5 + $0xf14] sm:$0xff]
        %v967 = vld [vmem:[#allocation5 + $0xf1c] sm:$0xff]
        %v968 = vld [vmem:[#allocation5 + $0xf24] sm:$0xf]
        %v969 = vld [vmem:[#allocation5 + $0xf28] sm:$0xff]
        %v970 = vld [vmem:[#allocation5 + $0xf30] sm:$0xff]
        %v971 = vld [vmem:[#allocation5 + $0xf38] sm:$0xf]
        %v972 = vld [vmem:[#allocation5 + $0xf3c] sm:$0xff]
        %v973 = vld [vmem:[#allocation5 + $0xf44] sm:$0xff]
        %v974 = vld [vmem:[#allocation5 + $0xf4c] sm:$0xf]
        %v975 = vld [vmem:[#allocation5 + $0xf50] sm:$0xff]
        %v976 = vld [vmem:[#allocation5 + $0xf58] sm:$0xff]
        %v977 = vld [vmem:[#allocation5 + $0xf60] sm:$0xf]
        %v978 = vld [vmem:[#allocation5 + $0xf64] sm:$0xff]
        %v979 = vld [vmem:[#allocation5 + $0xf6c] sm:$0xff]
        %v980 = vld [vmem:[#allocation5 + $0xf74] sm:$0xf]
        %v981 = vld [vmem:[#allocation5 + $0xf78] sm:$0xff]
        %v982 = vld [vmem:[#allocation5 + $0xf80] sm:$0xff]
        %v983 = vld [vmem:[#allocation5 + $0xf88] sm:$0xf]
        %v984 = vld [vmem:[#allocation5 + $0xf8c] sm:$0xff]
        %v985 = vld [vmem:[#allocation5 + $0xf94] sm:$0xff]
        %v986 = vld [vmem:[#allocation5 + $0xf9c] sm:$0xf]
        %v987 = vld [vmem:[#allocation5 + $0xfa0] sm:$0xff]
        %v988 = vld [vmem:[#allocation5 + $0xfa8] sm:$0xff]
        %v989 = vld [vmem:[#allocation5 + $0xfb0] sm:$0xf]
        %v990 = vld [vmem:[#allocation5 + $0xfb4] sm:$0xff]
        %v991 = vld [vmem:[#allocation5 + $0xfbc] sm:$0xff]
        %v992 = vld [vmem:[#allocation5 + $0xfc4] sm:$0xf]
        %v993 = vld [vmem:[#allocation5 + $0xfc8] sm:$0xff]
        %v994 = vld [vmem:[#allocation5 + $0xfd0] sm:$0xff]
        %v995 = vld [vmem:[#allocation5 + $0xfd8] sm:$0xf]
        %v996 = vld [vmem:[#allocation5 + $0xfdc] sm:$0xff]
        %v997 = vld [vmem:[#allocation5 + $0xfe4] sm:$0xff]
        %v998 = vld [vmem:[#allocation5 + $0xfec] sm:$0xf]
        %v999 = vld [vmem:[#allocation5 + $0xff0] sm:$0xff]
        %v1000 = vld [vmem:[#allocation5 + $0xff8] sm:$0xff]
        %v1001 = vld [vmem:[#allocation5 + $0x1000] sm:$0xf]
        %v1002 = vld [vmem:[#allocation5 + $0x1004] sm:$0xff]
        %v1003 = vld [vmem:[#allocation5 + $0x100c] sm:$0xff]
        %v1004 = vld [vmem:[#allocation5 + $0x1014] sm:$0xf]
        %v1005 = vld [vmem:[#allocation5 + $0x1018] sm:$0xff]
        %v1006 = vld [vmem:[#allocation5 + $0x1020] sm:$0xff]
        %v1007 = vld [vmem:[#allocation5 + $0x1028] sm:$0xf]
        %v1008 = vld [vmem:[#allocation5 + $0x102c] sm:$0xff]
        %v1009 = vld [vmem:[#allocation5 + $0x1034] sm:$0xff]
        %v1010 = vld [vmem:[#allocation5 + $0x103c] sm:$0xf]
        %v1011 = vld [vmem:[#allocation5 + $0x1040] sm:$0xff]
        %v1012 = vld [vmem:[#allocation5 + $0x1048] sm:$0xff]
        %v1013 = vld [vmem:[#allocation5 + $0x1050] sm:$0xf]
        %v1014 = vld [vmem:[#allocation5 + $0x1054] sm:$0xff]
        %v1015 = vld [vmem:[#allocation5 + $0x105c] sm:$0xff]
        %v1016 = vld [vmem:[#allocation5 + $0x1064] sm:$0xf]
        %v1017 = vld [vmem:[#allocation5 + $0x1068] sm:$0xff]
        %v1018 = vld [vmem:[#allocation5 + $0x1070] sm:$0xff]
        %v1019 = vld [vmem:[#allocation5 + $0x1078] sm:$0xf]
        %v1020 = vld [vmem:[#allocation5 + $0x107c] sm:$0xff]
        %v1021 = vld [vmem:[#allocation5 + $0x1084] sm:$0xff]
        %v1022 = vld [vmem:[#allocation5 + $0x108c] sm:$0xf]
        %v1023 = vld [vmem:[#allocation5 + $0x1090] sm:$0xff]
        %v1024 = vld [vmem:[#allocation5 + $0x1098] sm:$0xff]
        %v1025 = vld [vmem:[#allocation5 + $0x10a0] sm:$0xf]
        %v1026 = vld [vmem:[#allocation5 + $0x10a4] sm:$0xff]
        %v1027 = vld [vmem:[#allocation5 + $0x10ac] sm:$0xff]
        %v1028 = vld [vmem:[#allocation5 + $0x10b4] sm:$0xf]
        %v1029 = vld [vmem:[#allocation5 + $0x10b8] sm:$0xff]
        %v1030 = vld [vmem:[#allocation5 + $0x10c0] sm:$0xff]
        %v1031 = vld [vmem:[#allocation5 + $0x10c8] sm:$0xf]
        %v1032 = vld [vmem:[#allocation5 + $0x10cc] sm:$0xff]
        %v1033 = vld [vmem:[#allocation5 + $0x10d4] sm:$0xff]
        %v1034 = vld [vmem:[#allocation5 + $0x10dc] sm:$0xf]
        %v1035 = vld [vmem:[#allocation5 + $0x10e0] sm:$0xff]
        %v1036 = vld [vmem:[#allocation5 + $0x10e8] sm:$0xff]
        %v1037 = vld [vmem:[#allocation5 + $0x10f0] sm:$0xf]
        %v1038 = vld [vmem:[#allocation5 + $0x10f4] sm:$0xff]
        %v1039 = vld [vmem:[#allocation5 + $0x10fc] sm:$0xff]
        %v1040 = vld [vmem:[#allocation5 + $0x1104] sm:$0xf]
        %v1041 = vld [vmem:[#allocation5 + $0x1108] sm:$0xff]
        %v1042 = vld [vmem:[#allocation5 + $0x1110] sm:$0xff]
        %v1043 = vld [vmem:[#allocation5 + $0x1118] sm:$0xf]
        %v1044 = vld [vmem:[#allocation5 + $0x111c] sm:$0xff]
        %v1045 = vld [vmem:[#allocation5 + $0x1124] sm:$0xff]
        %v1046 = vld [vmem:[#allocation5 + $0x112c] sm:$0xf]
        %v1047 = vld [vmem:[#allocation5 + $0x1130] sm:$0xff]
        %v1048 = vld [vmem:[#allocation5 + $0x1138] sm:$0xff]
        %v1049 = vld [vmem:[#allocation5 + $0x1140] sm:$0xf]
        %v1050 = vld [vmem:[#allocation5 + $0x1144] sm:$0xff]
        %v1051 = vld [vmem:[#allocation5 + $0x114c] sm:$0xff]
        %v1052 = vld [vmem:[#allocation5 + $0x1154] sm:$0xf]
        %v1053 = vld [vmem:[#allocation5 + $0x1158] sm:$0xff]
        %v1054 = vld [vmem:[#allocation5 + $0x1160] sm:$0xff]
        %v1055 = vld [vmem:[#allocation5 + $0x1168] sm:$0xf]
        %v1056 = vld [vmem:[#allocation5 + $0x116c] sm:$0xff]
        %v1057 = vld [vmem:[#allocation5 + $0x1174] sm:$0xff]
        %v1058 = vld [vmem:[#allocation5 + $0x117c] sm:$0xf]
        %v1059 = vld [vmem:[#allocation5 + $0x1180] sm:$0xff]
        %v1060 = vld [vmem:[#allocation5 + $0x1188] sm:$0xff]
        %v1061 = vld [vmem:[#allocation5 + $0x1190] sm:$0xf]
        %v1062 = vld [vmem:[#allocation7] sm:$0x1f]
        %v1064 = vlaneseq
        %v1065 = vshrl.u32 %v1064, 7
        %v1066 = vsub.s32 0, %v1065
        %v1067 = vrot.slane %v1062, %v1066
        %v1068 = vlaneseq
        %v1069 = vshrl.u32 %v1068, 7
        %v1070 = vsub.s32 1, %v1069
        %v1071 = vrot.slane %v1062, %v1070
        %v1072 = vlaneseq
        %v1073 = vshrl.u32 %v1072, 7
        %v1074 = vsub.s32 2, %v1073
        %v1075 = vrot.slane %v1062, %v1074
        %v1076 = vlaneseq
        %v1077 = vshrl.u32 %v1076, 7
        %v1078 = vsub.s32 3, %v1077
        %v1079 = vrot.slane %v1062, %v1078
        %v1080 = vlaneseq
        %v1081 = vshrl.u32 %v1080, 7
        %v1082 = vsub.s32 4, %v1081
        %v1083 = vrot.slane %v1062, %v1082
        %v1764 = vunpack.c.l.b16 %v387
        %v1765 = vunpack.c.h.b16 %v387
        %v1766 = vunpack.c.l.b16 %v388
        %v1767 = vunpack.c.h.b16 %v388
        %v1768 = vunpack.c.l.b16 %v389
        %v1769 = vunpack.c.l.b16 %v390
        %v1770 = vunpack.c.h.b16 %v390
        %v1771 = vunpack.c.l.b16 %v391
        %v1772 = vunpack.c.h.b16 %v391
        %v1773 = vunpack.c.l.b16 %v392
        %v1774 = vunpack.c.l.b16 %v393
        %v1775 = vunpack.c.h.b16 %v393
        %v1776 = vunpack.c.l.b16 %v394
        %v1777 = vunpack.c.h.b16 %v394
        %v1778 = vunpack.c.l.b16 %v395
        %v1779 = vunpack.c.l.b16 %v396
        %v1780 = vunpack.c.h.b16 %v396
        %v1781 = vunpack.c.l.b16 %v397
        %v1782 = vunpack.c.h.b16 %v397
        %v1783 = vunpack.c.l.b16 %v398
        %v1784 = vunpack.c.l.b16 %v399
        %v1785 = vunpack.c.h.b16 %v399
        %v1786 = vunpack.c.l.b16 %v400
        %v1787 = vunpack.c.h.b16 %v400
        %v1788 = vunpack.c.l.b16 %v401
        %v1789 = vunpack.c.l.b16 %v402
        %v1790 = vunpack.c.h.b16 %v402
        %v1791 = vunpack.c.l.b16 %v403
        %v1792 = vunpack.c.h.b16 %v403
        %v1793 = vunpack.c.l.b16 %v404
        %v1794 = vunpack.c.l.b16 %v405
        %v1795 = vunpack.c.h.b16 %v405
        %v1796 = vunpack.c.l.b16 %v406
        %v1797 = vunpack.c.h.b16 %v406
        %v1798 = vunpack.c.l.b16 %v407
        %v1799 = vunpack.c.l.b16 %v408
        %v1800 = vunpack.c.h.b16 %v408
        %v1801 = vunpack.c.l.b16 %v409
        %v1802 = vunpack.c.h.b16 %v409
        %v1803 = vunpack.c.l.b16 %v410
        %v1804 = vunpack.c.l.b16 %v411
        %v1805 = vunpack.c.h.b16 %v411
        %v1806 = vunpack.c.l.b16 %v412
        %v1807 = vunpack.c.h.b16 %v412
        %v1808 = vunpack.c.l.b16 %v413
        %v1809 = vunpack.c.l.b16 %v414
        %v1810 = vunpack.c.h.b16 %v414
        %v1811 = vunpack.c.l.b16 %v415
        %v1812 = vunpack.c.h.b16 %v415
        %v1813 = vunpack.c.l.b16 %v416
        %v1814 = vunpack.c.l.b16 %v417
        %v1815 = vunpack.c.h.b16 %v417
        %v1816 = vunpack.c.l.b16 %v418
        %v1817 = vunpack.c.h.b16 %v418
        %v1818 = vunpack.c.l.b16 %v419
        %v1819 = vunpack.c.l.b16 %v420
        %v1820 = vunpack.c.h.b16 %v420
        %v1821 = vunpack.c.l.b16 %v421
        %v1822 = vunpack.c.h.b16 %v421
        %v1823 = vunpack.c.l.b16 %v422
        %v1824 = vunpack.c.l.b16 %v423
        %v1825 = vunpack.c.h.b16 %v423
        %v1826 = vunpack.c.l.b16 %v424
        %v1827 = vunpack.c.h.b16 %v424
        %v1828 = vunpack.c.l.b16 %v425
        %v1829 = vunpack.c.l.b16 %v426
        %v1830 = vunpack.c.h.b16 %v426
        %v1831 = vunpack.c.l.b16 %v427
        %v1832 = vunpack.c.h.b16 %v427
        %v1833 = vunpack.c.l.b16 %v428
        %v1834 = vunpack.c.l.b16 %v429
        %v1835 = vunpack.c.h.b16 %v429
        %v1836 = vunpack.c.l.b16 %v430
        %v1837 = vunpack.c.h.b16 %v430
        %v1838 = vunpack.c.l.b16 %v431
        %v1839 = vunpack.c.l.b16 %v432
        %v1840 = vunpack.c.h.b16 %v432
        %v1841 = vunpack.c.l.b16 %v433
        %v1842 = vunpack.c.h.b16 %v433
        %v1843 = vunpack.c.l.b16 %v434
        %v1844 = vunpack.c.l.b16 %v435
        %v1845 = vunpack.c.h.b16 %v435
        %v1846 = vunpack.c.l.b16 %v436
        %v1847 = vunpack.c.h.b16 %v436
        %v1848 = vunpack.c.l.b16 %v437
        %v1849 = vunpack.c.l.b16 %v438
        %v1850 = vunpack.c.h.b16 %v438
        %v1851 = vunpack.c.l.b16 %v439
        %v1852 = vunpack.c.h.b16 %v439
        %v1853 = vunpack.c.l.b16 %v440
        %v1854 = vunpack.c.l.b16 %v441
        %v1855 = vunpack.c.h.b16 %v441
        %v1856 = vunpack.c.l.b16 %v442
        %v1857 = vunpack.c.h.b16 %v442
        %v1858 = vunpack.c.l.b16 %v443
        %v1859 = vunpack.c.l.b16 %v444
        %v1860 = vunpack.c.h.b16 %v444
        %v1861 = vunpack.c.l.b16 %v445
        %v1862 = vunpack.c.h.b16 %v445
        %v1863 = vunpack.c.l.b16 %v446
        %v1864 = vunpack.c.l.b16 %v447
        %v1865 = vunpack.c.h.b16 %v447
        %v1866 = vunpack.c.l.b16 %v448
        %v1867 = vunpack.c.h.b16 %v448
        %v1868 = vunpack.c.l.b16 %v449
        %v1869 = vunpack.c.l.b16 %v450
        %v1870 = vunpack.c.h.b16 %v450
        %v1871 = vunpack.c.l.b16 %v451
        %v1872 = vunpack.c.h.b16 %v451
        %v1873 = vunpack.c.l.b16 %v452
        %v1874 = vunpack.c.l.b16 %v453
        %v1875 = vunpack.c.h.b16 %v453
        %v1876 = vunpack.c.l.b16 %v454
        %v1877 = vunpack.c.h.b16 %v454
        %v1878 = vunpack.c.l.b16 %v455
        %v1879 = vunpack.c.l.b16 %v456
        %v1880 = vunpack.c.h.b16 %v456
        %v1881 = vunpack.c.l.b16 %v457
        %v1882 = vunpack.c.h.b16 %v457
        %v1883 = vunpack.c.l.b16 %v458
        %v1884 = vunpack.c.l.b16 %v459
        %v1885 = vunpack.c.h.b16 %v459
        %v1886 = vunpack.c.l.b16 %v460
        %v1887 = vunpack.c.h.b16 %v460
        %v1888 = vunpack.c.l.b16 %v461
        %v1889 = vunpack.c.l.b16 %v462
        %v1890 = vunpack.c.h.b16 %v462
        %v1891 = vunpack.c.l.b16 %v463
        %v1892 = vunpack.c.h.b16 %v463
        %v1893 = vunpack.c.l.b16 %v464
        %v1894 = vunpack.c.l.b16 %v465
        %v1895 = vunpack.c.h.b16 %v465
        %v1896 = vunpack.c.l.b16 %v466
        %v1897 = vunpack.c.h.b16 %v466
        %v1898 = vunpack.c.l.b16 %v467
        %v1899 = vunpack.c.l.b16 %v468
        %v1900 = vunpack.c.h.b16 %v468
        %v1901 = vunpack.c.l.b16 %v469
        %v1902 = vunpack.c.h.b16 %v469
        %v1903 = vunpack.c.l.b16 %v470
        %v1904 = vunpack.c.l.b16 %v471
        %v1905 = vunpack.c.h.b16 %v471
        %v1906 = vunpack.c.l.b16 %v472
        %v1907 = vunpack.c.h.b16 %v472
        %v1908 = vunpack.c.l.b16 %v473
        %v1909 = vunpack.c.l.b16 %v474
        %v1910 = vunpack.c.h.b16 %v474
        %v1911 = vunpack.c.l.b16 %v475
        %v1912 = vunpack.c.h.b16 %v475
        %v1913 = vunpack.c.l.b16 %v476
        %v1914 = vunpack.c.l.b16 %v477
        %v1915 = vunpack.c.h.b16 %v477
        %v1916 = vunpack.c.l.b16 %v478
        %v1917 = vunpack.c.h.b16 %v478
        %v1918 = vunpack.c.l.b16 %v479
        %v1919 = vunpack.c.l.b16 %v480
        %v1920 = vunpack.c.h.b16 %v480
        %v1921 = vunpack.c.l.b16 %v481
        %v1922 = vunpack.c.h.b16 %v481
        %v1923 = vunpack.c.l.b16 %v482
        %v1924 = vunpack.c.l.b16 %v483
        %v1925 = vunpack.c.h.b16 %v483
        %v1926 = vunpack.c.l.b16 %v484
        %v1927 = vunpack.c.h.b16 %v484
        %v1928 = vunpack.c.l.b16 %v485
        %v1929 = vunpack.c.l.b16 %v486
        %v1930 = vunpack.c.h.b16 %v486
        %v1931 = vunpack.c.l.b16 %v487
        %v1932 = vunpack.c.h.b16 %v487
        %v1933 = vunpack.c.l.b16 %v488
        %v1934 = vunpack.c.l.b16 %v489
        %v1935 = vunpack.c.h.b16 %v489
        %v1936 = vunpack.c.l.b16 %v490
        %v1937 = vunpack.c.h.b16 %v490
        %v1938 = vunpack.c.l.b16 %v491
        %v1939 = vunpack.c.l.b16 %v492
        %v1940 = vunpack.c.h.b16 %v492
        %v1941 = vunpack.c.l.b16 %v493
        %v1942 = vunpack.c.h.b16 %v493
        %v1943 = vunpack.c.l.b16 %v494
        %v1944 = vunpack.c.l.b16 %v495
        %v1945 = vunpack.c.h.b16 %v495
        %v1946 = vunpack.c.l.b16 %v496
        %v1947 = vunpack.c.h.b16 %v496
        %v1948 = vunpack.c.l.b16 %v497
        %v1949 = vunpack.c.l.b16 %v498
        %v1950 = vunpack.c.h.b16 %v498
        %v1951 = vunpack.c.l.b16 %v499
        %v1952 = vunpack.c.h.b16 %v499
        %v1953 = vunpack.c.l.b16 %v500
        %v1954 = vunpack.c.l.b16 %v501
        %v1955 = vunpack.c.h.b16 %v501
        %v1956 = vunpack.c.l.b16 %v502
        %v1957 = vunpack.c.h.b16 %v502
        %v1958 = vunpack.c.l.b16 %v503
        %v1959 = vunpack.c.l.b16 %v504
        %v1960 = vunpack.c.h.b16 %v504
        %v1961 = vunpack.c.l.b16 %v505
        %v1962 = vunpack.c.h.b16 %v505
        %v1963 = vunpack.c.l.b16 %v506
        %v1964 = vunpack.c.l.b16 %v507
        %v1965 = vunpack.c.h.b16 %v507
        %v1966 = vunpack.c.l.b16 %v508
        %v1967 = vunpack.c.h.b16 %v508
        %v1968 = vunpack.c.l.b16 %v509
        %v1969 = vunpack.c.l.b16 %v510
        %v1970 = vunpack.c.h.b16 %v510
        %v1971 = vunpack.c.l.b16 %v511
        %v1972 = vunpack.c.h.b16 %v511
        %v1973 = vunpack.c.l.b16 %v512
        %v1974 = vunpack.c.l.b16 %v513
        %v1975 = vunpack.c.h.b16 %v513
        %v1976 = vunpack.c.l.b16 %v514
        %v1977 = vunpack.c.h.b16 %v514
        %v1978 = vunpack.c.l.b16 %v515
        %v1979 = vunpack.c.l.b16 %v516
        %v1980 = vunpack.c.h.b16 %v516
        %v1981 = vunpack.c.l.b16 %v517
        %v1982 = vunpack.c.h.b16 %v517
        %v1983 = vunpack.c.l.b16 %v518
        %v1984 = vunpack.c.l.b16 %v519
        %v1985 = vunpack.c.h.b16 %v519
        %v1986 = vunpack.c.l.b16 %v520
        %v1987 = vunpack.c.h.b16 %v520
        %v1988 = vunpack.c.l.b16 %v521
        %v1989 = vunpack.c.l.b16 %v522
        %v1990 = vunpack.c.h.b16 %v522
        %v1991 = vunpack.c.l.b16 %v523
        %v1992 = vunpack.c.h.b16 %v523
        %v1993 = vunpack.c.l.b16 %v524
        %v1994 = vunpack.c.l.b16 %v525
        %v1995 = vunpack.c.h.b16 %v525
        %v1996 = vunpack.c.l.b16 %v526
        %v1997 = vunpack.c.h.b16 %v526
        %v1998 = vunpack.c.l.b16 %v527
        %v1999 = vunpack.c.l.b16 %v528
        %v2000 = vunpack.c.h.b16 %v528
        %v2001 = vunpack.c.l.b16 %v529
        %v2002 = vunpack.c.h.b16 %v529
        %v2003 = vunpack.c.l.b16 %v530
        %v2004 = vunpack.c.l.b16 %v531
        %v2005 = vunpack.c.h.b16 %v531
        %v2006 = vunpack.c.l.b16 %v532
        %v2007 = vunpack.c.h.b16 %v532
        %v2008 = vunpack.c.l.b16 %v533
        %v2009 = vunpack.c.l.b16 %v534
        %v2010 = vunpack.c.h.b16 %v534
        %v2011 = vunpack.c.l.b16 %v535
        %v2012 = vunpack.c.h.b16 %v535
        %v2013 = vunpack.c.l.b16 %v536
        %v2014 = vunpack.c.l.b16 %v537
        %v2015 = vunpack.c.h.b16 %v537
        %v2016 = vunpack.c.l.b16 %v538
        %v2017 = vunpack.c.h.b16 %v538
        %v2018 = vunpack.c.l.b16 %v539
        %v2019 = vunpack.c.l.b16 %v540
        %v2020 = vunpack.c.h.b16 %v540
        %v2021 = vunpack.c.l.b16 %v541
        %v2022 = vunpack.c.h.b16 %v541
        %v2023 = vunpack.c.l.b16 %v542
        %v2024 = vunpack.c.l.b16 %v543
        %v2025 = vunpack.c.h.b16 %v543
        %v2026 = vunpack.c.l.b16 %v544
        %v2027 = vunpack.c.h.b16 %v544
        %v2028 = vunpack.c.l.b16 %v545
        %v2029 = vunpack.c.l.b16 %v546
        %v2030 = vunpack.c.h.b16 %v546
        %v2031 = vunpack.c.l.b16 %v547
        %v2032 = vunpack.c.h.b16 %v547
        %v2033 = vunpack.c.l.b16 %v548
        %v2034 = vunpack.c.l.b16 %v549
        %v2035 = vunpack.c.h.b16 %v549
        %v2036 = vunpack.c.l.b16 %v550
        %v2037 = vunpack.c.h.b16 %v550
        %v2038 = vunpack.c.l.b16 %v551
        %v2039 = vunpack.c.l.b16 %v552
        %v2040 = vunpack.c.h.b16 %v552
        %v2041 = vunpack.c.l.b16 %v553
        %v2042 = vunpack.c.h.b16 %v553
        %v2043 = vunpack.c.l.b16 %v554
        %v2044 = vunpack.c.l.b16 %v555
        %v2045 = vunpack.c.h.b16 %v555
        %v2046 = vunpack.c.l.b16 %v556
        %v2047 = vunpack.c.h.b16 %v556
        %v2048 = vunpack.c.l.b16 %v557
        %v2049 = vunpack.c.l.b16 %v558
        %v2050 = vunpack.c.h.b16 %v558
        %v2051 = vunpack.c.l.b16 %v559
        %v2052 = vunpack.c.h.b16 %v559
        %v2053 = vunpack.c.l.b16 %v560
        %v2054 = vunpack.c.l.b16 %v561
        %v2055 = vunpack.c.h.b16 %v561
        %v2056 = vunpack.c.l.b16 %v562
        %v2057 = vunpack.c.h.b16 %v562
        %v2058 = vunpack.c.l.b16 %v563
        %v2059 = vunpack.c.l.b16 %v564
        %v2060 = vunpack.c.h.b16 %v564
        %v2061 = vunpack.c.l.b16 %v565
        %v2062 = vunpack.c.h.b16 %v565
        %v2063 = vunpack.c.l.b16 %v566
        %v2064 = vunpack.c.l.b16 %v567
        %v2065 = vunpack.c.h.b16 %v567
        %v2066 = vunpack.c.l.b16 %v568
        %v2067 = vunpack.c.h.b16 %v568
        %v2068 = vunpack.c.l.b16 %v569
        %v2069 = vunpack.c.l.b16 %v570
        %v2070 = vunpack.c.h.b16 %v570
        %v2071 = vunpack.c.l.b16 %v571
        %v2072 = vunpack.c.h.b16 %v571
        %v2073 = vunpack.c.l.b16 %v572
        %v2074 = vunpack.c.l.b16 %v573
        %v2075 = vunpack.c.h.b16 %v573
        %v2076 = vunpack.c.l.b16 %v574
        %v2077 = vunpack.c.h.b16 %v574
        %v2078 = vunpack.c.l.b16 %v575
        %v2079 = vunpack.c.l.b16 %v576
        %v2080 = vunpack.c.h.b16 %v576
        %v2081 = vunpack.c.l.b16 %v577
        %v2082 = vunpack.c.h.b16 %v577
        %v2083 = vunpack.c.l.b16 %v578
        %v2084 = vunpack.c.l.b16 %v579
        %v2085 = vunpack.c.h.b16 %v579
        %v2086 = vunpack.c.l.b16 %v580
        %v2087 = vunpack.c.h.b16 %v580
        %v2088 = vunpack.c.l.b16 %v581
        %v2089 = vunpack.c.l.b16 %v582
        %v2090 = vunpack.c.h.b16 %v582
        %v2091 = vunpack.c.l.b16 %v583
        %v2092 = vunpack.c.h.b16 %v583
        %v2093 = vunpack.c.l.b16 %v584
        %v2094 = vunpack.c.l.b16 %v585
        %v2095 = vunpack.c.h.b16 %v585
        %v2096 = vunpack.c.l.b16 %v586
        %v2097 = vunpack.c.h.b16 %v586
        %v2098 = vunpack.c.l.b16 %v587
        %v2099 = vunpack.c.l.b16 %v588
        %v2100 = vunpack.c.h.b16 %v588
        %v2101 = vunpack.c.l.b16 %v589
        %v2102 = vunpack.c.h.b16 %v589
        %v2103 = vunpack.c.l.b16 %v590
        %v2104 = vunpack.c.l.b16 %v591
        %v2105 = vunpack.c.h.b16 %v591
        %v2106 = vunpack.c.l.b16 %v592
        %v2107 = vunpack.c.h.b16 %v592
        %v2108 = vunpack.c.l.b16 %v593
        %v2109 = vunpack.c.l.b16 %v594
        %v2110 = vunpack.c.h.b16 %v594
        %v2111 = vunpack.c.l.b16 %v595
        %v2112 = vunpack.c.h.b16 %v595
        %v2113 = vunpack.c.l.b16 %v596
        %v2114 = vunpack.c.l.b16 %v597
        %v2115 = vunpack.c.h.b16 %v597
        %v2116 = vunpack.c.l.b16 %v598
        %v2117 = vunpack.c.h.b16 %v598
        %v2118 = vunpack.c.l.b16 %v599
        %v2119 = vunpack.c.l.b16 %v600
        %v2120 = vunpack.c.h.b16 %v600
        %v2121 = vunpack.c.l.b16 %v601
        %v2122 = vunpack.c.h.b16 %v601
        %v2123 = vunpack.c.l.b16 %v602
        %v2124 = vunpack.c.l.b16 %v603
        %v2125 = vunpack.c.h.b16 %v603
        %v2126 = vunpack.c.l.b16 %v604
        %v2127 = vunpack.c.h.b16 %v604
        %v2128 = vunpack.c.l.b16 %v605
        %v2129 = vunpack.c.l.b16 %v606
        %v2130 = vunpack.c.h.b16 %v606
        %v2131 = vunpack.c.l.b16 %v607
        %v2132 = vunpack.c.h.b16 %v607
        %v2133 = vunpack.c.l.b16 %v608
        %v2134 = vunpack.c.l.b16 %v609
        %v2135 = vunpack.c.h.b16 %v609
        %v2136 = vunpack.c.l.b16 %v610
        %v2137 = vunpack.c.h.b16 %v610
        %v2138 = vunpack.c.l.b16 %v611
        %v2139 = vunpack.c.l.b16 %v612
        %v2140 = vunpack.c.h.b16 %v612
        %v2141 = vunpack.c.l.b16 %v613
        %v2142 = vunpack.c.h.b16 %v613
        %v2143 = vunpack.c.l.b16 %v614
        %v2144 = vunpack.c.l.b16 %v615
        %v2145 = vunpack.c.h.b16 %v615
        %v2146 = vunpack.c.l.b16 %v616
        %v2147 = vunpack.c.h.b16 %v616
        %v2148 = vunpack.c.l.b16 %v617
        %v2149 = vunpack.c.l.b16 %v618
        %v2150 = vunpack.c.h.b16 %v618
        %v2151 = vunpack.c.l.b16 %v619
        %v2152 = vunpack.c.h.b16 %v619
        %v2153 = vunpack.c.l.b16 %v620
        %v2154 = vunpack.c.l.b16 %v621
        %v2155 = vunpack.c.h.b16 %v621
        %v2156 = vunpack.c.l.b16 %v622
        %v2157 = vunpack.c.h.b16 %v622
        %v2158 = vunpack.c.l.b16 %v623
        %v2159 = vunpack.c.l.b16 %v624
        %v2160 = vunpack.c.h.b16 %v624
        %v2161 = vunpack.c.l.b16 %v625
        %v2162 = vunpack.c.h.b16 %v625
        %v2163 = vunpack.c.l.b16 %v626
        %v2164 = vunpack.c.l.b16 %v627
        %v2165 = vunpack.c.h.b16 %v627
        %v2166 = vunpack.c.l.b16 %v628
        %v2167 = vunpack.c.h.b16 %v628
        %v2168 = vunpack.c.l.b16 %v629
        %v2169 = vunpack.c.l.b16 %v630
        %v2170 = vunpack.c.h.b16 %v630
        %v2171 = vunpack.c.l.b16 %v631
        %v2172 = vunpack.c.h.b16 %v631
        %v2173 = vunpack.c.l.b16 %v632
        %v2174 = vunpack.c.l.b16 %v633
        %v2175 = vunpack.c.h.b16 %v633
        %v2176 = vunpack.c.l.b16 %v634
        %v2177 = vunpack.c.h.b16 %v634
        %v2178 = vunpack.c.l.b16 %v635
        %v2179 = vunpack.c.l.b16 %v636
        %v2180 = vunpack.c.h.b16 %v636
        %v2181 = vunpack.c.l.b16 %v637
        %v2182 = vunpack.c.h.b16 %v637
        %v2183 = vunpack.c.l.b16 %v638
        %v2184 = vunpack.c.l.b16 %v639
        %v2185 = vunpack.c.h.b16 %v639
        %v2186 = vunpack.c.l.b16 %v640
        %v2187 = vunpack.c.h.b16 %v640
        %v2188 = vunpack.c.l.b16 %v641
        %v2189 = vunpack.c.l.b16 %v642
        %v2190 = vunpack.c.h.b16 %v642
        %v2191 = vunpack.c.l.b16 %v643
        %v2192 = vunpack.c.h.b16 %v643
        %v2193 = vunpack.c.l.b16 %v644
        %v2194 = vunpack.c.l.b16 %v645
        %v2195 = vunpack.c.h.b16 %v645
        %v2196 = vunpack.c.l.b16 %v646
        %v2197 = vunpack.c.h.b16 %v646
        %v2198 = vunpack.c.l.b16 %v647
        %v2199 = vunpack.c.l.b16 %v648
        %v2200 = vunpack.c.h.b16 %v648
        %v2201 = vunpack.c.l.b16 %v649
        %v2202 = vunpack.c.h.b16 %v649
        %v2203 = vunpack.c.l.b16 %v650
        %v2204 = vunpack.c.l.b16 %v651
        %v2205 = vunpack.c.h.b16 %v651
        %v2206 = vunpack.c.l.b16 %v652
        %v2207 = vunpack.c.h.b16 %v652
        %v2208 = vunpack.c.l.b16 %v653
        %v2209 = vunpack.c.l.b16 %v654
        %v2210 = vunpack.c.h.b16 %v654
        %v2211 = vunpack.c.l.b16 %v655
        %v2212 = vunpack.c.h.b16 %v655
        %v2213 = vunpack.c.l.b16 %v656
        %v2214 = vunpack.c.l.b16 %v657
        %v2215 = vunpack.c.h.b16 %v657
        %v2216 = vunpack.c.l.b16 %v658
        %v2217 = vunpack.c.h.b16 %v658
        %v2218 = vunpack.c.l.b16 %v659
        %v2219 = vunpack.c.l.b16 %v660
        %v2220 = vunpack.c.h.b16 %v660
        %v2221 = vunpack.c.l.b16 %v661
        %v2222 = vunpack.c.h.b16 %v661
        %v2223 = vunpack.c.l.b16 %v662
        %v2224 = vunpack.c.l.b16 %v663
        %v2225 = vunpack.c.h.b16 %v663
        %v2226 = vunpack.c.l.b16 %v664
        %v2227 = vunpack.c.h.b16 %v664
        %v2228 = vunpack.c.l.b16 %v665
        %v2229 = vunpack.c.l.b16 %v666
        %v2230 = vunpack.c.h.b16 %v666
        %v2231 = vunpack.c.l.b16 %v667
        %v2232 = vunpack.c.h.b16 %v667
        %v2233 = vunpack.c.l.b16 %v668
        %v2234 = vunpack.c.l.b16 %v669
        %v2235 = vunpack.c.h.b16 %v669
        %v2236 = vunpack.c.l.b16 %v670
        %v2237 = vunpack.c.h.b16 %v670
        %v2238 = vunpack.c.l.b16 %v671
        %v2239 = vunpack.c.l.b16 %v672
        %v2240 = vunpack.c.h.b16 %v672
        %v2241 = vunpack.c.l.b16 %v673
        %v2242 = vunpack.c.h.b16 %v673
        %v2243 = vunpack.c.l.b16 %v674
        %v2244 = vunpack.c.l.b16 %v675
        %v2245 = vunpack.c.h.b16 %v675
        %v2246 = vunpack.c.l.b16 %v676
        %v2247 = vunpack.c.h.b16 %v676
        %v2248 = vunpack.c.l.b16 %v677
        %v2249 = vunpack.c.l.b16 %v678
        %v2250 = vunpack.c.h.b16 %v678
        %v2251 = vunpack.c.l.b16 %v679
        %v2252 = vunpack.c.h.b16 %v679
        %v2253 = vunpack.c.l.b16 %v680
        %v2254 = vunpack.c.l.b16 %v681
        %v2255 = vunpack.c.h.b16 %v681
        %v2256 = vunpack.c.l.b16 %v682
        %v2257 = vunpack.c.h.b16 %v682
        %v2258 = vunpack.c.l.b16 %v683
        %v2259 = vunpack.c.l.b16 %v684
        %v2260 = vunpack.c.h.b16 %v684
        %v2261 = vunpack.c.l.b16 %v685
        %v2262 = vunpack.c.h.b16 %v685
        %v2263 = vunpack.c.l.b16 %v686
        %v2264 = vunpack.c.l.b16 %v687
        %v2265 = vunpack.c.h.b16 %v687
        %v2266 = vunpack.c.l.b16 %v688
        %v2267 = vunpack.c.h.b16 %v688
        %v2268 = vunpack.c.l.b16 %v689
        %v2269 = vunpack.c.l.b16 %v690
        %v2270 = vunpack.c.h.b16 %v690
        %v2271 = vunpack.c.l.b16 %v691
        %v2272 = vunpack.c.h.b16 %v691
        %v2273 = vunpack.c.l.b16 %v692
        %v2274 = vunpack.c.l.b16 %v693
        %v2275 = vunpack.c.h.b16 %v693
        %v2276 = vunpack.c.l.b16 %v694
        %v2277 = vunpack.c.h.b16 %v694
        %v2278 = vunpack.c.l.b16 %v695
        %v2279 = vunpack.c.l.b16 %v696
        %v2280 = vunpack.c.h.b16 %v696
        %v2281 = vunpack.c.l.b16 %v697
        %v2282 = vunpack.c.h.b16 %v697
        %v2283 = vunpack.c.l.b16 %v698
        %v2284 = vunpack.c.l.b16 %v699
        %v2285 = vunpack.c.h.b16 %v699
        %v2286 = vunpack.c.l.b16 %v700
        %v2287 = vunpack.c.h.b16 %v700
        %v2288 = vunpack.c.l.b16 %v701
        %v2289 = vunpack.c.l.b16 %v702
        %v2290 = vunpack.c.h.b16 %v702
        %v2291 = vunpack.c.l.b16 %v703
        %v2292 = vunpack.c.h.b16 %v703
        %v2293 = vunpack.c.l.b16 %v704
        %v2294 = vunpack.c.l.b16 %v705
        %v2295 = vunpack.c.h.b16 %v705
        %v2296 = vunpack.c.l.b16 %v706
        %v2297 = vunpack.c.h.b16 %v706
        %v2298 = vunpack.c.l.b16 %v707
        %v2299 = vunpack.c.l.b16 %v708
        %v2300 = vunpack.c.h.b16 %v708
        %v2301 = vunpack.c.l.b16 %v709
        %v2302 = vunpack.c.h.b16 %v709
        %v2303 = vunpack.c.l.b16 %v710
        %v2304 = vunpack.c.l.b16 %v711
        %v2305 = vunpack.c.h.b16 %v711
        %v2306 = vunpack.c.l.b16 %v712
        %v2307 = vunpack.c.h.b16 %v712
        %v2308 = vunpack.c.l.b16 %v713
        %v2309 = vunpack.c.l.b16 %v714
        %v2310 = vunpack.c.h.b16 %v714
        %v2311 = vunpack.c.l.b16 %v715
        %v2312 = vunpack.c.h.b16 %v715
        %v2313 = vunpack.c.l.b16 %v716
        %v2314 = vunpack.c.l.b16 %v717
        %v2315 = vunpack.c.h.b16 %v717
        %v2316 = vunpack.c.l.b16 %v718
        %v2317 = vunpack.c.h.b16 %v718
        %v2318 = vunpack.c.l.b16 %v719
        %v2319 = vunpack.c.l.b16 %v720
        %v2320 = vunpack.c.h.b16 %v720
        %v2321 = vunpack.c.l.b16 %v721
        %v2322 = vunpack.c.h.b16 %v721
        %v2323 = vunpack.c.l.b16 %v722
        %v2324 = vunpack.c.l.b16 %v723
        %v2325 = vunpack.c.h.b16 %v723
        %v2326 = vunpack.c.l.b16 %v724
        %v2327 = vunpack.c.h.b16 %v724
        %v2328 = vunpack.c.l.b16 %v725
        %v2329 = vunpack.c.l.b16 %v726
        %v2330 = vunpack.c.h.b16 %v726
        %v2331 = vunpack.c.l.b16 %v727
        %v2332 = vunpack.c.h.b16 %v727
        %v2333 = vunpack.c.l.b16 %v728
        %v2334 = vunpack.c.l.b16 %v729
        %v2335 = vunpack.c.h.b16 %v729
        %v2336 = vunpack.c.l.b16 %v730
        %v2337 = vunpack.c.h.b16 %v730
        %v2338 = vunpack.c.l.b16 %v731
        %v2339 = vunpack.c.l.b16 %v732
        %v2340 = vunpack.c.h.b16 %v732
        %v2341 = vunpack.c.l.b16 %v733
        %v2342 = vunpack.c.h.b16 %v733
        %v2343 = vunpack.c.l.b16 %v734
        %v2344 = vunpack.c.l.b16 %v735
        %v2345 = vunpack.c.h.b16 %v735
        %v2346 = vunpack.c.l.b16 %v736
        %v2347 = vunpack.c.h.b16 %v736
        %v2348 = vunpack.c.l.b16 %v737
        %v2349 = vunpack.c.l.b16 %v738
        %v2350 = vunpack.c.h.b16 %v738
        %v2351 = vunpack.c.l.b16 %v739
        %v2352 = vunpack.c.h.b16 %v739
        %v2353 = vunpack.c.l.b16 %v740
        %v2354 = vunpack.c.l.b16 %v741
        %v2355 = vunpack.c.h.b16 %v741
        %v2356 = vunpack.c.l.b16 %v742
        %v2357 = vunpack.c.h.b16 %v742
        %v2358 = vunpack.c.l.b16 %v743
        %v2359 = vunpack.c.l.b16 %v744
        %v2360 = vunpack.c.h.b16 %v744
        %v2361 = vunpack.c.l.b16 %v745
        %v2362 = vunpack.c.h.b16 %v745
        %v2363 = vunpack.c.l.b16 %v746
        %v2364 = vunpack.c.l.b16 %v747
        %v2365 = vunpack.c.h.b16 %v747
        %v2366 = vunpack.c.l.b16 %v748
        %v2367 = vunpack.c.h.b16 %v748
        %v2368 = vunpack.c.l.b16 %v749
        %v2369 = vunpack.c.l.b16 %v750
        %v2370 = vunpack.c.h.b16 %v750
        %v2371 = vunpack.c.l.b16 %v751
        %v2372 = vunpack.c.h.b16 %v751
        %v2373 = vunpack.c.l.b16 %v752
        %v2374 = vunpack.c.l.b16 %v753
        %v2375 = vunpack.c.h.b16 %v753
        %v2376 = vunpack.c.l.b16 %v754
        %v2377 = vunpack.c.h.b16 %v754
        %v2378 = vunpack.c.l.b16 %v755
        %v2379 = vunpack.c.l.b16 %v756
        %v2380 = vunpack.c.h.b16 %v756
        %v2381 = vunpack.c.l.b16 %v757
        %v2382 = vunpack.c.h.b16 %v757
        %v2383 = vunpack.c.l.b16 %v758
        %v2384 = vunpack.c.l.b16 %v759
        %v2385 = vunpack.c.h.b16 %v759
        %v2386 = vunpack.c.l.b16 %v760
        %v2387 = vunpack.c.h.b16 %v760
        %v2388 = vunpack.c.l.b16 %v761
        %v2389 = vunpack.c.l.b16 %v762
        %v2390 = vunpack.c.h.b16 %v762
        %v2391 = vunpack.c.l.b16 %v763
        %v2392 = vunpack.c.h.b16 %v763
        %v2393 = vunpack.c.l.b16 %v764
        %v2394 = vunpack.c.l.b16 %v765
        %v2395 = vunpack.c.h.b16 %v765
        %v2396 = vunpack.c.l.b16 %v766
        %v2397 = vunpack.c.h.b16 %v766
        %v2398 = vunpack.c.l.b16 %v767
        %v2399 = vunpack.c.l.b16 %v768
        %v2400 = vunpack.c.h.b16 %v768
        %v2401 = vunpack.c.l.b16 %v769
        %v2402 = vunpack.c.h.b16 %v769
        %v2403 = vunpack.c.l.b16 %v770
        %v2404 = vunpack.c.l.b16 %v771
        %v2405 = vunpack.c.h.b16 %v771
        %v2406 = vunpack.c.l.b16 %v772
        %v2407 = vunpack.c.h.b16 %v772
        %v2408 = vunpack.c.l.b16 %v773
        %v2409 = vunpack.c.l.b16 %v774
        %v2410 = vunpack.c.h.b16 %v774
        %v2411 = vunpack.c.l.b16 %v775
        %v2412 = vunpack.c.h.b16 %v775
        %v2413 = vunpack.c.l.b16 %v776
        %v2414 = vunpack.c.l.b16 %v777
        %v2415 = vunpack.c.h.b16 %v777
        %v2416 = vunpack.c.l.b16 %v778
        %v2417 = vunpack.c.h.b16 %v778
        %v2418 = vunpack.c.l.b16 %v779
        %v2419 = vunpack.c.l.b16 %v780
        %v2420 = vunpack.c.h.b16 %v780
        %v2421 = vunpack.c.l.b16 %v781
        %v2422 = vunpack.c.h.b16 %v781
        %v2423 = vunpack.c.l.b16 %v782
        %v2424 = vunpack.c.l.b16 %v783
        %v2425 = vunpack.c.h.b16 %v783
        %v2426 = vunpack.c.l.b16 %v784
        %v2427 = vunpack.c.h.b16 %v784
        %v2428 = vunpack.c.l.b16 %v785
        %v2429 = vunpack.c.l.b16 %v786
        %v2430 = vunpack.c.h.b16 %v786
        %v2431 = vunpack.c.l.b16 %v787
        %v2432 = vunpack.c.h.b16 %v787
        %v2433 = vunpack.c.l.b16 %v788
        %v2434 = vunpack.c.l.b16 %v789
        %v2435 = vunpack.c.h.b16 %v789
        %v2436 = vunpack.c.l.b16 %v790
        %v2437 = vunpack.c.h.b16 %v790
        %v2438 = vunpack.c.l.b16 %v791
        %v2439 = vunpack.c.l.b16 %v792
        %v2440 = vunpack.c.h.b16 %v792
        %v2441 = vunpack.c.l.b16 %v793
        %v2442 = vunpack.c.h.b16 %v793
        %v2443 = vunpack.c.l.b16 %v794
        %v2444 = vunpack.c.l.b16 %v795
        %v2445 = vunpack.c.h.b16 %v795
        %v2446 = vunpack.c.l.b16 %v796
        %v2447 = vunpack.c.h.b16 %v796
        %v2448 = vunpack.c.l.b16 %v797
        %v2449 = vunpack.c.l.b16 %v798
        %v2450 = vunpack.c.h.b16 %v798
        %v2451 = vunpack.c.l.b16 %v799
        %v2452 = vunpack.c.h.b16 %v799
        %v2453 = vunpack.c.l.b16 %v800
        %v2454 = vunpack.c.l.b16 %v801
        %v2455 = vunpack.c.h.b16 %v801
        %v2456 = vunpack.c.l.b16 %v802
        %v2457 = vunpack.c.h.b16 %v802
        %v2458 = vunpack.c.l.b16 %v803
        %v2459 = vunpack.c.l.b16 %v804
        %v2460 = vunpack.c.h.b16 %v804
        %v2461 = vunpack.c.l.b16 %v805
        %v2462 = vunpack.c.h.b16 %v805
        %v2463 = vunpack.c.l.b16 %v806
        %v2464 = vunpack.c.l.b16 %v807
        %v2465 = vunpack.c.h.b16 %v807
        %v2466 = vunpack.c.l.b16 %v808
        %v2467 = vunpack.c.h.b16 %v808
        %v2468 = vunpack.c.l.b16 %v809
        %v2469 = vunpack.c.l.b16 %v810
        %v2470 = vunpack.c.h.b16 %v810
        %v2471 = vunpack.c.l.b16 %v811
        %v2472 = vunpack.c.h.b16 %v811
        %v2473 = vunpack.c.l.b16 %v812
        %v2474 = vunpack.c.l.b16 %v813
        %v2475 = vunpack.c.h.b16 %v813
        %v2476 = vunpack.c.l.b16 %v814
        %v2477 = vunpack.c.h.b16 %v814
        %v2478 = vunpack.c.l.b16 %v815
        %v2479 = vunpack.c.l.b16 %v816
        %v2480 = vunpack.c.h.b16 %v816
        %v2481 = vunpack.c.l.b16 %v817
        %v2482 = vunpack.c.h.b16 %v817
        %v2483 = vunpack.c.l.b16 %v818
        %v2484 = vunpack.c.l.b16 %v819
        %v2485 = vunpack.c.h.b16 %v819
        %v2486 = vunpack.c.l.b16 %v820
        %v2487 = vunpack.c.h.b16 %v820
        %v2488 = vunpack.c.l.b16 %v821
        %v2489 = vunpack.c.l.b16 %v822
        %v2490 = vunpack.c.h.b16 %v822
        %v2491 = vunpack.c.l.b16 %v823
        %v2492 = vunpack.c.h.b16 %v823
        %v2493 = vunpack.c.l.b16 %v824
        %v2494 = vunpack.c.l.b16 %v825
        %v2495 = vunpack.c.h.b16 %v825
        %v2496 = vunpack.c.l.b16 %v826
        %v2497 = vunpack.c.h.b16 %v826
        %v2498 = vunpack.c.l.b16 %v827
        %v2499 = vunpack.c.l.b16 %v828
        %v2500 = vunpack.c.h.b16 %v828
        %v2501 = vunpack.c.l.b16 %v829
        %v2502 = vunpack.c.h.b16 %v829
        %v2503 = vunpack.c.l.b16 %v830
        %v2504 = vunpack.c.l.b16 %v831
        %v2505 = vunpack.c.h.b16 %v831
        %v2506 = vunpack.c.l.b16 %v832
        %v2507 = vunpack.c.h.b16 %v832
        %v2508 = vunpack.c.l.b16 %v833
        %v2509 = vunpack.c.l.b16 %v834
        %v2510 = vunpack.c.h.b16 %v834
        %v2511 = vunpack.c.l.b16 %v835
        %v2512 = vunpack.c.h.b16 %v835
        %v2513 = vunpack.c.l.b16 %v836
        %v2514 = vunpack.c.l.b16 %v837
        %v2515 = vunpack.c.h.b16 %v837
        %v2516 = vunpack.c.l.b16 %v838
        %v2517 = vunpack.c.h.b16 %v838
        %v2518 = vunpack.c.l.b16 %v839
        %v2519 = vunpack.c.l.b16 %v840
        %v2520 = vunpack.c.h.b16 %v840
        %v2521 = vunpack.c.l.b16 %v841
        %v2522 = vunpack.c.h.b16 %v841
        %v2523 = vunpack.c.l.b16 %v842
        %v2524 = vunpack.c.l.b16 %v843
        %v2525 = vunpack.c.h.b16 %v843
        %v2526 = vunpack.c.l.b16 %v844
        %v2527 = vunpack.c.h.b16 %v844
        %v2528 = vunpack.c.l.b16 %v845
        %v2529 = vunpack.c.l.b16 %v846
        %v2530 = vunpack.c.h.b16 %v846
        %v2531 = vunpack.c.l.b16 %v847
        %v2532 = vunpack.c.h.b16 %v847
        %v2533 = vunpack.c.l.b16 %v848
        %v2534 = vunpack.c.l.b16 %v849
        %v2535 = vunpack.c.h.b16 %v849
        %v2536 = vunpack.c.l.b16 %v850
        %v2537 = vunpack.c.h.b16 %v850
        %v2538 = vunpack.c.l.b16 %v851
        %v2539 = vunpack.c.l.b16 %v852
        %v2540 = vunpack.c.h.b16 %v852
        %v2541 = vunpack.c.l.b16 %v853
        %v2542 = vunpack.c.h.b16 %v853
        %v2543 = vunpack.c.l.b16 %v854
        %v2544 = vunpack.c.l.b16 %v855
        %v2545 = vunpack.c.h.b16 %v855
        %v2546 = vunpack.c.l.b16 %v856
        %v2547 = vunpack.c.h.b16 %v856
        %v2548 = vunpack.c.l.b16 %v857
        %v2549 = vunpack.c.l.b16 %v858
        %v2550 = vunpack.c.h.b16 %v858
        %v2551 = vunpack.c.l.b16 %v859
        %v2552 = vunpack.c.h.b16 %v859
        %v2553 = vunpack.c.l.b16 %v860
        %v2554 = vunpack.c.l.b16 %v861
        %v2555 = vunpack.c.h.b16 %v861
        %v2556 = vunpack.c.l.b16 %v862
        %v2557 = vunpack.c.h.b16 %v862
        %v2558 = vunpack.c.l.b16 %v863
        %v2559 = vunpack.c.l.b16 %v864
        %v2560 = vunpack.c.h.b16 %v864
        %v2561 = vunpack.c.l.b16 %v865
        %v2562 = vunpack.c.h.b16 %v865
        %v2563 = vunpack.c.l.b16 %v866
        %v2564 = vunpack.c.l.b16 %v867
        %v2565 = vunpack.c.h.b16 %v867
        %v2566 = vunpack.c.l.b16 %v868
        %v2567 = vunpack.c.h.b16 %v868
        %v2568 = vunpack.c.l.b16 %v869
        %v2569 = vunpack.c.l.b16 %v870
        %v2570 = vunpack.c.h.b16 %v870
        %v2571 = vunpack.c.l.b16 %v871
        %v2572 = vunpack.c.h.b16 %v871
        %v2573 = vunpack.c.l.b16 %v872
        %v2574 = vunpack.c.l.b16 %v873
        %v2575 = vunpack.c.h.b16 %v873
        %v2576 = vunpack.c.l.b16 %v874
        %v2577 = vunpack.c.h.b16 %v874
        %v2578 = vunpack.c.l.b16 %v875
        %v2579 = vunpack.c.l.b16 %v876
        %v2580 = vunpack.c.h.b16 %v876
        %v2581 = vunpack.c.l.b16 %v877
        %v2582 = vunpack.c.h.b16 %v877
        %v2583 = vunpack.c.l.b16 %v878
        %v2584 = vunpack.c.l.b16 %v879
        %v2585 = vunpack.c.h.b16 %v879
        %v2586 = vunpack.c.l.b16 %v880
        %v2587 = vunpack.c.h.b16 %v880
        %v2588 = vunpack.c.l.b16 %v881
        %v2589 = vunpack.c.l.b16 %v882
        %v2590 = vunpack.c.h.b16 %v882
        %v2591 = vunpack.c.l.b16 %v883
        %v2592 = vunpack.c.h.b16 %v883
        %v2593 = vunpack.c.l.b16 %v884
        %v2594 = vunpack.c.l.b16 %v885
        %v2595 = vunpack.c.h.b16 %v885
        %v2596 = vunpack.c.l.b16 %v886
        %v2597 = vunpack.c.h.b16 %v886
        %v2598 = vunpack.c.l.b16 %v887
        %v2599 = vunpack.c.l.b16 %v888
        %v2600 = vunpack.c.h.b16 %v888
        %v2601 = vunpack.c.l.b16 %v889
        %v2602 = vunpack.c.h.b16 %v889
        %v2603 = vunpack.c.l.b16 %v890
        %v2604 = vunpack.c.l.b16 %v891
        %v2605 = vunpack.c.h.b16 %v891
        %v2606 = vunpack.c.l.b16 %v892
        %v2607 = vunpack.c.h.b16 %v892
        %v2608 = vunpack.c.l.b16 %v893
        %v2609 = vunpack.c.l.b16 %v894
        %v2610 = vunpack.c.h.b16 %v894
        %v2611 = vunpack.c.l.b16 %v895
        %v2612 = vunpack.c.h.b16 %v895
        %v2613 = vunpack.c.l.b16 %v896
        %v2614 = vunpack.c.l.b16 %v897
        %v2615 = vunpack.c.h.b16 %v897
        %v2616 = vunpack.c.l.b16 %v898
        %v2617 = vunpack.c.h.b16 %v898
        %v2618 = vunpack.c.l.b16 %v899
        %v2619 = vunpack.c.l.b16 %v900
        %v2620 = vunpack.c.h.b16 %v900
        %v2621 = vunpack.c.l.b16 %v901
        %v2622 = vunpack.c.h.b16 %v901
        %v2623 = vunpack.c.l.b16 %v902
        %v2624 = vunpack.c.l.b16 %v903
        %v2625 = vunpack.c.h.b16 %v903
        %v2626 = vunpack.c.l.b16 %v904
        %v2627 = vunpack.c.h.b16 %v904
        %v2628 = vunpack.c.l.b16 %v905
        %v2629 = vunpack.c.l.b16 %v906
        %v2630 = vunpack.c.h.b16 %v906
        %v2631 = vunpack.c.l.b16 %v907
        %v2632 = vunpack.c.h.b16 %v907
        %v2633 = vunpack.c.l.b16 %v908
        %v2634 = vunpack.c.l.b16 %v909
        %v2635 = vunpack.c.h.b16 %v909
        %v2636 = vunpack.c.l.b16 %v910
        %v2637 = vunpack.c.h.b16 %v910
        %v2638 = vunpack.c.l.b16 %v911
        %v2639 = vunpack.c.l.b16 %v912
        %v2640 = vunpack.c.h.b16 %v912
        %v2641 = vunpack.c.l.b16 %v913
        %v2642 = vunpack.c.h.b16 %v913
        %v2643 = vunpack.c.l.b16 %v914
        %v2644 = vunpack.c.l.b16 %v915
        %v2645 = vunpack.c.h.b16 %v915
        %v2646 = vunpack.c.l.b16 %v916
        %v2647 = vunpack.c.h.b16 %v916
        %v2648 = vunpack.c.l.b16 %v917
        %v2649 = vunpack.c.l.b16 %v918
        %v2650 = vunpack.c.h.b16 %v918
        %v2651 = vunpack.c.l.b16 %v919
        %v2652 = vunpack.c.h.b16 %v919
        %v2653 = vunpack.c.l.b16 %v920
        %v2654 = vunpack.c.l.b16 %v921
        %v2655 = vunpack.c.h.b16 %v921
        %v2656 = vunpack.c.l.b16 %v922
        %v2657 = vunpack.c.h.b16 %v922
        %v2658 = vunpack.c.l.b16 %v923
        %v2659 = vunpack.c.l.b16 %v924
        %v2660 = vunpack.c.h.b16 %v924
        %v2661 = vunpack.c.l.b16 %v925
        %v2662 = vunpack.c.h.b16 %v925
        %v2663 = vunpack.c.l.b16 %v926
        %v2664 = vunpack.c.l.b16 %v927
        %v2665 = vunpack.c.h.b16 %v927
        %v2666 = vunpack.c.l.b16 %v928
        %v2667 = vunpack.c.h.b16 %v928
        %v2668 = vunpack.c.l.b16 %v929
        %v2669 = vunpack.c.l.b16 %v930
        %v2670 = vunpack.c.h.b16 %v930
        %v2671 = vunpack.c.l.b16 %v931
        %v2672 = vunpack.c.h.b16 %v931
        %v2673 = vunpack.c.l.b16 %v932
        %v2674 = vunpack.c.l.b16 %v933
        %v2675 = vunpack.c.h.b16 %v933
        %v2676 = vunpack.c.l.b16 %v934
        %v2677 = vunpack.c.h.b16 %v934
        %v2678 = vunpack.c.l.b16 %v935
        %v2679 = vunpack.c.l.b16 %v936
        %v2680 = vunpack.c.h.b16 %v936
        %v2681 = vunpack.c.l.b16 %v937
        %v2682 = vunpack.c.h.b16 %v937
        %v2683 = vunpack.c.l.b16 %v938
        %v2684 = vunpack.c.l.b16 %v939
        %v2685 = vunpack.c.h.b16 %v939
        %v2686 = vunpack.c.l.b16 %v940
        %v2687 = vunpack.c.h.b16 %v940
        %v2688 = vunpack.c.l.b16 %v941
        %v2689 = vunpack.c.l.b16 %v942
        %v2690 = vunpack.c.h.b16 %v942
        %v2691 = vunpack.c.l.b16 %v943
        %v2692 = vunpack.c.h.b16 %v943
        %v2693 = vunpack.c.l.b16 %v944
        %v2694 = vunpack.c.l.b16 %v945
        %v2695 = vunpack.c.h.b16 %v945
        %v2696 = vunpack.c.l.b16 %v946
        %v2697 = vunpack.c.h.b16 %v946
        %v2698 = vunpack.c.l.b16 %v947
        %v2699 = vunpack.c.l.b16 %v948
        %v2700 = vunpack.c.h.b16 %v948
        %v2701 = vunpack.c.l.b16 %v949
        %v2702 = vunpack.c.h.b16 %v949
        %v2703 = vunpack.c.l.b16 %v950
        %v2704 = vunpack.c.l.b16 %v951
        %v2705 = vunpack.c.h.b16 %v951
        %v2706 = vunpack.c.l.b16 %v952
        %v2707 = vunpack.c.h.b16 %v952
        %v2708 = vunpack.c.l.b16 %v953
        %v2709 = vunpack.c.l.b16 %v954
        %v2710 = vunpack.c.h.b16 %v954
        %v2711 = vunpack.c.l.b16 %v955
        %v2712 = vunpack.c.h.b16 %v955
        %v2713 = vunpack.c.l.b16 %v956
        %v2714 = vunpack.c.l.b16 %v957
        %v2715 = vunpack.c.h.b16 %v957
        %v2716 = vunpack.c.l.b16 %v958
        %v2717 = vunpack.c.h.b16 %v958
        %v2718 = vunpack.c.l.b16 %v959
        %v2719 = vunpack.c.l.b16 %v960
        %v2720 = vunpack.c.h.b16 %v960
        %v2721 = vunpack.c.l.b16 %v961
        %v2722 = vunpack.c.h.b16 %v961
        %v2723 = vunpack.c.l.b16 %v962
        %v2724 = vunpack.c.l.b16 %v963
        %v2725 = vunpack.c.h.b16 %v963
        %v2726 = vunpack.c.l.b16 %v964
        %v2727 = vunpack.c.h.b16 %v964
        %v2728 = vunpack.c.l.b16 %v965
        %v2729 = vunpack.c.l.b16 %v966
        %v2730 = vunpack.c.h.b16 %v966
        %v2731 = vunpack.c.l.b16 %v967
        %v2732 = vunpack.c.h.b16 %v967
        %v2733 = vunpack.c.l.b16 %v968
        %v2734 = vunpack.c.l.b16 %v969
        %v2735 = vunpack.c.h.b16 %v969
        %v2736 = vunpack.c.l.b16 %v970
        %v2737 = vunpack.c.h.b16 %v970
        %v2738 = vunpack.c.l.b16 %v971
        %v2739 = vunpack.c.l.b16 %v972
        %v2740 = vunpack.c.h.b16 %v972
        %v2741 = vunpack.c.l.b16 %v973
        %v2742 = vunpack.c.h.b16 %v973
        %v2743 = vunpack.c.l.b16 %v974
        %v2744 = vunpack.c.l.b16 %v975
        %v2745 = vunpack.c.h.b16 %v975
        %v2746 = vunpack.c.l.b16 %v976
        %v2747 = vunpack.c.h.b16 %v976
        %v2748 = vunpack.c.l.b16 %v977
        %v2749 = vunpack.c.l.b16 %v978
        %v2750 = vunpack.c.h.b16 %v978
        %v2751 = vunpack.c.l.b16 %v979
        %v2752 = vunpack.c.h.b16 %v979
        %v2753 = vunpack.c.l.b16 %v980
        %v2754 = vunpack.c.l.b16 %v981
        %v2755 = vunpack.c.h.b16 %v981
        %v2756 = vunpack.c.l.b16 %v982
        %v2757 = vunpack.c.h.b16 %v982
        %v2758 = vunpack.c.l.b16 %v983
        %v2759 = vunpack.c.l.b16 %v984
        %v2760 = vunpack.c.h.b16 %v984
        %v2761 = vunpack.c.l.b16 %v985
        %v2762 = vunpack.c.h.b16 %v985
        %v2763 = vunpack.c.l.b16 %v986
        %v2764 = vunpack.c.l.b16 %v987
        %v2765 = vunpack.c.h.b16 %v987
        %v2766 = vunpack.c.l.b16 %v988
        %v2767 = vunpack.c.h.b16 %v988
        %v2768 = vunpack.c.l.b16 %v989
        %v2769 = vunpack.c.l.b16 %v990
        %v2770 = vunpack.c.h.b16 %v990
        %v2771 = vunpack.c.l.b16 %v991
        %v2772 = vunpack.c.h.b16 %v991
        %v2773 = vunpack.c.l.b16 %v992
        %v2774 = vunpack.c.l.b16 %v993
        %v2775 = vunpack.c.h.b16 %v993
        %v2776 = vunpack.c.l.b16 %v994
        %v2777 = vunpack.c.h.b16 %v994
        %v2778 = vunpack.c.l.b16 %v995
        %v2779 = vunpack.c.l.b16 %v996
        %v2780 = vunpack.c.h.b16 %v996
        %v2781 = vunpack.c.l.b16 %v997
        %v2782 = vunpack.c.h.b16 %v997
        %v2783 = vunpack.c.l.b16 %v998
        %v2784 = vunpack.c.l.b16 %v999
        %v2785 = vunpack.c.h.b16 %v999
        %v2786 = vunpack.c.l.b16 %v1000
        %v2787 = vunpack.c.h.b16 %v1000
        %v2788 = vunpack.c.l.b16 %v1001
        %v2789 = vunpack.c.l.b16 %v1002
        %v2790 = vunpack.c.h.b16 %v1002
        %v2791 = vunpack.c.l.b16 %v1003
        %v2792 = vunpack.c.h.b16 %v1003
        %v2793 = vunpack.c.l.b16 %v1004
        %v2794 = vunpack.c.l.b16 %v1005
        %v2795 = vunpack.c.h.b16 %v1005
        %v2796 = vunpack.c.l.b16 %v1006
        %v2797 = vunpack.c.h.b16 %v1006
        %v2798 = vunpack.c.l.b16 %v1007
        %v2799 = vunpack.c.l.b16 %v1008
        %v2800 = vunpack.c.h.b16 %v1008
        %v2801 = vunpack.c.l.b16 %v1009
        %v2802 = vunpack.c.h.b16 %v1009
        %v2803 = vunpack.c.l.b16 %v1010
        %v2804 = vunpack.c.l.b16 %v1011
        %v2805 = vunpack.c.h.b16 %v1011
        %v2806 = vunpack.c.l.b16 %v1012
        %v2807 = vunpack.c.h.b16 %v1012
        %v2808 = vunpack.c.l.b16 %v1013
        %v2809 = vunpack.c.l.b16 %v1014
        %v2810 = vunpack.c.h.b16 %v1014
        %v2811 = vunpack.c.l.b16 %v1015
        %v2812 = vunpack.c.h.b16 %v1015
        %v2813 = vunpack.c.l.b16 %v1016
        %v2814 = vunpack.c.l.b16 %v1017
        %v2815 = vunpack.c.h.b16 %v1017
        %v2816 = vunpack.c.l.b16 %v1018
        %v2817 = vunpack.c.h.b16 %v1018
        %v2818 = vunpack.c.l.b16 %v1019
        %v2819 = vunpack.c.l.b16 %v1020
        %v2820 = vunpack.c.h.b16 %v1020
        %v2821 = vunpack.c.l.b16 %v1021
        %v2822 = vunpack.c.h.b16 %v1021
        %v2823 = vunpack.c.l.b16 %v1022
        %v2824 = vunpack.c.l.b16 %v1023
        %v2825 = vunpack.c.h.b16 %v1023
        %v2826 = vunpack.c.l.b16 %v1024
        %v2827 = vunpack.c.h.b16 %v1024
        %v2828 = vunpack.c.l.b16 %v1025
        %v2829 = vunpack.c.l.b16 %v1026
        %v2830 = vunpack.c.h.b16 %v1026
        %v2831 = vunpack.c.l.b16 %v1027
        %v2832 = vunpack.c.h.b16 %v1027
        %v2833 = vunpack.c.l.b16 %v1028
        %v2834 = vunpack.c.l.b16 %v1029
        %v2835 = vunpack.c.h.b16 %v1029
        %v2836 = vunpack.c.l.b16 %v1030
        %v2837 = vunpack.c.h.b16 %v1030
        %v2838 = vunpack.c.l.b16 %v1031
        %v2839 = vunpack.c.l.b16 %v1032
        %v2840 = vunpack.c.h.b16 %v1032
        %v2841 = vunpack.c.l.b16 %v1033
        %v2842 = vunpack.c.h.b16 %v1033
        %v2843 = vunpack.c.l.b16 %v1034
        %v2844 = vunpack.c.l.b16 %v1035
        %v2845 = vunpack.c.h.b16 %v1035
        %v2846 = vunpack.c.l.b16 %v1036
        %v2847 = vunpack.c.h.b16 %v1036
        %v2848 = vunpack.c.l.b16 %v1037
        %v2849 = vunpack.c.l.b16 %v1038
        %v2850 = vunpack.c.h.b16 %v1038
        %v2851 = vunpack.c.l.b16 %v1039
        %v2852 = vunpack.c.h.b16 %v1039
        %v2853 = vunpack.c.l.b16 %v1040
        %v2854 = vunpack.c.l.b16 %v1041
        %v2855 = vunpack.c.h.b16 %v1041
        %v2856 = vunpack.c.l.b16 %v1042
        %v2857 = vunpack.c.h.b16 %v1042
        %v2858 = vunpack.c.l.b16 %v1043
        %v2859 = vunpack.c.l.b16 %v1044
        %v2860 = vunpack.c.h.b16 %v1044
        %v2861 = vunpack.c.l.b16 %v1045
        %v2862 = vunpack.c.h.b16 %v1045
        %v2863 = vunpack.c.l.b16 %v1046
        %v2864 = vunpack.c.l.b16 %v1047
        %v2865 = vunpack.c.h.b16 %v1047
        %v2866 = vunpack.c.l.b16 %v1048
        %v2867 = vunpack.c.h.b16 %v1048
        %v2868 = vunpack.c.l.b16 %v1049
        %v2869 = vunpack.c.l.b16 %v1050
        %v2870 = vunpack.c.h.b16 %v1050
        %v2871 = vunpack.c.l.b16 %v1051
        %v2872 = vunpack.c.h.b16 %v1051
        %v2873 = vunpack.c.l.b16 %v1052
        %v2874 = vunpack.c.l.b16 %v1053
        %v2875 = vunpack.c.h.b16 %v1053
        %v2876 = vunpack.c.l.b16 %v1054
        %v2877 = vunpack.c.h.b16 %v1054
        %v2878 = vunpack.c.l.b16 %v1055
        %v2879 = vunpack.c.l.b16 %v1056
        %v2880 = vunpack.c.h.b16 %v1056
        %v2881 = vunpack.c.l.b16 %v1057
        %v2882 = vunpack.c.h.b16 %v1057
        %v2883 = vunpack.c.l.b16 %v1058
        %v2884 = vunpack.c.l.b16 %v1059
        %v2885 = vunpack.c.h.b16 %v1059
        %v2886 = vunpack.c.l.b16 %v1060
        %v2887 = vunpack.c.h.b16 %v1060
        %v2888 = vunpack.c.l.b16 %v1061
        %v2889 = vpack.c.b16 %v1769, %v1764
        %v2890 = vpack.c.b16 %v1770, %v1765
        %v2891 = vpack.c.b16 %v1771, %v1766
        %v2892 = vpack.c.b16 %v1772, %v1767
        %v2893 = vpack.c.b16 %v1773, %v1768
        %v2894 = vpack.c.b16 %v1779, %v1774
        %v2895 = vpack.c.b16 %v1780, %v1775
        %v2896 = vpack.c.b16 %v1781, %v1776
        %v2897 = vpack.c.b16 %v1782, %v1777
        %v2898 = vpack.c.b16 %v1783, %v1778
        %v2899 = vpack.c.b16 %v1789, %v1784
        %v2900 = vpack.c.b16 %v1790, %v1785
        %v2901 = vpack.c.b16 %v1791, %v1786
        %v2902 = vpack.c.b16 %v1792, %v1787
        %v2903 = vpack.c.b16 %v1793, %v1788
        %v2904 = vpack.c.b16 %v1799, %v1794
        %v2905 = vpack.c.b16 %v1800, %v1795
        %v2906 = vpack.c.b16 %v1801, %v1796
        %v2907 = vpack.c.b16 %v1802, %v1797
        %v2908 = vpack.c.b16 %v1803, %v1798
        %v2909 = vpack.c.b16 %v1809, %v1804
        %v2910 = vpack.c.b16 %v1810, %v1805
        %v2911 = vpack.c.b16 %v1811, %v1806
        %v2912 = vpack.c.b16 %v1812, %v1807
        %v2913 = vpack.c.b16 %v1813, %v1808
        %v2914 = vpack.c.b16 %v1819, %v1814
        %v2915 = vpack.c.b16 %v1820, %v1815
        %v2916 = vpack.c.b16 %v1821, %v1816
        %v2917 = vpack.c.b16 %v1822, %v1817
        %v2918 = vpack.c.b16 %v1823, %v1818
        %v2919 = vpack.c.b16 %v1829, %v1824
        %v2920 = vpack.c.b16 %v1830, %v1825
        %v2921 = vpack.c.b16 %v1831, %v1826
        %v2922 = vpack.c.b16 %v1832, %v1827
        %v2923 = vpack.c.b16 %v1833, %v1828
        %v2924 = vpack.c.b16 %v1839, %v1834
        %v2925 = vpack.c.b16 %v1840, %v1835
        %v2926 = vpack.c.b16 %v1841, %v1836
        %v2927 = vpack.c.b16 %v1842, %v1837
        %v2928 = vpack.c.b16 %v1843, %v1838
        %v2929 = vpack.c.b16 %v1849, %v1844
        %v2930 = vpack.c.b16 %v1850, %v1845
        %v2931 = vpack.c.b16 %v1851, %v1846
        %v2932 = vpack.c.b16 %v1852, %v1847
        %v2933 = vpack.c.b16 %v1853, %v1848
        %v2934 = vpack.c.b16 %v1859, %v1854
        %v2935 = vpack.c.b16 %v1860, %v1855
        %v2936 = vpack.c.b16 %v1861, %v1856
        %v2937 = vpack.c.b16 %v1862, %v1857
        %v2938 = vpack.c.b16 %v1863, %v1858
        %v2939 = vpack.c.b16 %v1869, %v1864
        %v2940 = vpack.c.b16 %v1870, %v1865
        %v2941 = vpack.c.b16 %v1871, %v1866
        %v2942 = vpack.c.b16 %v1872, %v1867
        %v2943 = vpack.c.b16 %v1873, %v1868
        %v2944 = vpack.c.b16 %v1879, %v1874
        %v2945 = vpack.c.b16 %v1880, %v1875
        %v2946 = vpack.c.b16 %v1881, %v1876
        %v2947 = vpack.c.b16 %v1882, %v1877
        %v2948 = vpack.c.b16 %v1883, %v1878
        %v2949 = vpack.c.b16 %v1889, %v1884
        %v2950 = vpack.c.b16 %v1890, %v1885
        %v2951 = vpack.c.b16 %v1891, %v1886
        %v2952 = vpack.c.b16 %v1892, %v1887
        %v2953 = vpack.c.b16 %v1893, %v1888
        %v2954 = vpack.c.b16 %v1899, %v1894
        %v2955 = vpack.c.b16 %v1900, %v1895
        %v2956 = vpack.c.b16 %v1901, %v1896
        %v2957 = vpack.c.b16 %v1902, %v1897
        %v2958 = vpack.c.b16 %v1903, %v1898
        %v2959 = vpack.c.b16 %v1909, %v1904
        %v2960 = vpack.c.b16 %v1910, %v1905
        %v2961 = vpack.c.b16 %v1911, %v1906
        %v2962 = vpack.c.b16 %v1912, %v1907
        %v2963 = vpack.c.b16 %v1913, %v1908
        %v2964 = vpack.c.b16 %v1919, %v1914
        %v2965 = vpack.c.b16 %v1920, %v1915
        %v2966 = vpack.c.b16 %v1921, %v1916
        %v2967 = vpack.c.b16 %v1922, %v1917
        %v2968 = vpack.c.b16 %v1923, %v1918
        %v2969 = vpack.c.b16 %v1929, %v1924
        %v2970 = vpack.c.b16 %v1930, %v1925
        %v2971 = vpack.c.b16 %v1931, %v1926
        %v2972 = vpack.c.b16 %v1932, %v1927
        %v2973 = vpack.c.b16 %v1933, %v1928
        %v2974 = vpack.c.b16 %v1939, %v1934
        %v2975 = vpack.c.b16 %v1940, %v1935
        %v2976 = vpack.c.b16 %v1941, %v1936
        %v2977 = vpack.c.b16 %v1942, %v1937
        %v2978 = vpack.c.b16 %v1943, %v1938
        %v2979 = vpack.c.b16 %v1949, %v1944
        %v2980 = vpack.c.b16 %v1950, %v1945
        %v2981 = vpack.c.b16 %v1951, %v1946
        %v2982 = vpack.c.b16 %v1952, %v1947
        %v2983 = vpack.c.b16 %v1953, %v1948
        %v2984 = vpack.c.b16 %v1959, %v1954
        %v2985 = vpack.c.b16 %v1960, %v1955
        %v2986 = vpack.c.b16 %v1961, %v1956
        %v2987 = vpack.c.b16 %v1962, %v1957
        %v2988 = vpack.c.b16 %v1963, %v1958
        %v2989 = vpack.c.b16 %v1969, %v1964
        %v2990 = vpack.c.b16 %v1970, %v1965
        %v2991 = vpack.c.b16 %v1971, %v1966
        %v2992 = vpack.c.b16 %v1972, %v1967
        %v2993 = vpack.c.b16 %v1973, %v1968
        %v2994 = vpack.c.b16 %v1979, %v1974
        %v2995 = vpack.c.b16 %v1980, %v1975
        %v2996 = vpack.c.b16 %v1981, %v1976
        %v2997 = vpack.c.b16 %v1982, %v1977
        %v2998 = vpack.c.b16 %v1983, %v1978
        %v2999 = vpack.c.b16 %v1989, %v1984
        %v3000 = vpack.c.b16 %v1990, %v1985
        %v3001 = vpack.c.b16 %v1991, %v1986
        %v3002 = vpack.c.b16 %v1992, %v1987
        %v3003 = vpack.c.b16 %v1993, %v1988
        %v3004 = vpack.c.b16 %v1999, %v1994
        %v3005 = vpack.c.b16 %v2000, %v1995
        %v3006 = vpack.c.b16 %v2001, %v1996
        %v3007 = vpack.c.b16 %v2002, %v1997
        %v3008 = vpack.c.b16 %v2003, %v1998
        %v3009 = vpack.c.b16 %v2009, %v2004
        %v3010 = vpack.c.b16 %v2010, %v2005
        %v3011 = vpack.c.b16 %v2011, %v2006
        %v3012 = vpack.c.b16 %v2012, %v2007
        %v3013 = vpack.c.b16 %v2013, %v2008
        %v3014 = vpack.c.b16 %v2019, %v2014
        %v3015 = vpack.c.b16 %v2020, %v2015
        %v3016 = vpack.c.b16 %v2021, %v2016
        %v3017 = vpack.c.b16 %v2022, %v2017
        %v3018 = vpack.c.b16 %v2023, %v2018
        %v3019 = vpack.c.b16 %v2029, %v2024
        %v3020 = vpack.c.b16 %v2030, %v2025
        %v3021 = vpack.c.b16 %v2031, %v2026
        %v3022 = vpack.c.b16 %v2032, %v2027
        %v3023 = vpack.c.b16 %v2033, %v2028
        %v3024 = vpack.c.b16 %v2039, %v2034
        %v3025 = vpack.c.b16 %v2040, %v2035
        %v3026 = vpack.c.b16 %v2041, %v2036
        %v3027 = vpack.c.b16 %v2042, %v2037
        %v3028 = vpack.c.b16 %v2043, %v2038
        %v3029 = vpack.c.b16 %v2049, %v2044
        %v3030 = vpack.c.b16 %v2050, %v2045
        %v3031 = vpack.c.b16 %v2051, %v2046
        %v3032 = vpack.c.b16 %v2052, %v2047
        %v3033 = vpack.c.b16 %v2053, %v2048
        %v3034 = vpack.c.b16 %v2059, %v2054
        %v3035 = vpack.c.b16 %v2060, %v2055
        %v3036 = vpack.c.b16 %v2061, %v2056
        %v3037 = vpack.c.b16 %v2062, %v2057
        %v3038 = vpack.c.b16 %v2063, %v2058
        %v3039 = vpack.c.b16 %v2069, %v2064
        %v3040 = vpack.c.b16 %v2070, %v2065
        %v3041 = vpack.c.b16 %v2071, %v2066
        %v3042 = vpack.c.b16 %v2072, %v2067
        %v3043 = vpack.c.b16 %v2073, %v2068
        %v3044 = vpack.c.b16 %v2079, %v2074
        %v3045 = vpack.c.b16 %v2080, %v2075
        %v3046 = vpack.c.b16 %v2081, %v2076
        %v3047 = vpack.c.b16 %v2082, %v2077
        %v3048 = vpack.c.b16 %v2083, %v2078
        %v3049 = vpack.c.b16 %v2089, %v2084
        %v3050 = vpack.c.b16 %v2090, %v2085
        %v3051 = vpack.c.b16 %v2091, %v2086
        %v3052 = vpack.c.b16 %v2092, %v2087
        %v3053 = vpack.c.b16 %v2093, %v2088
        %v3054 = vpack.c.b16 %v2099, %v2094
        %v3055 = vpack.c.b16 %v2100, %v2095
        %v3056 = vpack.c.b16 %v2101, %v2096
        %v3057 = vpack.c.b16 %v2102, %v2097
        %v3058 = vpack.c.b16 %v2103, %v2098
        %v3059 = vpack.c.b16 %v2109, %v2104
        %v3060 = vpack.c.b16 %v2110, %v2105
        %v3061 = vpack.c.b16 %v2111, %v2106
        %v3062 = vpack.c.b16 %v2112, %v2107
        %v3063 = vpack.c.b16 %v2113, %v2108
        %v3064 = vpack.c.b16 %v2119, %v2114
        %v3065 = vpack.c.b16 %v2120, %v2115
        %v3066 = vpack.c.b16 %v2121, %v2116
        %v3067 = vpack.c.b16 %v2122, %v2117
        %v3068 = vpack.c.b16 %v2123, %v2118
        %v3069 = vpack.c.b16 %v2129, %v2124
        %v3070 = vpack.c.b16 %v2130, %v2125
        %v3071 = vpack.c.b16 %v2131, %v2126
        %v3072 = vpack.c.b16 %v2132, %v2127
        %v3073 = vpack.c.b16 %v2133, %v2128
        %v3074 = vpack.c.b16 %v2139, %v2134
        %v3075 = vpack.c.b16 %v2140, %v2135
        %v3076 = vpack.c.b16 %v2141, %v2136
        %v3077 = vpack.c.b16 %v2142, %v2137
        %v3078 = vpack.c.b16 %v2143, %v2138
        %v3079 = vpack.c.b16 %v2149, %v2144
        %v3080 = vpack.c.b16 %v2150, %v2145
        %v3081 = vpack.c.b16 %v2151, %v2146
        %v3082 = vpack.c.b16 %v2152, %v2147
        %v3083 = vpack.c.b16 %v2153, %v2148
        %v3084 = vpack.c.b16 %v2159, %v2154
        %v3085 = vpack.c.b16 %v2160, %v2155
        %v3086 = vpack.c.b16 %v2161, %v2156
        %v3087 = vpack.c.b16 %v2162, %v2157
        %v3088 = vpack.c.b16 %v2163, %v2158
        %v3089 = vpack.c.b16 %v2169, %v2164
        %v3090 = vpack.c.b16 %v2170, %v2165
        %v3091 = vpack.c.b16 %v2171, %v2166
        %v3092 = vpack.c.b16 %v2172, %v2167
        %v3093 = vpack.c.b16 %v2173, %v2168
        %v3094 = vpack.c.b16 %v2179, %v2174
        %v3095 = vpack.c.b16 %v2180, %v2175
        %v3096 = vpack.c.b16 %v2181, %v2176
        %v3097 = vpack.c.b16 %v2182, %v2177
        %v3098 = vpack.c.b16 %v2183, %v2178
        %v3099 = vpack.c.b16 %v2189, %v2184
        %v3100 = vpack.c.b16 %v2190, %v2185
        %v3101 = vpack.c.b16 %v2191, %v2186
        %v3102 = vpack.c.b16 %v2192, %v2187
        %v3103 = vpack.c.b16 %v2193, %v2188
        %v3104 = vpack.c.b16 %v2199, %v2194
        %v3105 = vpack.c.b16 %v2200, %v2195
        %v3106 = vpack.c.b16 %v2201, %v2196
        %v3107 = vpack.c.b16 %v2202, %v2197
        %v3108 = vpack.c.b16 %v2203, %v2198
        %v3109 = vpack.c.b16 %v2209, %v2204
        %v3110 = vpack.c.b16 %v2210, %v2205
        %v3111 = vpack.c.b16 %v2211, %v2206
        %v3112 = vpack.c.b16 %v2212, %v2207
        %v3113 = vpack.c.b16 %v2213, %v2208
        %v3114 = vpack.c.b16 %v2219, %v2214
        %v3115 = vpack.c.b16 %v2220, %v2215
        %v3116 = vpack.c.b16 %v2221, %v2216
        %v3117 = vpack.c.b16 %v2222, %v2217
        %v3118 = vpack.c.b16 %v2223, %v2218
        %v3119 = vpack.c.b16 %v2229, %v2224
        %v3120 = vpack.c.b16 %v2230, %v2225
        %v3121 = vpack.c.b16 %v2231, %v2226
        %v3122 = vpack.c.b16 %v2232, %v2227
        %v3123 = vpack.c.b16 %v2233, %v2228
        %v3124 = vpack.c.b16 %v2239, %v2234
        %v3125 = vpack.c.b16 %v2240, %v2235
        %v3126 = vpack.c.b16 %v2241, %v2236
        %v3127 = vpack.c.b16 %v2242, %v2237
        %v3128 = vpack.c.b16 %v2243, %v2238
        %v3129 = vpack.c.b16 %v2249, %v2244
        %v3130 = vpack.c.b16 %v2250, %v2245
        %v3131 = vpack.c.b16 %v2251, %v2246
        %v3132 = vpack.c.b16 %v2252, %v2247
        %v3133 = vpack.c.b16 %v2253, %v2248
        %v3134 = vpack.c.b16 %v2259, %v2254
        %v3135 = vpack.c.b16 %v2260, %v2255
        %v3136 = vpack.c.b16 %v2261, %v2256
        %v3137 = vpack.c.b16 %v2262, %v2257
        %v3138 = vpack.c.b16 %v2263, %v2258
        %v3139 = vpack.c.b16 %v2269, %v2264
        %v3140 = vpack.c.b16 %v2270, %v2265
        %v3141 = vpack.c.b16 %v2271, %v2266
        %v3142 = vpack.c.b16 %v2272, %v2267
        %v3143 = vpack.c.b16 %v2273, %v2268
        %v3144 = vpack.c.b16 %v2279, %v2274
        %v3145 = vpack.c.b16 %v2280, %v2275
        %v3146 = vpack.c.b16 %v2281, %v2276
        %v3147 = vpack.c.b16 %v2282, %v2277
        %v3148 = vpack.c.b16 %v2283, %v2278
        %v3149 = vpack.c.b16 %v2289, %v2284
        %v3150 = vpack.c.b16 %v2290, %v2285
        %v3151 = vpack.c.b16 %v2291, %v2286
        %v3152 = vpack.c.b16 %v2292, %v2287
        %v3153 = vpack.c.b16 %v2293, %v2288
        %v3154 = vpack.c.b16 %v2299, %v2294
        %v3155 = vpack.c.b16 %v2300, %v2295
        %v3156 = vpack.c.b16 %v2301, %v2296
        %v3157 = vpack.c.b16 %v2302, %v2297
        %v3158 = vpack.c.b16 %v2303, %v2298
        %v3159 = vpack.c.b16 %v2309, %v2304
        %v3160 = vpack.c.b16 %v2310, %v2305
        %v3161 = vpack.c.b16 %v2311, %v2306
        %v3162 = vpack.c.b16 %v2312, %v2307
        %v3163 = vpack.c.b16 %v2313, %v2308
        %v3164 = vpack.c.b16 %v2319, %v2314
        %v3165 = vpack.c.b16 %v2320, %v2315
        %v3166 = vpack.c.b16 %v2321, %v2316
        %v3167 = vpack.c.b16 %v2322, %v2317
        %v3168 = vpack.c.b16 %v2323, %v2318
        %v3169 = vpack.c.b16 %v2329, %v2324
        %v3170 = vpack.c.b16 %v2330, %v2325
        %v3171 = vpack.c.b16 %v2331, %v2326
        %v3172 = vpack.c.b16 %v2332, %v2327
        %v3173 = vpack.c.b16 %v2333, %v2328
        %v3174 = vpack.c.b16 %v2339, %v2334
        %v3175 = vpack.c.b16 %v2340, %v2335
        %v3176 = vpack.c.b16 %v2341, %v2336
        %v3177 = vpack.c.b16 %v2342, %v2337
        %v3178 = vpack.c.b16 %v2343, %v2338
        %v3179 = vpack.c.b16 %v2349, %v2344
        %v3180 = vpack.c.b16 %v2350, %v2345
        %v3181 = vpack.c.b16 %v2351, %v2346
        %v3182 = vpack.c.b16 %v2352, %v2347
        %v3183 = vpack.c.b16 %v2353, %v2348
        %v3184 = vpack.c.b16 %v2359, %v2354
        %v3185 = vpack.c.b16 %v2360, %v2355
        %v3186 = vpack.c.b16 %v2361, %v2356
        %v3187 = vpack.c.b16 %v2362, %v2357
        %v3188 = vpack.c.b16 %v2363, %v2358
        %v3189 = vpack.c.b16 %v2369, %v2364
        %v3190 = vpack.c.b16 %v2370, %v2365
        %v3191 = vpack.c.b16 %v2371, %v2366
        %v3192 = vpack.c.b16 %v2372, %v2367
        %v3193 = vpack.c.b16 %v2373, %v2368
        %v3194 = vpack.c.b16 %v2379, %v2374
        %v3195 = vpack.c.b16 %v2380, %v2375
        %v3196 = vpack.c.b16 %v2381, %v2376
        %v3197 = vpack.c.b16 %v2382, %v2377
        %v3198 = vpack.c.b16 %v2383, %v2378
        %v3199 = vpack.c.b16 %v2389, %v2384
        %v3200 = vpack.c.b16 %v2390, %v2385
        %v3201 = vpack.c.b16 %v2391, %v2386
        %v3202 = vpack.c.b16 %v2392, %v2387
        %v3203 = vpack.c.b16 %v2393, %v2388
        %v3204 = vpack.c.b16 %v2399, %v2394
        %v3205 = vpack.c.b16 %v2400, %v2395
        %v3206 = vpack.c.b16 %v2401, %v2396
        %v3207 = vpack.c.b16 %v2402, %v2397
        %v3208 = vpack.c.b16 %v2403, %v2398
        %v3209 = vpack.c.b16 %v2409, %v2404
        %v3210 = vpack.c.b16 %v2410, %v2405
        %v3211 = vpack.c.b16 %v2411, %v2406
        %v3212 = vpack.c.b16 %v2412, %v2407
        %v3213 = vpack.c.b16 %v2413, %v2408
        %v3214 = vpack.c.b16 %v2419, %v2414
        %v3215 = vpack.c.b16 %v2420, %v2415
        %v3216 = vpack.c.b16 %v2421, %v2416
        %v3217 = vpack.c.b16 %v2422, %v2417
        %v3218 = vpack.c.b16 %v2423, %v2418
        %v3219 = vpack.c.b16 %v2429, %v2424
        %v3220 = vpack.c.b16 %v2430, %v2425
        %v3221 = vpack.c.b16 %v2431, %v2426
        %v3222 = vpack.c.b16 %v2432, %v2427
        %v3223 = vpack.c.b16 %v2433, %v2428
        %v3224 = vpack.c.b16 %v2439, %v2434
        %v3225 = vpack.c.b16 %v2440, %v2435
        %v3226 = vpack.c.b16 %v2441, %v2436
        %v3227 = vpack.c.b16 %v2442, %v2437
        %v3228 = vpack.c.b16 %v2443, %v2438
        %v3229 = vpack.c.b16 %v2449, %v2444
        %v3230 = vpack.c.b16 %v2450, %v2445
        %v3231 = vpack.c.b16 %v2451, %v2446
        %v3232 = vpack.c.b16 %v2452, %v2447
        %v3233 = vpack.c.b16 %v2453, %v2448
        %v3234 = vpack.c.b16 %v2459, %v2454
        %v3235 = vpack.c.b16 %v2460, %v2455
        %v3236 = vpack.c.b16 %v2461, %v2456
        %v3237 = vpack.c.b16 %v2462, %v2457
        %v3238 = vpack.c.b16 %v2463, %v2458
        %v3239 = vpack.c.b16 %v2469, %v2464
        %v3240 = vpack.c.b16 %v2470, %v2465
        %v3241 = vpack.c.b16 %v2471, %v2466
        %v3242 = vpack.c.b16 %v2472, %v2467
        %v3243 = vpack.c.b16 %v2473, %v2468
        %v3244 = vpack.c.b16 %v2479, %v2474
        %v3245 = vpack.c.b16 %v2480, %v2475
        %v3246 = vpack.c.b16 %v2481, %v2476
        %v3247 = vpack.c.b16 %v2482, %v2477
        %v3248 = vpack.c.b16 %v2483, %v2478
        %v3249 = vpack.c.b16 %v2489, %v2484
        %v3250 = vpack.c.b16 %v2490, %v2485
        %v3251 = vpack.c.b16 %v2491, %v2486
        %v3252 = vpack.c.b16 %v2492, %v2487
        %v3253 = vpack.c.b16 %v2493, %v2488
        %v3254 = vpack.c.b16 %v2499, %v2494
        %v3255 = vpack.c.b16 %v2500, %v2495
        %v3256 = vpack.c.b16 %v2501, %v2496
        %v3257 = vpack.c.b16 %v2502, %v2497
        %v3258 = vpack.c.b16 %v2503, %v2498
        %v3259 = vpack.c.b16 %v2509, %v2504
        %v3260 = vpack.c.b16 %v2510, %v2505
        %v3261 = vpack.c.b16 %v2511, %v2506
        %v3262 = vpack.c.b16 %v2512, %v2507
        %v3263 = vpack.c.b16 %v2513, %v2508
        %v3264 = vpack.c.b16 %v2519, %v2514
        %v3265 = vpack.c.b16 %v2520, %v2515
        %v3266 = vpack.c.b16 %v2521, %v2516
        %v3267 = vpack.c.b16 %v2522, %v2517
        %v3268 = vpack.c.b16 %v2523, %v2518
        %v3269 = vpack.c.b16 %v2529, %v2524
        %v3270 = vpack.c.b16 %v2530, %v2525
        %v3271 = vpack.c.b16 %v2531, %v2526
        %v3272 = vpack.c.b16 %v2532, %v2527
        %v3273 = vpack.c.b16 %v2533, %v2528
        %v3274 = vpack.c.b16 %v2539, %v2534
        %v3275 = vpack.c.b16 %v2540, %v2535
        %v3276 = vpack.c.b16 %v2541, %v2536
        %v3277 = vpack.c.b16 %v2542, %v2537
        %v3278 = vpack.c.b16 %v2543, %v2538
        %v3279 = vpack.c.b16 %v2549, %v2544
        %v3280 = vpack.c.b16 %v2550, %v2545
        %v3281 = vpack.c.b16 %v2551, %v2546
        %v3282 = vpack.c.b16 %v2552, %v2547
        %v3283 = vpack.c.b16 %v2553, %v2548
        %v3284 = vpack.c.b16 %v2559, %v2554
        %v3285 = vpack.c.b16 %v2560, %v2555
        %v3286 = vpack.c.b16 %v2561, %v2556
        %v3287 = vpack.c.b16 %v2562, %v2557
        %v3288 = vpack.c.b16 %v2563, %v2558
        %v3289 = vpack.c.b16 %v2569, %v2564
        %v3290 = vpack.c.b16 %v2570, %v2565
        %v3291 = vpack.c.b16 %v2571, %v2566
        %v3292 = vpack.c.b16 %v2572, %v2567
        %v3293 = vpack.c.b16 %v2573, %v2568
        %v3294 = vpack.c.b16 %v2579, %v2574
        %v3295 = vpack.c.b16 %v2580, %v2575
        %v3296 = vpack.c.b16 %v2581, %v2576
        %v3297 = vpack.c.b16 %v2582, %v2577
        %v3298 = vpack.c.b16 %v2583, %v2578
        %v3299 = vpack.c.b16 %v2589, %v2584
        %v3300 = vpack.c.b16 %v2590, %v2585
        %v3301 = vpack.c.b16 %v2591, %v2586
        %v3302 = vpack.c.b16 %v2592, %v2587
        %v3303 = vpack.c.b16 %v2593, %v2588
        %v3304 = vpack.c.b16 %v2599, %v2594
        %v3305 = vpack.c.b16 %v2600, %v2595
        %v3306 = vpack.c.b16 %v2601, %v2596
        %v3307 = vpack.c.b16 %v2602, %v2597
        %v3308 = vpack.c.b16 %v2603, %v2598
        %v3309 = vpack.c.b16 %v2609, %v2604
        %v3310 = vpack.c.b16 %v2610, %v2605
        %v3311 = vpack.c.b16 %v2611, %v2606
        %v3312 = vpack.c.b16 %v2612, %v2607
        %v3313 = vpack.c.b16 %v2613, %v2608
        %v3314 = vpack.c.b16 %v2619, %v2614
        %v3315 = vpack.c.b16 %v2620, %v2615
        %v3316 = vpack.c.b16 %v2621, %v2616
        %v3317 = vpack.c.b16 %v2622, %v2617
        %v3318 = vpack.c.b16 %v2623, %v2618
        %v3319 = vpack.c.b16 %v2629, %v2624
        %v3320 = vpack.c.b16 %v2630, %v2625
        %v3321 = vpack.c.b16 %v2631, %v2626
        %v3322 = vpack.c.b16 %v2632, %v2627
        %v3323 = vpack.c.b16 %v2633, %v2628
        %v3324 = vpack.c.b16 %v2639, %v2634
        %v3325 = vpack.c.b16 %v2640, %v2635
        %v3326 = vpack.c.b16 %v2641, %v2636
        %v3327 = vpack.c.b16 %v2642, %v2637
        %v3328 = vpack.c.b16 %v2643, %v2638
        %v3329 = vpack.c.b16 %v2649, %v2644
        %v3330 = vpack.c.b16 %v2650, %v2645
        %v3331 = vpack.c.b16 %v2651, %v2646
        %v3332 = vpack.c.b16 %v2652, %v2647
        %v3333 = vpack.c.b16 %v2653, %v2648
        %v3334 = vpack.c.b16 %v2659, %v2654
        %v3335 = vpack.c.b16 %v2660, %v2655
        %v3336 = vpack.c.b16 %v2661, %v2656
        %v3337 = vpack.c.b16 %v2662, %v2657
        %v3338 = vpack.c.b16 %v2663, %v2658
        %v3339 = vpack.c.b16 %v2669, %v2664
        %v3340 = vpack.c.b16 %v2670, %v2665
        %v3341 = vpack.c.b16 %v2671, %v2666
        %v3342 = vpack.c.b16 %v2672, %v2667
        %v3343 = vpack.c.b16 %v2673, %v2668
        %v3344 = vpack.c.b16 %v2679, %v2674
        %v3345 = vpack.c.b16 %v2680, %v2675
        %v3346 = vpack.c.b16 %v2681, %v2676
        %v3347 = vpack.c.b16 %v2682, %v2677
        %v3348 = vpack.c.b16 %v2683, %v2678
        %v3349 = vpack.c.b16 %v2689, %v2684
        %v3350 = vpack.c.b16 %v2690, %v2685
        %v3351 = vpack.c.b16 %v2691, %v2686
        %v3352 = vpack.c.b16 %v2692, %v2687
        %v3353 = vpack.c.b16 %v2693, %v2688
        %v3354 = vpack.c.b16 %v2699, %v2694
        %v3355 = vpack.c.b16 %v2700, %v2695
        %v3356 = vpack.c.b16 %v2701, %v2696
        %v3357 = vpack.c.b16 %v2702, %v2697
        %v3358 = vpack.c.b16 %v2703, %v2698
        %v3359 = vpack.c.b16 %v2709, %v2704
        %v3360 = vpack.c.b16 %v2710, %v2705
        %v3361 = vpack.c.b16 %v2711, %v2706
        %v3362 = vpack.c.b16 %v2712, %v2707
        %v3363 = vpack.c.b16 %v2713, %v2708
        %v3364 = vpack.c.b16 %v2719, %v2714
        %v3365 = vpack.c.b16 %v2720, %v2715
        %v3366 = vpack.c.b16 %v2721, %v2716
        %v3367 = vpack.c.b16 %v2722, %v2717
        %v3368 = vpack.c.b16 %v2723, %v2718
        %v3369 = vpack.c.b16 %v2729, %v2724
        %v3370 = vpack.c.b16 %v2730, %v2725
        %v3371 = vpack.c.b16 %v2731, %v2726
        %v3372 = vpack.c.b16 %v2732, %v2727
        %v3373 = vpack.c.b16 %v2733, %v2728
        %v3374 = vpack.c.b16 %v2739, %v2734
        %v3375 = vpack.c.b16 %v2740, %v2735
        %v3376 = vpack.c.b16 %v2741, %v2736
        %v3377 = vpack.c.b16 %v2742, %v2737
        %v3378 = vpack.c.b16 %v2743, %v2738
        %v3379 = vpack.c.b16 %v2749, %v2744
        %v3380 = vpack.c.b16 %v2750, %v2745
        %v3381 = vpack.c.b16 %v2751, %v2746
        %v3382 = vpack.c.b16 %v2752, %v2747
        %v3383 = vpack.c.b16 %v2753, %v2748
        %v3384 = vpack.c.b16 %v2759, %v2754
        %v3385 = vpack.c.b16 %v2760, %v2755
        %v3386 = vpack.c.b16 %v2761, %v2756
        %v3387 = vpack.c.b16 %v2762, %v2757
        %v3388 = vpack.c.b16 %v2763, %v2758
        %v3389 = vpack.c.b16 %v2769, %v2764
        %v3390 = vpack.c.b16 %v2770, %v2765
        %v3391 = vpack.c.b16 %v2771, %v2766
        %v3392 = vpack.c.b16 %v2772, %v2767
        %v3393 = vpack.c.b16 %v2773, %v2768
        %v3394 = vpack.c.b16 %v2779, %v2774
        %v3395 = vpack.c.b16 %v2780, %v2775
        %v3396 = vpack.c.b16 %v2781, %v2776
        %v3397 = vpack.c.b16 %v2782, %v2777
        %v3398 = vpack.c.b16 %v2783, %v2778
        %v3399 = vpack.c.b16 %v2789, %v2784
        %v3400 = vpack.c.b16 %v2790, %v2785
        %v3401 = vpack.c.b16 %v2791, %v2786
        %v3402 = vpack.c.b16 %v2792, %v2787
        %v3403 = vpack.c.b16 %v2793, %v2788
        %v3404 = vpack.c.b16 %v2799, %v2794
        %v3405 = vpack.c.b16 %v2800, %v2795
        %v3406 = vpack.c.b16 %v2801, %v2796
        %v3407 = vpack.c.b16 %v2802, %v2797
        %v3408 = vpack.c.b16 %v2803, %v2798
        %v3409 = vpack.c.b16 %v2809, %v2804
        %v3410 = vpack.c.b16 %v2810, %v2805
        %v3411 = vpack.c.b16 %v2811, %v2806
        %v3412 = vpack.c.b16 %v2812, %v2807
        %v3413 = vpack.c.b16 %v2813, %v2808
        %v3414 = vpack.c.b16 %v2819, %v2814
        %v3415 = vpack.c.b16 %v2820, %v2815
        %v3416 = vpack.c.b16 %v2821, %v2816
        %v3417 = vpack.c.b16 %v2822, %v2817
        %v3418 = vpack.c.b16 %v2823, %v2818
        %v3419 = vpack.c.b16 %v2829, %v2824
        %v3420 = vpack.c.b16 %v2830, %v2825
        %v3421 = vpack.c.b16 %v2831, %v2826
        %v3422 = vpack.c.b16 %v2832, %v2827
        %v3423 = vpack.c.b16 %v2833, %v2828
        %v3424 = vpack.c.b16 %v2839, %v2834
        %v3425 = vpack.c.b16 %v2840, %v2835
        %v3426 = vpack.c.b16 %v2841, %v2836
        %v3427 = vpack.c.b16 %v2842, %v2837
        %v3428 = vpack.c.b16 %v2843, %v2838
        %v3429 = vpack.c.b16 %v2849, %v2844
        %v3430 = vpack.c.b16 %v2850, %v2845
        %v3431 = vpack.c.b16 %v2851, %v2846
        %v3432 = vpack.c.b16 %v2852, %v2847
        %v3433 = vpack.c.b16 %v2853, %v2848
        %v3434 = vpack.c.b16 %v2859, %v2854
        %v3435 = vpack.c.b16 %v2860, %v2855
        %v3436 = vpack.c.b16 %v2861, %v2856
        %v3437 = vpack.c.b16 %v2862, %v2857
        %v3438 = vpack.c.b16 %v2863, %v2858
        %v3439 = vpack.c.b16 %v2869, %v2864
        %v3440 = vpack.c.b16 %v2870, %v2865
        %v3441 = vpack.c.b16 %v2871, %v2866
        %v3442 = vpack.c.b16 %v2872, %v2867
        %v3443 = vpack.c.b16 %v2873, %v2868
        %v3444 = vpack.c.b16 %v2879, %v2874
        %v3445 = vpack.c.b16 %v2880, %v2875
        %v3446 = vpack.c.b16 %v2881, %v2876
        %v3447 = vpack.c.b16 %v2882, %v2877
        %v3448 = vpack.c.b16 %v2883, %v2878
        %v3449 = vpack.c.b16 %v2884, %v2884
        %v3450 = vpack.c.b16 %v2885, %v2885
        %v3451 = vpack.c.b16 %v2886, %v2886
        %v3452 = vpack.c.b16 %v2887, %v2887
        %v3453 = vpack.c.b16 %v2888, %v2888
        %vm4014 = vcmask 64512
        %v4016 = vsel %vm4014, %v386, 0
        %vm4018 = vcmask 1043456
        %v4020 = vsel %vm4018, %v3449, 0
        %v4023 = vsel %vm4018, %v3450, 0
        %v4026 = vsel %vm4018, %v3451, 0
        %v4029 = vsel %vm4018, %v3452, 0
        %v4032 = vsel %vm4018, %v3453, 0
        %4034 = vmatprep.subr.bf16.mxu0 %v2925
        %4035 = vmatpush1.bf16.msra.mxu0 %v2924
        %4036 = vmatprep.subr.bf16.mxu0 %v2920
        %4037 = vmatpush1.bf16.msra.mxu0 %v2919
        %4038 = vmatprep.subr.bf16.mxu0 %v2915
        %4039 = vmatpush1.bf16.msra.mxu0 %v2914
        %4040 = vmatprep.subr.bf16.mxu0 %v2910
        %4041 = vmatpush1.bf16.msra.mxu0 %v2909
        %4042 = vmatprep.subr.bf16.mxu0 %v2905
        %4043 = vmatpush1.bf16.msra.mxu0 %v2904
        %4044 = vmatprep.subr.bf16.mxu0 %v2900
        %4045 = vmatpush1.bf16.msra.mxu0 %v2899
        %4046 = vmatprep.subr.bf16.mxu0 %v2895
        %4047 = vmatpush1.bf16.msra.mxu0 %v2894
        %4048 = vmatprep.subr.bf16.mxu0 %v2890
        %4049 = vmatpush1.bf16.msra.mxu0 %v2889
        %4050 = vmatprep.subr.bf16.mxu0 %v2965
        %4051 = vmatpush2.bf16.msra.mxu0 %v2964
        %4052 = vmatprep.subr.bf16.mxu0 %v2960
        %4053 = vmatpush2.bf16.msra.mxu0 %v2959
        %4054 = vmatprep.subr.bf16.mxu0 %v2955
        %4055 = vmatpush2.bf16.msra.mxu0 %v2954
        %4056 = vmatprep.subr.bf16.mxu0 %v2950
        %4057 = vmatpush2.bf16.msra.mxu0 %v2949
        %4058 = vmatprep.subr.bf16.mxu0 %v2945
        %4059 = vmatpush2.bf16.msra.mxu0 %v2944
        %4060 = vmatprep.subr.bf16.mxu0 %v2940
        %4061 = vmatpush2.bf16.msra.mxu0 %v2939
        %4062 = vmatprep.subr.bf16.mxu0 %v2935
        %4063 = vmatpush2.bf16.msra.mxu0 %v2934
        %4064 = vmatprep.subr.bf16.mxu0 %v2930
        %4065 = vmatpush2.bf16.msra.mxu0 %v2929
        %4066 = vmatprep.mubr.bf16.mxu0 %v373
        %4067 = vmatmul.mubr.bf16.gmra.mxu0 %v372
        %v4068 = vpop.f32.mrf.mxu0
        %v4069 = vadd.f32 %v1067, %v4068
        %v4070 = vpop.f32.mrf.mxu0
        %v4071 = vadd.f32 %v1071, %v4070
        %v4072 = vpop.f32.mrf.mxu0
        %v4073 = vpop.f32.mrf.mxu0
        %4074 = vdwg.mxu0
        %4075 = vmatprep.subr.bf16.mxu0 %v3005
        %4076 = vmatpush1.bf16.msra.mxu0 %v3004
        %4077 = vmatprep.subr.bf16.mxu0 %v3000
        %4078 = vmatpush1.bf16.msra.mxu0 %v2999
        %4079 = vmatprep.subr.bf16.mxu0 %v2995
        %4080 = vmatpush1.bf16.msra.mxu0 %v2994
        %4081 = vmatprep.subr.bf16.mxu0 %v2990
        %4082 = vmatpush1.bf16.msra.mxu0 %v2989
        %4083 = vmatprep.subr.bf16.mxu0 %v2985
        %4084 = vmatpush1.bf16.msra.mxu0 %v2984
        %4085 = vmatprep.subr.bf16.mxu0 %v2980
        %4086 = vmatpush1.bf16.msra.mxu0 %v2979
        %4087 = vmatprep.subr.bf16.mxu0 %v2975
        %4088 = vmatpush1.bf16.msra.mxu0 %v2974
        %4089 = vmatprep.subr.bf16.mxu0 %v2970
        %4090 = vmatpush1.bf16.msra.mxu0 %v2969
        %4091 = vmatprep.subr.bf16.mxu0 %v3045
        %4092 = vmatpush2.bf16.msra.mxu0 %v3044
        %4093 = vmatprep.subr.bf16.mxu0 %v3040
        %4094 = vmatpush2.bf16.msra.mxu0 %v3039
        %4095 = vmatprep.subr.bf16.mxu0 %v3035
        %4096 = vmatpush2.bf16.msra.mxu0 %v3034
        %4097 = vmatprep.subr.bf16.mxu0 %v3030
        %4098 = vmatpush2.bf16.msra.mxu0 %v3029
        %4099 = vmatprep.subr.bf16.mxu0 %v3025
        %4100 = vmatpush2.bf16.msra.mxu0 %v3024
        %4101 = vmatprep.subr.bf16.mxu0 %v3020
        %4102 = vmatpush2.bf16.msra.mxu0 %v3019
        %4103 = vmatprep.subr.bf16.mxu0 %v3015
        %4104 = vmatpush2.bf16.msra.mxu0 %v3014
        %4105 = vmatprep.subr.bf16.mxu0 %v3010
        %4106 = vmatpush2.bf16.msra.mxu0 %v3009
        %4107 = vmatprep.mubr.bf16.mxu0 %v375
        %4108 = vmatmul.mubr.bf16.gmra.mxu0 %v374
        %v4109 = vpop.f32.mrf.mxu0
        %v4110 = vadd.f32 %v4069, %v4109
        %v4111 = vpop.f32.mrf.mxu0
        %v4112 = vadd.f32 %v4071, %v4111
        %v4113 = vpop.f32.mrf.mxu0
        %v4114 = vpop.f32.mrf.mxu0
        %4115 = vdwg.mxu0
        %4116 = vmatprep.subr.bf16.mxu0 %v3085
        %4117 = vmatpush1.bf16.msra.mxu0 %v3084
        %4118 = vmatprep.subr.bf16.mxu0 %v3080
        %4119 = vmatpush1.bf16.msra.mxu0 %v3079
        %4120 = vmatprep.subr.bf16.mxu0 %v3075
        %4121 = vmatpush1.bf16.msra.mxu0 %v3074
        %4122 = vmatprep.subr.bf16.mxu0 %v3070
        %4123 = vmatpush1.bf16.msra.mxu0 %v3069
        %4124 = vmatprep.subr.bf16.mxu0 %v3065
        %4125 = vmatpush1.bf16.msra.mxu0 %v3064
        %4126 = vmatprep.subr.bf16.mxu0 %v3060
        %4127 = vmatpush1.bf16.msra.mxu0 %v3059
        %4128 = vmatprep.subr.bf16.mxu0 %v3055
        %4129 = vmatpush1.bf16.msra.mxu0 %v3054
        %4130 = vmatprep.subr.bf16.mxu0 %v3050
        %4131 = vmatpush1.bf16.msra.mxu0 %v3049
        %4132 = vmatprep.subr.bf16.mxu0 %v3125
        %4133 = vmatpush2.bf16.msra.mxu0 %v3124
        %4134 = vmatprep.subr.bf16.mxu0 %v3120
        %4135 = vmatpush2.bf16.msra.mxu0 %v3119
        %4136 = vmatprep.subr.bf16.mxu0 %v3115
        %4137 = vmatpush2.bf16.msra.mxu0 %v3114
        %4138 = vmatprep.subr.bf16.mxu0 %v3110
        %4139 = vmatpush2.bf16.msra.mxu0 %v3109
        %4140 = vmatprep.subr.bf16.mxu0 %v3105
        %4141 = vmatpush2.bf16.msra.mxu0 %v3104
        %4142 = vmatprep.subr.bf16.mxu0 %v3100
        %4143 = vmatpush2.bf16.msra.mxu0 %v3099
        %4144 = vmatprep.subr.bf16.mxu0 %v3095
        %4145 = vmatpush2.bf16.msra.mxu0 %v3094
        %4146 = vmatprep.subr.bf16.mxu0 %v3090
        %4147 = vmatpush2.bf16.msra.mxu0 %v3089
        %4148 = vmatprep.mubr.bf16.mxu0 %v377
        %4149 = vmatmul.mubr.bf16.gmra.mxu0 %v376
        %v4150 = vpop.f32.mrf.mxu0
        %v4151 = vadd.f32 %v4110, %v4150
        %v4152 = vpop.f32.mrf.mxu0
        %v4153 = vadd.f32 %v4112, %v4152
        %v4154 = vpop.f32.mrf.mxu0
        %v4155 = vpop.f32.mrf.mxu0
        %4156 = vdwg.mxu0
        %4157 = vmatprep.subr.bf16.mxu0 %v3165
        %4158 = vmatpush1.bf16.msra.mxu0 %v3164
        %4159 = vmatprep.subr.bf16.mxu0 %v3160
        %4160 = vmatpush1.bf16.msra.mxu0 %v3159
        %4161 = vmatprep.subr.bf16.mxu0 %v3155
        %4162 = vmatpush1.bf16.msra.mxu0 %v3154
        %4163 = vmatprep.subr.bf16.mxu0 %v3150
        %4164 = vmatpush1.bf16.msra.mxu0 %v3149
        %4165 = vmatprep.subr.bf16.mxu0 %v3145
        %4166 = vmatpush1.bf16.msra.mxu0 %v3144
        %4167 = vmatprep.subr.bf16.mxu0 %v3140
        %4168 = vmatpush1.bf16.msra.mxu0 %v3139
        %4169 = vmatprep.subr.bf16.mxu0 %v3135
        %4170 = vmatpush1.bf16.msra.mxu0 %v3134
        %4171 = vmatprep.subr.bf16.mxu0 %v3130
        %4172 = vmatpush1.bf16.msra.mxu0 %v3129
        %4173 = vmatprep.subr.bf16.mxu0 %v3205
        %4174 = vmatpush2.bf16.msra.mxu0 %v3204
        %4175 = vmatprep.subr.bf16.mxu0 %v3200
        %4176 = vmatpush2.bf16.msra.mxu0 %v3199
        %4177 = vmatprep.subr.bf16.mxu0 %v3195
        %4178 = vmatpush2.bf16.msra.mxu0 %v3194
        %4179 = vmatprep.subr.bf16.mxu0 %v3190
        %4180 = vmatpush2.bf16.msra.mxu0 %v3189
        %4181 = vmatprep.subr.bf16.mxu0 %v3185
        %4182 = vmatpush2.bf16.msra.mxu0 %v3184
        %4183 = vmatprep.subr.bf16.mxu0 %v3180
        %4184 = vmatpush2.bf16.msra.mxu0 %v3179
        %4185 = vmatprep.subr.bf16.mxu0 %v3175
        %4186 = vmatpush2.bf16.msra.mxu0 %v3174
        %4187 = vmatprep.subr.bf16.mxu0 %v3170
        %4188 = vmatpush2.bf16.msra.mxu0 %v3169
        %4189 = vmatprep.mubr.bf16.mxu0 %v379
        %4190 = vmatmul.mubr.bf16.gmra.mxu0 %v378
        %v4191 = vpop.f32.mrf.mxu0
        %v4192 = vadd.f32 %v4151, %v4191
        %v4193 = vpop.f32.mrf.mxu0
        %v4194 = vadd.f32 %v4153, %v4193
        %v4195 = vpop.f32.mrf.mxu0
        %v4196 = vpop.f32.mrf.mxu0
        %4197 = vdwg.mxu0
        %4198 = vmatprep.subr.bf16.mxu0 %v3245
        %4199 = vmatpush1.bf16.msra.mxu0 %v3244
        %4200 = vmatprep.subr.bf16.mxu0 %v3240
        %4201 = vmatpush1.bf16.msra.mxu0 %v3239
        %4202 = vmatprep.subr.bf16.mxu0 %v3235
        %4203 = vmatpush1.bf16.msra.mxu0 %v3234
        %4204 = vmatprep.subr.bf16.mxu0 %v3230
        %4205 = vmatpush1.bf16.msra.mxu0 %v3229
        %4206 = vmatprep.subr.bf16.mxu0 %v3225
        %4207 = vmatpush1.bf16.msra.mxu0 %v3224
        %4208 = vmatprep.subr.bf16.mxu0 %v3220
        %4209 = vmatpush1.bf16.msra.mxu0 %v3219
        %4210 = vmatprep.subr.bf16.mxu0 %v3215
        %4211 = vmatpush1.bf16.msra.mxu0 %v3214
        %4212 = vmatprep.subr.bf16.mxu0 %v3210
        %4213 = vmatpush1.bf16.msra.mxu0 %v3209
        %4214 = vmatprep.subr.bf16.mxu0 %v3285
        %4215 = vmatpush2.bf16.msra.mxu0 %v3284
        %4216 = vmatprep.subr.bf16.mxu0 %v3280
        %4217 = vmatpush2.bf16.msra.mxu0 %v3279
        %4218 = vmatprep.subr.bf16.mxu0 %v3275
        %4219 = vmatpush2.bf16.msra.mxu0 %v3274
        %4220 = vmatprep.subr.bf16.mxu0 %v3270
        %4221 = vmatpush2.bf16.msra.mxu0 %v3269
        %4222 = vmatprep.subr.bf16.mxu0 %v3265
        %4223 = vmatpush2.bf16.msra.mxu0 %v3264
        %4224 = vmatprep.subr.bf16.mxu0 %v3260
        %4225 = vmatpush2.bf16.msra.mxu0 %v3259
        %4226 = vmatprep.subr.bf16.mxu0 %v3255
        %4227 = vmatpush2.bf16.msra.mxu0 %v3254
        %4228 = vmatprep.subr.bf16.mxu0 %v3250
        %4229 = vmatpush2.bf16.msra.mxu0 %v3249
        %4230 = vmatprep.mubr.bf16.mxu0 %v381
        %4231 = vmatmul.mubr.bf16.gmra.mxu0 %v380
        %v4232 = vpop.f32.mrf.mxu0
        %v4233 = vadd.f32 %v4192, %v4232
        %v4234 = vpop.f32.mrf.mxu0
        %v4235 = vadd.f32 %v4194, %v4234
        %v4236 = vpop.f32.mrf.mxu0
        %v4237 = vpop.f32.mrf.mxu0
        %4238 = vdwg.mxu0
        %4239 = vmatprep.subr.bf16.mxu0 %v3325
        %4240 = vmatpush1.bf16.msra.mxu0 %v3324
        %4241 = vmatprep.subr.bf16.mxu0 %v3320
        %4242 = vmatpush1.bf16.msra.mxu0 %v3319
        %4243 = vmatprep.subr.bf16.mxu0 %v3315
        %4244 = vmatpush1.bf16.msra.mxu0 %v3314
        %4245 = vmatprep.subr.bf16.mxu0 %v3310
        %4246 = vmatpush1.bf16.msra.mxu0 %v3309
        %4247 = vmatprep.subr.bf16.mxu0 %v3305
        %4248 = vmatpush1.bf16.msra.mxu0 %v3304
        %4249 = vmatprep.subr.bf16.mxu0 %v3300
        %4250 = vmatpush1.bf16.msra.mxu0 %v3299
        %4251 = vmatprep.subr.bf16.mxu0 %v3295
        %4252 = vmatpush1.bf16.msra.mxu0 %v3294
        %4253 = vmatprep.subr.bf16.mxu0 %v3290
        %4254 = vmatpush1.bf16.msra.mxu0 %v3289
        %4255 = vmatprep.subr.bf16.mxu0 %v3365
        %4256 = vmatpush2.bf16.msra.mxu0 %v3364
        %4257 = vmatprep.subr.bf16.mxu0 %v3360
        %4258 = vmatpush2.bf16.msra.mxu0 %v3359
        %4259 = vmatprep.subr.bf16.mxu0 %v3355
        %4260 = vmatpush2.bf16.msra.mxu0 %v3354
        %4261 = vmatprep.subr.bf16.mxu0 %v3350
        %4262 = vmatpush2.bf16.msra.mxu0 %v3349
        %4263 = vmatprep.subr.bf16.mxu0 %v3345
        %4264 = vmatpush2.bf16.msra.mxu0 %v3344
        %4265 = vmatprep.subr.bf16.mxu0 %v3340
        %4266 = vmatpush2.bf16.msra.mxu0 %v3339
        %4267 = vmatprep.subr.bf16.mxu0 %v3335
        %4268 = vmatpush2.bf16.msra.mxu0 %v3334
        %4269 = vmatprep.subr.bf16.mxu0 %v3330
        %4270 = vmatpush2.bf16.msra.mxu0 %v3329
        %4271 = vmatprep.mubr.bf16.mxu0 %v383
        %4272 = vmatmul.mubr.bf16.gmra.mxu0 %v382
        %v4273 = vpop.f32.mrf.mxu0
        %v4274 = vadd.f32 %v4233, %v4273
        %v4275 = vpop.f32.mrf.mxu0
        %v4276 = vadd.f32 %v4235, %v4275
        %v4277 = vpop.f32.mrf.mxu0
        %v4278 = vpop.f32.mrf.mxu0
        %4279 = vdwg.mxu0
        %4280 = vmatprep.subr.bf16.mxu0 %v3405
        %4281 = vmatpush1.bf16.msra.mxu0 %v3404
        %4282 = vmatprep.subr.bf16.mxu0 %v3400
        %4283 = vmatpush1.bf16.msra.mxu0 %v3399
        %4284 = vmatprep.subr.bf16.mxu0 %v3395
        %4285 = vmatpush1.bf16.msra.mxu0 %v3394
        %4286 = vmatprep.subr.bf16.mxu0 %v3390
        %4287 = vmatpush1.bf16.msra.mxu0 %v3389
        %4288 = vmatprep.subr.bf16.mxu0 %v3385
        %4289 = vmatpush1.bf16.msra.mxu0 %v3384
        %4290 = vmatprep.subr.bf16.mxu0 %v3380
        %4291 = vmatpush1.bf16.msra.mxu0 %v3379
        %4292 = vmatprep.subr.bf16.mxu0 %v3375
        %4293 = vmatpush1.bf16.msra.mxu0 %v3374
        %4294 = vmatprep.subr.bf16.mxu0 %v3370
        %4295 = vmatpush1.bf16.msra.mxu0 %v3369
        %4296 = vmatprep.subr.bf16.mxu0 %v3445
        %4297 = vmatpush2.bf16.msra.mxu0 %v3444
        %4298 = vmatprep.subr.bf16.mxu0 %v3440
        %4299 = vmatpush2.bf16.msra.mxu0 %v3439
        %4300 = vmatprep.subr.bf16.mxu0 %v3435
        %4301 = vmatpush2.bf16.msra.mxu0 %v3434
        %4302 = vmatprep.subr.bf16.mxu0 %v3430
        %4303 = vmatpush2.bf16.msra.mxu0 %v3429
        %4304 = vmatprep.subr.bf16.mxu0 %v3425
        %4305 = vmatpush2.bf16.msra.mxu0 %v3424
        %4306 = vmatprep.subr.bf16.mxu0 %v3420
        %4307 = vmatpush2.bf16.msra.mxu0 %v3419
        %4308 = vmatprep.subr.bf16.mxu0 %v3415
        %4309 = vmatpush2.bf16.msra.mxu0 %v3414
        %4310 = vmatprep.subr.bf16.mxu0 %v3410
        %4311 = vmatpush2.bf16.msra.mxu0 %v3409
        %4312 = vmatprep.mubr.bf16.mxu0 %v385
        %4313 = vmatmul.mubr.bf16.gmra.mxu0 %v384
        %v4314 = vpop.f32.mrf.mxu0
        %v4315 = vadd.f32 %v4274, %v4314
        %v4316 = vpop.f32.mrf.mxu0
        %v4317 = vadd.f32 %v4276, %v4316
        %v4318 = vpop.f32.mrf.mxu0
        %v4319 = vpop.f32.mrf.mxu0
        %4320 = vdwg.mxu0
        %4321 = vmatprep.subr.bf16.mxu0 0
        %4322 = vmatpush1.bf16.msra.mxu0 0
        %4323 = vmatprep.subr.bf16.mxu0 0
        %4324 = vmatpush1.bf16.msra.mxu0 0
        %4325 = vmatprep.subr.bf16.mxu0 0
        %4326 = vmatpush1.bf16.msra.mxu0 0
        %4327 = vmatprep.subr.bf16.mxu0 0
        %4328 = vmatpush1.bf16.msra.mxu0 0
        %4329 = vmatprep.subr.bf16.mxu0 0
        %4330 = vmatpush1.bf16.msra.mxu0 0
        %4331 = vmatprep.subr.bf16.mxu0 0
        %4332 = vmatpush1.bf16.msra.mxu0 0
        %4333 = vmatprep.subr.bf16.mxu0 0
        %4334 = vmatpush1.bf16.msra.mxu0 0
        %4335 = vmatprep.subr.bf16.mxu0 %v4023
        %4336 = vmatpush1.bf16.msra.mxu0 %v4020
        %4337 = vmatprep.subr.bf16.mxu0 0
        %4338 = vmatpush2.bf16.msra.mxu0 0
        %4339 = vmatprep.subr.bf16.mxu0 0
        %4340 = vmatpush2.bf16.msra.mxu0 0
        %4341 = vmatprep.subr.bf16.mxu0 0
        %4342 = vmatpush2.bf16.msra.mxu0 0
        %4343 = vmatprep.subr.bf16.mxu0 0
        %4344 = vmatpush2.bf16.msra.mxu0 0
        %4345 = vmatprep.subr.bf16.mxu0 0
        %4346 = vmatpush2.bf16.msra.mxu0 0
        %4347 = vmatprep.subr.bf16.mxu0 0
        %4348 = vmatpush2.bf16.msra.mxu0 0
        %4349 = vmatprep.subr.bf16.mxu0 0
        %4350 = vmatpush2.bf16.msra.mxu0 0
        %4351 = vmatprep.subr.bf16.mxu0 0
        %4352 = vmatpush2.bf16.msra.mxu0 0
        %4353 = vmatprep.mubr.bf16.mxu0 0
        %4354 = vmatmul.mubr.bf16.gmra.mxu0 %v4016
        %v4355 = vpop.f32.mrf.mxu0
        %v4356 = vadd.f32 %v4315, %v4355
        %v4357 = vpop.f32.mrf.mxu0
        %v4358 = vadd.f32 %v4317, %v4357
        %v4359 = vpop.f32.mrf.mxu0
        %v4360 = vpop.f32.mrf.mxu0
        %4361 = vdwg.mxu0
        %4362 = vmatprep.subr.bf16.mxu0 %v2927
        %4363 = vmatpush1.bf16.msra.mxu0 %v2926
        %4364 = vmatprep.subr.bf16.mxu0 %v2922
        %4365 = vmatpush1.bf16.msra.mxu0 %v2921
        %4366 = vmatprep.subr.bf16.mxu0 %v2917
        %4367 = vmatpush1.bf16.msra.mxu0 %v2916
        %4368 = vmatprep.subr.bf16.mxu0 %v2912
        %4369 = vmatpush1.bf16.msra.mxu0 %v2911
        %4370 = vmatprep.subr.bf16.mxu0 %v2907
        %4371 = vmatpush1.bf16.msra.mxu0 %v2906
        %4372 = vmatprep.subr.bf16.mxu0 %v2902
        %4373 = vmatpush1.bf16.msra.mxu0 %v2901
        %4374 = vmatprep.subr.bf16.mxu0 %v2897
        %4375 = vmatpush1.bf16.msra.mxu0 %v2896
        %4376 = vmatprep.subr.bf16.mxu0 %v2892
        %4377 = vmatpush1.bf16.msra.mxu0 %v2891
        %4378 = vmatprep.subr.bf16.mxu0 %v2967
        %4379 = vmatpush2.bf16.msra.mxu0 %v2966
        %4380 = vmatprep.subr.bf16.mxu0 %v2962
        %4381 = vmatpush2.bf16.msra.mxu0 %v2961
        %4382 = vmatprep.subr.bf16.mxu0 %v2957
        %4383 = vmatpush2.bf16.msra.mxu0 %v2956
        %4384 = vmatprep.subr.bf16.mxu0 %v2952
        %4385 = vmatpush2.bf16.msra.mxu0 %v2951
        %4386 = vmatprep.subr.bf16.mxu0 %v2947
        %4387 = vmatpush2.bf16.msra.mxu0 %v2946
        %4388 = vmatprep.subr.bf16.mxu0 %v2942
        %4389 = vmatpush2.bf16.msra.mxu0 %v2941
        %4390 = vmatprep.subr.bf16.mxu0 %v2937
        %4391 = vmatpush2.bf16.msra.mxu0 %v2936
        %4392 = vmatprep.subr.bf16.mxu0 %v2932
        %4393 = vmatpush2.bf16.msra.mxu0 %v2931
        %4394 = vmatprep.mubr.bf16.mxu0 %v373
        %4395 = vmatmul.mubr.bf16.gmra.mxu0 %v372
        %v4396 = vpop.f32.mrf.mxu0
        %v4397 = vadd.f32 %v1075, %v4396
        %v4398 = vpop.f32.mrf.mxu0
        %v4399 = vadd.f32 %v1079, %v4398
        %v4400 = vpop.f32.mrf.mxu0
        %v4401 = vpop.f32.mrf.mxu0
        %4402 = vdwg.mxu0
        %4403 = vmatprep.subr.bf16.mxu0 %v3007
        %4404 = vmatpush1.bf16.msra.mxu0 %v3006
        %4405 = vmatprep.subr.bf16.mxu0 %v3002
        %4406 = vmatpush1.bf16.msra.mxu0 %v3001
        %4407 = vmatprep.subr.bf16.mxu0 %v2997
        %4408 = vmatpush1.bf16.msra.mxu0 %v2996
        %4409 = vmatprep.subr.bf16.mxu0 %v2992
        %4410 = vmatpush1.bf16.msra.mxu0 %v2991
        %4411 = vmatprep.subr.bf16.mxu0 %v2987
        %4412 = vmatpush1.bf16.msra.mxu0 %v2986
        %4413 = vmatprep.subr.bf16.mxu0 %v2982
        %4414 = vmatpush1.bf16.msra.mxu0 %v2981
        %4415 = vmatprep.subr.bf16.mxu0 %v2977
        %4416 = vmatpush1.bf16.msra.mxu0 %v2976
        %4417 = vmatprep.subr.bf16.mxu0 %v2972
        %4418 = vmatpush1.bf16.msra.mxu0 %v2971
        %4419 = vmatprep.subr.bf16.mxu0 %v3047
        %4420 = vmatpush2.bf16.msra.mxu0 %v3046
        %4421 = vmatprep.subr.bf16.mxu0 %v3042
        %4422 = vmatpush2.bf16.msra.mxu0 %v3041
        %4423 = vmatprep.subr.bf16.mxu0 %v3037
        %4424 = vmatpush2.bf16.msra.mxu0 %v3036
        %4425 = vmatprep.subr.bf16.mxu0 %v3032
        %4426 = vmatpush2.bf16.msra.mxu0 %v3031
        %4427 = vmatprep.subr.bf16.mxu0 %v3027
        %4428 = vmatpush2.bf16.msra.mxu0 %v3026
        %4429 = vmatprep.subr.bf16.mxu0 %v3022
        %4430 = vmatpush2.bf16.msra.mxu0 %v3021
        %4431 = vmatprep.subr.bf16.mxu0 %v3017
        %4432 = vmatpush2.bf16.msra.mxu0 %v3016
        %4433 = vmatprep.subr.bf16.mxu0 %v3012
        %4434 = vmatpush2.bf16.msra.mxu0 %v3011
        %4435 = vmatprep.mubr.bf16.mxu0 %v375
        %4436 = vmatmul.mubr.bf16.gmra.mxu0 %v374
        %v4437 = vpop.f32.mrf.mxu0
        %v4438 = vadd.f32 %v4397, %v4437
        %v4439 = vpop.f32.mrf.mxu0
        %v4440 = vadd.f32 %v4399, %v4439
        %v4441 = vpop.f32.mrf.mxu0
        %v4442 = vpop.f32.mrf.mxu0
        %4443 = vdwg.mxu0
        %4444 = vmatprep.subr.bf16.mxu0 %v3087
        %4445 = vmatpush1.bf16.msra.mxu0 %v3086
        %4446 = vmatprep.subr.bf16.mxu0 %v3082
        %4447 = vmatpush1.bf16.msra.mxu0 %v3081
        %4448 = vmatprep.subr.bf16.mxu0 %v3077
        %4449 = vmatpush1.bf16.msra.mxu0 %v3076
        %4450 = vmatprep.subr.bf16.mxu0 %v3072
        %4451 = vmatpush1.bf16.msra.mxu0 %v3071
        %4452 = vmatprep.subr.bf16.mxu0 %v3067
        %4453 = vmatpush1.bf16.msra.mxu0 %v3066
        %4454 = vmatprep.subr.bf16.mxu0 %v3062
        %4455 = vmatpush1.bf16.msra.mxu0 %v3061
        %4456 = vmatprep.subr.bf16.mxu0 %v3057
        %4457 = vmatpush1.bf16.msra.mxu0 %v3056
        %4458 = vmatprep.subr.bf16.mxu0 %v3052
        %4459 = vmatpush1.bf16.msra.mxu0 %v3051
        %4460 = vmatprep.subr.bf16.mxu0 %v3127
        %4461 = vmatpush2.bf16.msra.mxu0 %v3126
        %4462 = vmatprep.subr.bf16.mxu0 %v3122
        %4463 = vmatpush2.bf16.msra.mxu0 %v3121
        %4464 = vmatprep.subr.bf16.mxu0 %v3117
        %4465 = vmatpush2.bf16.msra.mxu0 %v3116
        %4466 = vmatprep.subr.bf16.mxu0 %v3112
        %4467 = vmatpush2.bf16.msra.mxu0 %v3111
        %4468 = vmatprep.subr.bf16.mxu0 %v3107
        %4469 = vmatpush2.bf16.msra.mxu0 %v3106
        %4470 = vmatprep.subr.bf16.mxu0 %v3102
        %4471 = vmatpush2.bf16.msra.mxu0 %v3101
        %4472 = vmatprep.subr.bf16.mxu0 %v3097
        %4473 = vmatpush2.bf16.msra.mxu0 %v3096
        %4474 = vmatprep.subr.bf16.mxu0 %v3092
        %4475 = vmatpush2.bf16.msra.mxu0 %v3091
        %4476 = vmatprep.mubr.bf16.mxu0 %v377
        %4477 = vmatmul.mubr.bf16.gmra.mxu0 %v376
        %v4478 = vpop.f32.mrf.mxu0
        %v4479 = vadd.f32 %v4438, %v4478
        %v4480 = vpop.f32.mrf.mxu0
        %v4481 = vadd.f32 %v4440, %v4480
        %v4482 = vpop.f32.mrf.mxu0
        %v4483 = vpop.f32.mrf.mxu0
        %4484 = vdwg.mxu0
        %4485 = vmatprep.subr.bf16.mxu0 %v3167
        %4486 = vmatpush1.bf16.msra.mxu0 %v3166
        %4487 = vmatprep.subr.bf16.mxu0 %v3162
        %4488 = vmatpush1.bf16.msra.mxu0 %v3161
        %4489 = vmatprep.subr.bf16.mxu0 %v3157
        %4490 = vmatpush1.bf16.msra.mxu0 %v3156
        %4491 = vmatprep.subr.bf16.mxu0 %v3152
        %4492 = vmatpush1.bf16.msra.mxu0 %v3151
        %4493 = vmatprep.subr.bf16.mxu0 %v3147
        %4494 = vmatpush1.bf16.msra.mxu0 %v3146
        %4495 = vmatprep.subr.bf16.mxu0 %v3142
        %4496 = vmatpush1.bf16.msra.mxu0 %v3141
        %4497 = vmatprep.subr.bf16.mxu0 %v3137
        %4498 = vmatpush1.bf16.msra.mxu0 %v3136
        %4499 = vmatprep.subr.bf16.mxu0 %v3132
        %4500 = vmatpush1.bf16.msra.mxu0 %v3131
        %4501 = vmatprep.subr.bf16.mxu0 %v3207
        %4502 = vmatpush2.bf16.msra.mxu0 %v3206
        %4503 = vmatprep.subr.bf16.mxu0 %v3202
        %4504 = vmatpush2.bf16.msra.mxu0 %v3201
        %4505 = vmatprep.subr.bf16.mxu0 %v3197
        %4506 = vmatpush2.bf16.msra.mxu0 %v3196
        %4507 = vmatprep.subr.bf16.mxu0 %v3192
        %4508 = vmatpush2.bf16.msra.mxu0 %v3191
        %4509 = vmatprep.subr.bf16.mxu0 %v3187
        %4510 = vmatpush2.bf16.msra.mxu0 %v3186
        %4511 = vmatprep.subr.bf16.mxu0 %v3182
        %4512 = vmatpush2.bf16.msra.mxu0 %v3181
        %4513 = vmatprep.subr.bf16.mxu0 %v3177
        %4514 = vmatpush2.bf16.msra.mxu0 %v3176
        %4515 = vmatprep.subr.bf16.mxu0 %v3172
        %4516 = vmatpush2.bf16.msra.mxu0 %v3171
        %4517 = vmatprep.mubr.bf16.mxu0 %v379
        %4518 = vmatmul.mubr.bf16.gmra.mxu0 %v378
        %v4519 = vpop.f32.mrf.mxu0
        %v4520 = vadd.f32 %v4479, %v4519
        %v4521 = vpop.f32.mrf.mxu0
        %v4522 = vadd.f32 %v4481, %v4521
        %v4523 = vpop.f32.mrf.mxu0
        %v4524 = vpop.f32.mrf.mxu0
        %4525 = vdwg.mxu0
        %4526 = vmatprep.subr.bf16.mxu0 %v3247
        %4527 = vmatpush1.bf16.msra.mxu0 %v3246
        %4528 = vmatprep.subr.bf16.mxu0 %v3242
        %4529 = vmatpush1.bf16.msra.mxu0 %v3241
        %4530 = vmatprep.subr.bf16.mxu0 %v3237
        %4531 = vmatpush1.bf16.msra.mxu0 %v3236
        %4532 = vmatprep.subr.bf16.mxu0 %v3232
        %4533 = vmatpush1.bf16.msra.mxu0 %v3231
        %4534 = vmatprep.subr.bf16.mxu0 %v3227
        %4535 = vmatpush1.bf16.msra.mxu0 %v3226
        %4536 = vmatprep.subr.bf16.mxu0 %v3222
        %4537 = vmatpush1.bf16.msra.mxu0 %v3221
        %4538 = vmatprep.subr.bf16.mxu0 %v3217
        %4539 = vmatpush1.bf16.msra.mxu0 %v3216
        %4540 = vmatprep.subr.bf16.mxu0 %v3212
        %4541 = vmatpush1.bf16.msra.mxu0 %v3211
        %4542 = vmatprep.subr.bf16.mxu0 %v3287
        %4543 = vmatpush2.bf16.msra.mxu0 %v3286
        %4544 = vmatprep.subr.bf16.mxu0 %v3282
        %4545 = vmatpush2.bf16.msra.mxu0 %v3281
        %4546 = vmatprep.subr.bf16.mxu0 %v3277
        %4547 = vmatpush2.bf16.msra.mxu0 %v3276
        %4548 = vmatprep.subr.bf16.mxu0 %v3272
        %4549 = vmatpush2.bf16.msra.mxu0 %v3271
        %4550 = vmatprep.subr.bf16.mxu0 %v3267
        %4551 = vmatpush2.bf16.msra.mxu0 %v3266
        %4552 = vmatprep.subr.bf16.mxu0 %v3262
        %4553 = vmatpush2.bf16.msra.mxu0 %v3261
        %4554 = vmatprep.subr.bf16.mxu0 %v3257
        %4555 = vmatpush2.bf16.msra.mxu0 %v3256
        %4556 = vmatprep.subr.bf16.mxu0 %v3252
        %4557 = vmatpush2.bf16.msra.mxu0 %v3251
        %4558 = vmatprep.mubr.bf16.mxu0 %v381
        %4559 = vmatmul.mubr.bf16.gmra.mxu0 %v380
        %v4560 = vpop.f32.mrf.mxu0
        %v4561 = vadd.f32 %v4520, %v4560
        %v4562 = vpop.f32.mrf.mxu0
        %v4563 = vadd.f32 %v4522, %v4562
        %v4564 = vpop.f32.mrf.mxu0
        %v4565 = vpop.f32.mrf.mxu0
        %4566 = vdwg.mxu0
        %4567 = vmatprep.subr.bf16.mxu0 %v3327
        %4568 = vmatpush1.bf16.msra.mxu0 %v3326
        %4569 = vmatprep.subr.bf16.mxu0 %v3322
        %4570 = vmatpush1.bf16.msra.mxu0 %v3321
        %4571 = vmatprep.subr.bf16.mxu0 %v3317
        %4572 = vmatpush1.bf16.msra.mxu0 %v3316
        %4573 = vmatprep.subr.bf16.mxu0 %v3312
        %4574 = vmatpush1.bf16.msra.mxu0 %v3311
        %4575 = vmatprep.subr.bf16.mxu0 %v3307
        %4576 = vmatpush1.bf16.msra.mxu0 %v3306
        %4577 = vmatprep.subr.bf16.mxu0 %v3302
        %4578 = vmatpush1.bf16.msra.mxu0 %v3301
        %4579 = vmatprep.subr.bf16.mxu0 %v3297
        %4580 = vmatpush1.bf16.msra.mxu0 %v3296
        %4581 = vmatprep.subr.bf16.mxu0 %v3292
        %4582 = vmatpush1.bf16.msra.mxu0 %v3291
        %4583 = vmatprep.subr.bf16.mxu0 %v3367
        %4584 = vmatpush2.bf16.msra.mxu0 %v3366
        %4585 = vmatprep.subr.bf16.mxu0 %v3362
        %4586 = vmatpush2.bf16.msra.mxu0 %v3361
        %4587 = vmatprep.subr.bf16.mxu0 %v3357
        %4588 = vmatpush2.bf16.msra.mxu0 %v3356
        %4589 = vmatprep.subr.bf16.mxu0 %v3352
        %4590 = vmatpush2.bf16.msra.mxu0 %v3351
        %4591 = vmatprep.subr.bf16.mxu0 %v3347
        %4592 = vmatpush2.bf16.msra.mxu0 %v3346
        %4593 = vmatprep.subr.bf16.mxu0 %v3342
        %4594 = vmatpush2.bf16.msra.mxu0 %v3341
        %4595 = vmatprep.subr.bf16.mxu0 %v3337
        %4596 = vmatpush2.bf16.msra.mxu0 %v3336
        %4597 = vmatprep.subr.bf16.mxu0 %v3332
        %4598 = vmatpush2.bf16.msra.mxu0 %v3331
        %4599 = vmatprep.mubr.bf16.mxu0 %v383
        %4600 = vmatmul.mubr.bf16.gmra.mxu0 %v382
        %v4601 = vpop.f32.mrf.mxu0
        %v4602 = vadd.f32 %v4561, %v4601
        %v4603 = vpop.f32.mrf.mxu0
        %v4604 = vadd.f32 %v4563, %v4603
        %v4605 = vpop.f32.mrf.mxu0
        %v4606 = vpop.f32.mrf.mxu0
        %4607 = vdwg.mxu0
        %4608 = vmatprep.subr.bf16.mxu0 %v3407
        %4609 = vmatpush1.bf16.msra.mxu0 %v3406
        %4610 = vmatprep.subr.bf16.mxu0 %v3402
        %4611 = vmatpush1.bf16.msra.mxu0 %v3401
        %4612 = vmatprep.subr.bf16.mxu0 %v3397
        %4613 = vmatpush1.bf16.msra.mxu0 %v3396
        %4614 = vmatprep.subr.bf16.mxu0 %v3392
        %4615 = vmatpush1.bf16.msra.mxu0 %v3391
        %4616 = vmatprep.subr.bf16.mxu0 %v3387
        %4617 = vmatpush1.bf16.msra.mxu0 %v3386
        %4618 = vmatprep.subr.bf16.mxu0 %v3382
        %4619 = vmatpush1.bf16.msra.mxu0 %v3381
        %4620 = vmatprep.subr.bf16.mxu0 %v3377
        %4621 = vmatpush1.bf16.msra.mxu0 %v3376
        %4622 = vmatprep.subr.bf16.mxu0 %v3372
        %4623 = vmatpush1.bf16.msra.mxu0 %v3371
        %4624 = vmatprep.subr.bf16.mxu0 %v3447
        %4625 = vmatpush2.bf16.msra.mxu0 %v3446
        %4626 = vmatprep.subr.bf16.mxu0 %v3442
        %4627 = vmatpush2.bf16.msra.mxu0 %v3441
        %4628 = vmatprep.subr.bf16.mxu0 %v3437
        %4629 = vmatpush2.bf16.msra.mxu0 %v3436
        %4630 = vmatprep.subr.bf16.mxu0 %v3432
        %4631 = vmatpush2.bf16.msra.mxu0 %v3431
        %4632 = vmatprep.subr.bf16.mxu0 %v3427
        %4633 = vmatpush2.bf16.msra.mxu0 %v3426
        %4634 = vmatprep.subr.bf16.mxu0 %v3422
        %4635 = vmatpush2.bf16.msra.mxu0 %v3421
        %4636 = vmatprep.subr.bf16.mxu0 %v3417
        %4637 = vmatpush2.bf16.msra.mxu0 %v3416
        %4638 = vmatprep.subr.bf16.mxu0 %v3412
        %4639 = vmatpush2.bf16.msra.mxu0 %v3411
        %4640 = vmatprep.mubr.bf16.mxu0 %v385
        %4641 = vmatmul.mubr.bf16.gmra.mxu0 %v384
        %v4642 = vpop.f32.mrf.mxu0
        %v4643 = vadd.f32 %v4602, %v4642
        %v4644 = vpop.f32.mrf.mxu0
        %v4645 = vadd.f32 %v4604, %v4644
        %v4646 = vpop.f32.mrf.mxu0
        %v4647 = vpop.f32.mrf.mxu0
        %4648 = vdwg.mxu0
        %4649 = vmatprep.subr.bf16.mxu0 0
        %4650 = vmatpush1.bf16.msra.mxu0 0
        %4651 = vmatprep.subr.bf16.mxu0 0
        %4652 = vmatpush1.bf16.msra.mxu0 0
        %4653 = vmatprep.subr.bf16.mxu0 0
        %4654 = vmatpush1.bf16.msra.mxu0 0
        %4655 = vmatprep.subr.bf16.mxu0 0
        %4656 = vmatpush1.bf16.msra.mxu0 0
        %4657 = vmatprep.subr.bf16.mxu0 0
        %4658 = vmatpush1.bf16.msra.mxu0 0
        %4659 = vmatprep.subr.bf16.mxu0 0
        %4660 = vmatpush1.bf16.msra.mxu0 0
        %4661 = vmatprep.subr.bf16.mxu0 0
        %4662 = vmatpush1.bf16.msra.mxu0 0
        %4663 = vmatprep.subr.bf16.mxu0 %v4029
        %4664 = vmatpush1.bf16.msra.mxu0 %v4026
        %4665 = vmatprep.subr.bf16.mxu0 0
        %4666 = vmatpush2.bf16.msra.mxu0 0
        %4667 = vmatprep.subr.bf16.mxu0 0
        %4668 = vmatpush2.bf16.msra.mxu0 0
        %4669 = vmatprep.subr.bf16.mxu0 0
        %4670 = vmatpush2.bf16.msra.mxu0 0
        %4671 = vmatprep.subr.bf16.mxu0 0
        %4672 = vmatpush2.bf16.msra.mxu0 0
        %4673 = vmatprep.subr.bf16.mxu0 0
        %4674 = vmatpush2.bf16.msra.mxu0 0
        %4675 = vmatprep.subr.bf16.mxu0 0
        %4676 = vmatpush2.bf16.msra.mxu0 0
        %4677 = vmatprep.subr.bf16.mxu0 0
        %4678 = vmatpush2.bf16.msra.mxu0 0
        %4679 = vmatprep.subr.bf16.mxu0 0
        %4680 = vmatpush2.bf16.msra.mxu0 0
        %4681 = vmatprep.mubr.bf16.mxu0 0
        %4682 = vmatmul.mubr.bf16.gmra.mxu0 %v4016
        %v4683 = vpop.f32.mrf.mxu0
        %v4684 = vadd.f32 %v4643, %v4683
        %v4685 = vpop.f32.mrf.mxu0
        %v4686 = vadd.f32 %v4645, %v4685
        %v4687 = vpop.f32.mrf.mxu0
        %v4688 = vpop.f32.mrf.mxu0
        %4689 = vdwg.mxu0
        %4690 = vmatprep.subr.bf16.mxu0 0
        %4691 = vmatpush1.bf16.msra.mxu0 %v2928
        %4692 = vmatprep.subr.bf16.mxu0 0
        %4693 = vmatpush1.bf16.msra.mxu0 %v2923
        %4694 = vmatprep.subr.bf16.mxu0 0
        %4695 = vmatpush1.bf16.msra.mxu0 %v2918
        %4696 = vmatprep.subr.bf16.mxu0 0
        %4697 = vmatpush1.bf16.msra.mxu0 %v2913
        %4698 = vmatprep.subr.bf16.mxu0 0
        %4699 = vmatpush1.bf16.msra.mxu0 %v2908
        %4700 = vmatprep.subr.bf16.mxu0 0
        %4701 = vmatpush1.bf16.msra.mxu0 %v2903
        %4702 = vmatprep.subr.bf16.mxu0 0
        %4703 = vmatpush1.bf16.msra.mxu0 %v2898
        %4704 = vmatprep.subr.bf16.mxu0 0
        %4705 = vmatpush1.bf16.msra.mxu0 %v2893
        %4706 = vmatprep.subr.bf16.mxu0 0
        %4707 = vmatpush2.bf16.msra.mxu0 %v2968
        %4708 = vmatprep.subr.bf16.mxu0 0
        %4709 = vmatpush2.bf16.msra.mxu0 %v2963
        %4710 = vmatprep.subr.bf16.mxu0 0
        %4711 = vmatpush2.bf16.msra.mxu0 %v2958
        %4712 = vmatprep.subr.bf16.mxu0 0
        %4713 = vmatpush2.bf16.msra.mxu0 %v2953
        %4714 = vmatprep.subr.bf16.mxu0 0
        %4715 = vmatpush2.bf16.msra.mxu0 %v2948
        %4716 = vmatprep.subr.bf16.mxu0 0
        %4717 = vmatpush2.bf16.msra.mxu0 %v2943
        %4718 = vmatprep.subr.bf16.mxu0 0
        %4719 = vmatpush2.bf16.msra.mxu0 %v2938
        %4720 = vmatprep.subr.bf16.mxu0 0
        %4721 = vmatpush2.bf16.msra.mxu0 %v2933
        %4722 = vmatprep.mubr.bf16.mxu0 %v373
        %4723 = vmatmul.mubr.bf16.gmra.mxu0 %v372
        %v4724 = vpop.f32.mrf.mxu0
        %v4725 = vadd.f32 %v1083, %v4724
        %v4726 = vpop.f32.mrf.mxu0
        %v4727 = vpop.f32.mrf.mxu0
        %v4728 = vpop.f32.mrf.mxu0
        %4729 = vdwg.mxu0
        %4730 = vmatprep.subr.bf16.mxu0 0
        %4731 = vmatpush1.bf16.msra.mxu0 %v3008
        %4732 = vmatprep.subr.bf16.mxu0 0
        %4733 = vmatpush1.bf16.msra.mxu0 %v3003
        %4734 = vmatprep.subr.bf16.mxu0 0
        %4735 = vmatpush1.bf16.msra.mxu0 %v2998
        %4736 = vmatprep.subr.bf16.mxu0 0
        %4737 = vmatpush1.bf16.msra.mxu0 %v2993
        %4738 = vmatprep.subr.bf16.mxu0 0
        %4739 = vmatpush1.bf16.msra.mxu0 %v2988
        %4740 = vmatprep.subr.bf16.mxu0 0
        %4741 = vmatpush1.bf16.msra.mxu0 %v2983
        %4742 = vmatprep.subr.bf16.mxu0 0
        %4743 = vmatpush1.bf16.msra.mxu0 %v2978
        %4744 = vmatprep.subr.bf16.mxu0 0
        %4745 = vmatpush1.bf16.msra.mxu0 %v2973
        %4746 = vmatprep.subr.bf16.mxu0 0
        %4747 = vmatpush2.bf16.msra.mxu0 %v3048
        %4748 = vmatprep.subr.bf16.mxu0 0
        %4749 = vmatpush2.bf16.msra.mxu0 %v3043
        %4750 = vmatprep.subr.bf16.mxu0 0
        %4751 = vmatpush2.bf16.msra.mxu0 %v3038
        %4752 = vmatprep.subr.bf16.mxu0 0
        %4753 = vmatpush2.bf16.msra.mxu0 %v3033
        %4754 = vmatprep.subr.bf16.mxu0 0
        %4755 = vmatpush2.bf16.msra.mxu0 %v3028
        %4756 = vmatprep.subr.bf16.mxu0 0
        %4757 = vmatpush2.bf16.msra.mxu0 %v3023
        %4758 = vmatprep.subr.bf16.mxu0 0
        %4759 = vmatpush2.bf16.msra.mxu0 %v3018
        %4760 = vmatprep.subr.bf16.mxu0 0
        %4761 = vmatpush2.bf16.msra.mxu0 %v3013
        %4762 = vmatprep.mubr.bf16.mxu0 %v375
        %4763 = vmatmul.mubr.bf16.gmra.mxu0 %v374
        %v4764 = vpop.f32.mrf.mxu0
        %v4765 = vadd.f32 %v4725, %v4764
        %v4766 = vpop.f32.mrf.mxu0
        %v4767 = vpop.f32.mrf.mxu0
        %v4768 = vpop.f32.mrf.mxu0
        %4769 = vdwg.mxu0
        %4770 = vmatprep.subr.bf16.mxu0 0
        %4771 = vmatpush1.bf16.msra.mxu0 %v3088
        %4772 = vmatprep.subr.bf16.mxu0 0
        %4773 = vmatpush1.bf16.msra.mxu0 %v3083
        %4774 = vmatprep.subr.bf16.mxu0 0
        %4775 = vmatpush1.bf16.msra.mxu0 %v3078
        %4776 = vmatprep.subr.bf16.mxu0 0
        %4777 = vmatpush1.bf16.msra.mxu0 %v3073
        %4778 = vmatprep.subr.bf16.mxu0 0
        %4779 = vmatpush1.bf16.msra.mxu0 %v3068
        %4780 = vmatprep.subr.bf16.mxu0 0
        %4781 = vmatpush1.bf16.msra.mxu0 %v3063
        %4782 = vmatprep.subr.bf16.mxu0 0
        %4783 = vmatpush1.bf16.msra.mxu0 %v3058
        %4784 = vmatprep.subr.bf16.mxu0 0
        %4785 = vmatpush1.bf16.msra.mxu0 %v3053
        %4786 = vmatprep.subr.bf16.mxu0 0
        %4787 = vmatpush2.bf16.msra.mxu0 %v3128
        %4788 = vmatprep.subr.bf16.mxu0 0
        %4789 = vmatpush2.bf16.msra.mxu0 %v3123
        %4790 = vmatprep.subr.bf16.mxu0 0
        %4791 = vmatpush2.bf16.msra.mxu0 %v3118
        %4792 = vmatprep.subr.bf16.mxu0 0
        %4793 = vmatpush2.bf16.msra.mxu0 %v3113
        %4794 = vmatprep.subr.bf16.mxu0 0
        %4795 = vmatpush2.bf16.msra.mxu0 %v3108
        %4796 = vmatprep.subr.bf16.mxu0 0
        %4797 = vmatpush2.bf16.msra.mxu0 %v3103
        %4798 = vmatprep.subr.bf16.mxu0 0
        %4799 = vmatpush2.bf16.msra.mxu0 %v3098
        %4800 = vmatprep.subr.bf16.mxu0 0
        %4801 = vmatpush2.bf16.msra.mxu0 %v3093
        %4802 = vmatprep.mubr.bf16.mxu0 %v377
        %4803 = vmatmul.mubr.bf16.gmra.mxu0 %v376
        %v4804 = vpop.f32.mrf.mxu0
        %v4805 = vadd.f32 %v4765, %v4804
        %v4806 = vpop.f32.mrf.mxu0
        %v4807 = vpop.f32.mrf.mxu0
        %v4808 = vpop.f32.mrf.mxu0
        %4809 = vdwg.mxu0
        %4810 = vmatprep.subr.bf16.mxu0 0
        %4811 = vmatpush1.bf16.msra.mxu0 %v3168
        %4812 = vmatprep.subr.bf16.mxu0 0
        %4813 = vmatpush1.bf16.msra.mxu0 %v3163
        %4814 = vmatprep.subr.bf16.mxu0 0
        %4815 = vmatpush1.bf16.msra.mxu0 %v3158
        %4816 = vmatprep.subr.bf16.mxu0 0
        %4817 = vmatpush1.bf16.msra.mxu0 %v3153
        %4818 = vmatprep.subr.bf16.mxu0 0
        %4819 = vmatpush1.bf16.msra.mxu0 %v3148
        %4820 = vmatprep.subr.bf16.mxu0 0
        %4821 = vmatpush1.bf16.msra.mxu0 %v3143
        %4822 = vmatprep.subr.bf16.mxu0 0
        %4823 = vmatpush1.bf16.msra.mxu0 %v3138
        %4824 = vmatprep.subr.bf16.mxu0 0
        %4825 = vmatpush1.bf16.msra.mxu0 %v3133
        %4826 = vmatprep.subr.bf16.mxu0 0
        %4827 = vmatpush2.bf16.msra.mxu0 %v3208
        %4828 = vmatprep.subr.bf16.mxu0 0
        %4829 = vmatpush2.bf16.msra.mxu0 %v3203
        %4830 = vmatprep.subr.bf16.mxu0 0
        %4831 = vmatpush2.bf16.msra.mxu0 %v3198
        %4832 = vmatprep.subr.bf16.mxu0 0
        %4833 = vmatpush2.bf16.msra.mxu0 %v3193
        %4834 = vmatprep.subr.bf16.mxu0 0
        %4835 = vmatpush2.bf16.msra.mxu0 %v3188
        %4836 = vmatprep.subr.bf16.mxu0 0
        %4837 = vmatpush2.bf16.msra.mxu0 %v3183
        %4838 = vmatprep.subr.bf16.mxu0 0
        %4839 = vmatpush2.bf16.msra.mxu0 %v3178
        %4840 = vmatprep.subr.bf16.mxu0 0
        %4841 = vmatpush2.bf16.msra.mxu0 %v3173
        %4842 = vmatprep.mubr.bf16.mxu0 %v379
        %4843 = vmatmul.mubr.bf16.gmra.mxu0 %v378
        %v4844 = vpop.f32.mrf.mxu0
        %v4845 = vadd.f32 %v4805, %v4844
        %v4846 = vpop.f32.mrf.mxu0
        %v4847 = vpop.f32.mrf.mxu0
        %v4848 = vpop.f32.mrf.mxu0
        %4849 = vdwg.mxu0
        %4850 = vmatprep.subr.bf16.mxu0 0
        %4851 = vmatpush1.bf16.msra.mxu0 %v3248
        %4852 = vmatprep.subr.bf16.mxu0 0
        %4853 = vmatpush1.bf16.msra.mxu0 %v3243
        %4854 = vmatprep.subr.bf16.mxu0 0
        %4855 = vmatpush1.bf16.msra.mxu0 %v3238
        %4856 = vmatprep.subr.bf16.mxu0 0
        %4857 = vmatpush1.bf16.msra.mxu0 %v3233
        %4858 = vmatprep.subr.bf16.mxu0 0
        %4859 = vmatpush1.bf16.msra.mxu0 %v3228
        %4860 = vmatprep.subr.bf16.mxu0 0
        %4861 = vmatpush1.bf16.msra.mxu0 %v3223
        %4862 = vmatprep.subr.bf16.mxu0 0
        %4863 = vmatpush1.bf16.msra.mxu0 %v3218
        %4864 = vmatprep.subr.bf16.mxu0 0
        %4865 = vmatpush1.bf16.msra.mxu0 %v3213
        %4866 = vmatprep.subr.bf16.mxu0 0
        %4867 = vmatpush2.bf16.msra.mxu0 %v3288
        %4868 = vmatprep.subr.bf16.mxu0 0
        %4869 = vmatpush2.bf16.msra.mxu0 %v3283
        %4870 = vmatprep.subr.bf16.mxu0 0
        %4871 = vmatpush2.bf16.msra.mxu0 %v3278
        %4872 = vmatprep.subr.bf16.mxu0 0
        %4873 = vmatpush2.bf16.msra.mxu0 %v3273
        %4874 = vmatprep.subr.bf16.mxu0 0
        %4875 = vmatpush2.bf16.msra.mxu0 %v3268
        %4876 = vmatprep.subr.bf16.mxu0 0
        %4877 = vmatpush2.bf16.msra.mxu0 %v3263
        %4878 = vmatprep.subr.bf16.mxu0 0
        %4879 = vmatpush2.bf16.msra.mxu0 %v3258
        %4880 = vmatprep.subr.bf16.mxu0 0
        %4881 = vmatpush2.bf16.msra.mxu0 %v3253
        %4882 = vmatprep.mubr.bf16.mxu0 %v381
        %4883 = vmatmul.mubr.bf16.gmra.mxu0 %v380
        %v4884 = vpop.f32.mrf.mxu0
        %v4885 = vadd.f32 %v4845, %v4884
        %v4886 = vpop.f32.mrf.mxu0
        %v4887 = vpop.f32.mrf.mxu0
        %v4888 = vpop.f32.mrf.mxu0
        %4889 = vdwg.mxu0
        %4890 = vmatprep.subr.bf16.mxu0 0
        %4891 = vmatpush1.bf16.msra.mxu0 %v3328
        %4892 = vmatprep.subr.bf16.mxu0 0
        %4893 = vmatpush1.bf16.msra.mxu0 %v3323
        %4894 = vmatprep.subr.bf16.mxu0 0
        %4895 = vmatpush1.bf16.msra.mxu0 %v3318
        %4896 = vmatprep.subr.bf16.mxu0 0
        %4897 = vmatpush1.bf16.msra.mxu0 %v3313
        %4898 = vmatprep.subr.bf16.mxu0 0
        %4899 = vmatpush1.bf16.msra.mxu0 %v3308
        %4900 = vmatprep.subr.bf16.mxu0 0
        %4901 = vmatpush1.bf16.msra.mxu0 %v3303
        %4902 = vmatprep.subr.bf16.mxu0 0
        %4903 = vmatpush1.bf16.msra.mxu0 %v3298
        %4904 = vmatprep.subr.bf16.mxu0 0
        %4905 = vmatpush1.bf16.msra.mxu0 %v3293
        %4906 = vmatprep.subr.bf16.mxu0 0
        %4907 = vmatpush2.bf16.msra.mxu0 %v3368
        %4908 = vmatprep.subr.bf16.mxu0 0
        %4909 = vmatpush2.bf16.msra.mxu0 %v3363
        %4910 = vmatprep.subr.bf16.mxu0 0
        %4911 = vmatpush2.bf16.msra.mxu0 %v3358
        %4912 = vmatprep.subr.bf16.mxu0 0
        %4913 = vmatpush2.bf16.msra.mxu0 %v3353
        %4914 = vmatprep.subr.bf16.mxu0 0
        %4915 = vmatpush2.bf16.msra.mxu0 %v3348
        %4916 = vmatprep.subr.bf16.mxu0 0
        %4917 = vmatpush2.bf16.msra.mxu0 %v3343
        %4918 = vmatprep.subr.bf16.mxu0 0
        %4919 = vmatpush2.bf16.msra.mxu0 %v3338
        %4920 = vmatprep.subr.bf16.mxu0 0
        %4921 = vmatpush2.bf16.msra.mxu0 %v3333
        %4922 = vmatprep.mubr.bf16.mxu0 %v383
        %4923 = vmatmul.mubr.bf16.gmra.mxu0 %v382
        %v4924 = vpop.f32.mrf.mxu0
        %v4925 = vadd.f32 %v4885, %v4924
        %v4926 = vpop.f32.mrf.mxu0
        %v4927 = vpop.f32.mrf.mxu0
        %v4928 = vpop.f32.mrf.mxu0
        %4929 = vdwg.mxu0
        %4930 = vmatprep.subr.bf16.mxu0 0
        %4931 = vmatpush1.bf16.msra.mxu0 %v3408
        %4932 = vmatprep.subr.bf16.mxu0 0
        %4933 = vmatpush1.bf16.msra.mxu0 %v3403
        %4934 = vmatprep.subr.bf16.mxu0 0
        %4935 = vmatpush1.bf16.msra.mxu0 %v3398
        %4936 = vmatprep.subr.bf16.mxu0 0
        %4937 = vmatpush1.bf16.msra.mxu0 %v3393
        %4938 = vmatprep.subr.bf16.mxu0 0
        %4939 = vmatpush1.bf16.msra.mxu0 %v3388
        %4940 = vmatprep.subr.bf16.mxu0 0
        %4941 = vmatpush1.bf16.msra.mxu0 %v3383
        %4942 = vmatprep.subr.bf16.mxu0 0
        %4943 = vmatpush1.bf16.msra.mxu0 %v3378
        %4944 = vmatprep.subr.bf16.mxu0 0
        %4945 = vmatpush1.bf16.msra.mxu0 %v3373
        %4946 = vmatprep.subr.bf16.mxu0 0
        %4947 = vmatpush2.bf16.msra.mxu0 %v3448
        %4948 = vmatprep.subr.bf16.mxu0 0
        %4949 = vmatpush2.bf16.msra.mxu0 %v3443
        %4950 = vmatprep.subr.bf16.mxu0 0
        %4951 = vmatpush2.bf16.msra.mxu0 %v3438
        %4952 = vmatprep.subr.bf16.mxu0 0
        %4953 = vmatpush2.bf16.msra.mxu0 %v3433
        %4954 = vmatprep.subr.bf16.mxu0 0
        %4955 = vmatpush2.bf16.msra.mxu0 %v3428
        %4956 = vmatprep.subr.bf16.mxu0 0
        %4957 = vmatpush2.bf16.msra.mxu0 %v3423
        %4958 = vmatprep.subr.bf16.mxu0 0
        %4959 = vmatpush2.bf16.msra.mxu0 %v3418
        %4960 = vmatprep.subr.bf16.mxu0 0
        %4961 = vmatpush2.bf16.msra.mxu0 %v3413
        %4962 = vmatprep.mubr.bf16.mxu0 %v385
        %4963 = vmatmul.mubr.bf16.gmra.mxu0 %v384
        %v4964 = vpop.f32.mrf.mxu0
        %v4965 = vadd.f32 %v4925, %v4964
        %v4966 = vpop.f32.mrf.mxu0
        %v4967 = vpop.f32.mrf.mxu0
        %v4968 = vpop.f32.mrf.mxu0
        %4969 = vdwg.mxu0
        %4970 = vmatprep.subr.bf16.mxu0 0
        %4971 = vmatpush1.bf16.msra.mxu0 0
        %4972 = vmatprep.subr.bf16.mxu0 0
        %4973 = vmatpush1.bf16.msra.mxu0 0
        %4974 = vmatprep.subr.bf16.mxu0 0
        %4975 = vmatpush1.bf16.msra.mxu0 0
        %4976 = vmatprep.subr.bf16.mxu0 0
        %4977 = vmatpush1.bf16.msra.mxu0 0
        %4978 = vmatprep.subr.bf16.mxu0 0
        %4979 = vmatpush1.bf16.msra.mxu0 0
        %4980 = vmatprep.subr.bf16.mxu0 0
        %4981 = vmatpush1.bf16.msra.mxu0 0
        %4982 = vmatprep.subr.bf16.mxu0 0
        %4983 = vmatpush1.bf16.msra.mxu0 0
        %4984 = vmatprep.subr.bf16.mxu0 0
        %4985 = vmatpush1.bf16.msra.mxu0 %v4032
        %4986 = vmatprep.subr.bf16.mxu0 0
        %4987 = vmatpush2.bf16.msra.mxu0 0
        %4988 = vmatprep.subr.bf16.mxu0 0
        %4989 = vmatpush2.bf16.msra.mxu0 0
        %4990 = vmatprep.subr.bf16.mxu0 0
        %4991 = vmatpush2.bf16.msra.mxu0 0
        %4992 = vmatprep.subr.bf16.mxu0 0
        %4993 = vmatpush2.bf16.msra.mxu0 0
        %4994 = vmatprep.subr.bf16.mxu0 0
        %4995 = vmatpush2.bf16.msra.mxu0 0
        %4996 = vmatprep.subr.bf16.mxu0 0
        %4997 = vmatpush2.bf16.msra.mxu0 0
        %4998 = vmatprep.subr.bf16.mxu0 0
        %4999 = vmatpush2.bf16.msra.mxu0 0
        %5000 = vmatprep.subr.bf16.mxu0 0
        %5001 = vmatpush2.bf16.msra.mxu0 0
        %5002 = vmatprep.mubr.bf16.mxu0 0
        %5003 = vmatmul.mubr.bf16.gmra.mxu0 %v4016
        %v5004 = vpop.f32.mrf.mxu0
        %v5005 = vadd.f32 %v4965, %v5004
        %v5006 = vpop.f32.mrf.mxu0
        %v5007 = vpop.f32.mrf.mxu0
        %v5008 = vpop.f32.mrf.mxu0
        %5009 = vdwg.mxu0
        %5010 = vst [vmem:[%s215] sm:$0xff] %v4356
        %5011 = vst [vmem:[%s215 + $0x8] sm:$0xff] %v4358
        %5012 = vst [vmem:[%s215 + $0x10] sm:$0xff] %v4684
        %5013 = vst [vmem:[%s215 + $0x18] sm:$0xff] %v4686
        %vm5014 = vcmask 719872
        %5015 = vst.msk [vmem:[%s215 + $0x20] sm:$0xff] %vm5014, %v5005
        %s5016 = sand.u32 %s97, 1
        %s5017 = scalar_lea.sflag [#allocation4], %s5016
        %s5018 = sand.u32 %s97, 1
        %s5019 = smul.addr %s5018, 40
        %s5020 = scalar_lea.vmem [#allocation8], %s5019
        // Predicated region
        $region45: #{tpu_custom_call.1} parent=31 // pred_check
          %p5021 = pneg %p107
        $region46: #{tpu_custom_call.1} parent=31 // pred_check_branch
          %5023 = sbr.rel (%p5021) target = $region48
        $region47: #{tpu_custom_call.1} parent=31 // pred_region
          %s5025 = ssub.s32 640, 640
          %5026 = vsyncadd %s5017, %s5025
          %s5027 = smul.addr %s21, 5
          %s5028 = smul.addr %s5027, 128
          %s5029 = scalar_lea.hbm %s3, %s5028
          %s5031 = sshll.u32 %s5020, 4
          %s5032 = int_to_ptr.vmem [resolvable:$true] %s5031
          %5034 = dma.vmem_to_hbm [thread:$0]  %s5032, 640, %s5029, %s5017
        $region48: #{tpu_custom_call.1} parent=31 // pred_fallthru
          _
      $region32: #{tpu_custom_call.1} parent=5 // pred_fallthru
        _
      %p5035 = scmp.le.s32.totalorder 2, %s16
      // Predicated region
      $region49: #{tpu_custom_call.1} parent=5 // pred_check
        %p5036 = pneg %p5035
      $region50: #{tpu_custom_call.1} parent=5 // pred_check_branch
        %5038 = sbr.rel (%p5036) target = $region52
      $region51: #{tpu_custom_call.1} parent=5 // pred_region
        %s5039 = ssub.s32 %s16, 2
        // Predicated region
        $region53: #{tpu_custom_call.1} parent=51 // pred_check
          %p5040 = pneg %p113
        $region54: #{tpu_custom_call.1} parent=51 // pred_check_branch
          %5042 = sbr.rel (%p5040) target = $region56
        $region55: #{tpu_custom_call.1} parent=51 // pred_region
          %s5043 = sand.u32 %s98, 1
          %s5044 = scalar_lea.sflag [#allocation4], %s5043
          %s5045 = sand.u32 %s98, 1
          %s5046 = smul.addr %s5045, 40
          %s5047 = scalar_lea.vmem [#allocation8], %s5046
          %5048 = dma.done %s5044, 640
        $region56: #{tpu_custom_call.1} parent=51 // pred_fallthru
          _
      $region52: #{tpu_custom_call.1} parent=5 // pred_fallthru
        _
    $region6: #{tpu_custom_call.1} parent=1 // loop_footer
      %s20 = sadd.s32 1, %s16
    $region7: #{tpu_custom_call.1} parent=1 // loop_footer_branch
      %15 = sbr.rel target = $region3
    $region8: #{tpu_custom_call.1} parent=1 // loop_exit
      _
    %5049 = vsyncpa [#allocation3], 1
    %s5050 = scalar_lea.sflag [#allocation3], 1
    %5051 = vsyncpa %s5050, 1
    %5052 = vsyncpa [#allocation6], 1
    %5053 = vsyncpa [#allocation4], 1
    %s5054 = scalar_lea.sflag [#allocation4], 1
    %5055 = vsyncpa %s5054, 1

</llo_original>
